<compile_context>
chip_gen: v5e
topology: v5e:2x2
jax: 0.10.0
libtpu: 0.0.40
codegen_flags: <defaults>
</compile_context>

<pallas_src>
import math

import jax
import jax.numpy as jnp
from jax.experimental import pallas as pl
from jax.experimental.pallas import tpu as pltpu

_NEG_INF = -1e18


def _layernorm(x, gamma, beta, eps=1e-6):
    mu = jnp.mean(x, axis=-1, keepdims=True)
    var = jnp.mean((x - mu) ** 2, axis=-1, keepdims=True)
    return (x - mu) * jax.lax.rsqrt(var + eps) * gamma + beta


def _make_kernel(heads, dh_p, apply_ln, with_attn):
    def kernel(*refs):
        (k_ref, v_ref, q_ref, m_ref,
         lng_ref, lnb_ref,
         wk_ref, bk_ref, wv_ref, bv_ref, wq_ref, bq_ref, wo_ref, bo_ref,
         ln2g_ref, ln2b_ref, w1_ref, b1_ref, w2_ref, b2_ref) = refs[:20]
        out_ref = refs[20]
        if with_attn:
            attn_ref = refs[21]
            kh_s, vh_s = refs[22], refs[23]
        else:
            attn_ref = None
            kh_s, vh_s = refs[21], refs[22]

        bf16, f32 = jnp.bfloat16, jnp.float32
        qi = pl.program_id(1)

        # K/V depend only on the batch index: project + head-split once per
        # batch element, cache head-major (H, Sp, dh_p) bf16 in VMEM scratch.
        @pl.when(qi == 0)
        def _():
            k = k_ref[0].astype(f32)
            v = v_ref[0].astype(f32)
            if apply_ln:                                  # iter is a Python int
                g = lng_ref[...]
                b = lnb_ref[...]
                k = _layernorm(k, g, b)
                v = _layernorm(v, g, b)
            kp = jnp.dot(k.astype(bf16), wk_ref[...],
                         preferred_element_type=f32) + bk_ref[...]
            vp = jnp.dot(v.astype(bf16), wv_ref[...],
                         preferred_element_type=f32) + bv_ref[...]
            # Head split = 128-aligned lane slices (dh zero-padded to dh_p via
            # the weights) stacked head-major in one shot; no masked stores.
            kh_s[...] = jnp.stack(
                [kp[:, h * dh_p:(h + 1) * dh_p] for h in range(heads)],
                axis=0).astype(bf16)
            vh_s[...] = jnp.stack(
                [vp[:, h * dh_p:(h + 1) * dh_p] for h in range(heads)],
                axis=0).astype(bf16)

        # Query tile (every grid step).  1/sqrt(dh) folded into wq/bq.
        q_in = q_ref[0].astype(f32)
        if apply_ln:
            q_in = _layernorm(q_in, lng_ref[...], lnb_ref[...])
        qp = jnp.dot(q_in.astype(bf16), wq_ref[...],
                     preferred_element_type=f32) + bq_ref[...]
        qh = jnp.stack(
            [qp[:, h * dh_p:(h + 1) * dh_p] for h in range(heads)],
            axis=0).astype(bf16)                          # (H, TQ, dh_p)

        # Head-batched attention; softmax math stays f32.
        mask_bool = m_ref[0] > 0.0                        # (1, Sp); 1.0 == masked
        scores = jnp.einsum('hqd,hkd->hqk', qh, kh_s[...],
                            preferred_element_type=f32)   # (H, TQ, Sp)
        scores = jnp.where(mask_bool[None], _NEG_INF, scores)
        scores = scores - jnp.max(scores, axis=-1, keepdims=True)
        e = jnp.exp(scores)
        denom = jnp.sum(e, axis=-1, keepdims=True)
        r = pl.reciprocal(denom, approx=True)
        r = r * (2.0 - denom * r)       # one Newton step -> near-exact rows
        probs = e * r
        if with_attn:
            attn_ref[0] = probs[0].astype(attn_ref.dtype)  # head-0 "top_attn"

        ctx3 = jnp.einsum('hqk,hkd->hqd', probs.astype(bf16), vh_s[...],
                          preferred_element_type=f32)      # (H, TQ, dh_p)
        ctx = jnp.concatenate([ctx3[h] for h in range(heads)], axis=-1)
        ctx = jnp.dot(ctx.astype(bf16), wo_ref[...],
                      preferred_element_type=f32) + bo_ref[...]

        out = ctx + q_in                # residual (dropout == identity)

        # PositionwiseFeedForward: out + W2(relu(W1(LN(out))))
        x = _layernorm(out, ln2g_ref[...], ln2b_ref[...])
        h1 = jnp.maximum(
            jnp.dot(x.astype(bf16), w1_ref[...],
                    preferred_element_type=f32) + b1_ref[...], 0.0)
        y = jnp.dot(h1.astype(bf16), w2_ref[...],
                    preferred_element_type=f32) + b2_ref[...]
        out_ref[0] = (y + out).astype(out_ref.dtype)

    return kernel


def _round_up(x, m):
    return -(-x // m) * m


def _pad_head_cols(w, heads, dh, dh_p):
    """(in, heads*dh) -> (in, heads*dh_p), zero-padding each head's columns."""
    if dh_p == dh:
        return w
    lead = w.shape[0]
    w3 = w.reshape(lead, heads, dh)
    w3 = jnp.pad(w3, ((0, 0), (0, 0), (0, dh_p - dh)))
    return w3.reshape(lead, heads * dh_p)


def _pad_head_rows(w, heads, dh, dh_p):
    """(heads*dh, out) -> (heads*dh_p, out), zero-padding each head's rows."""
    if dh_p == dh:
        return w
    out = w.shape[1]
    w3 = w.reshape(heads, dh, out)
    w3 = jnp.pad(w3, ((0, 0), (0, dh_p - dh), (0, 0)))
    return w3.reshape(heads * dh_p, out)


def _vmem_cap_bytes():
    try:
        return int(pltpu.get_tpu_info().vmem_capacity_bytes)
    except Exception:
        return 64 << 20        # conservative (v7x) fallback


def _prefer_tq256():
    try:
        kind = jax.devices()[0].device_kind.lower()
    except Exception:
        return False
    return ("v6" in kind) or ("v7" in kind)   # 256x256-MXU generations


def _live_bytes(tq, sp, D, Dp, F, heads, dh_p, with_attn):
    """Rough resident-VMEM estimate (weights single-buffered, acts as used)."""
    w = (3 * D * Dp + Dp * D + 2 * D * F) * 2            # bf16 matmul weights
    w += (3 * Dp + 2 * D + F + 4 * D) * 4                # biases + LN params
    act = 2 * sp * D * 2                                 # K, V bf16 (1 buffer)
    act += 2 * (2 * tq * D * 2)                          # Q bf16 (2 buffers)
    act += 2 * tq * D * 4                                # out f32 (2 buffers)
    act += 2 * sp * 4                                    # mask
    if with_attn:
        act += 2 * tq * sp * 2                           # attn bf16 (2 buffers)
    scr = 2 * heads * sp * dh_p * 2                      # K/V head scratch
    tmp = 3 * heads * tq * sp * 4                        # scores / exp / probs
    tmp += 2 * sp * Dp * 4                               # kp/vp (qi==0 step)
    tmp += tq * Dp * 4 + 2 * tq * max(D, F) * 4          # qp / FFN temporaries
    return w + act + scr + tmp


def image_encoder_layer(iter_, key, value, query, mask, params, *, heads,
                        return_attn=True):
    """key/value/query: (B, S, D); mask: (B, S), 1.0 == masked position."""
    B, S, D = query.shape
    assert D % heads == 0
    dh = D // heads
    dh_p = 128 if dh < 128 else dh        # lane-aligned head width
    Dp = heads * dh_p
    F = params["w1"].shape[1]
    f32, bf16 = jnp.float32, jnp.bfloat16

    cap = _vmem_cap_bytes()

    # Query-tile size, gated on a VMEM budget that includes the (H, TQ, Sp)
    # f32 softmax temporaries; 256 on v6e/v7x when it fits, else back off.
    if S <= 128:
        TQ = _round_up(max(S, 8), 8)
    else:
        cands = (256, 128, 64, 32) if _prefer_tq256() else (128, 64, 32)
        TQ = cands[-1]
        for tq in cands:
            sp = _round_up(S, tq)
            if _live_bytes(tq, sp, D, Dp, F, heads, dh_p,
                           return_attn) <= int(0.8 * cap):
                TQ = tq
                break
    Sp = _round_up(S, TQ)
    n_q = Sp // TQ

    # Pad the sequence to a TQ multiple: pad keys are masked, pad query rows
    # are sliced off afterwards.  Keeps tiles sublane/lane aligned.
    key_p, value_p, query_p = (x.astype(bf16) for x in (key, value, query))
    mask_p = mask.astype(f32)
    if Sp != S:
        pad = Sp - S
        key_p = jnp.pad(key_p, ((0, 0), (0, pad), (0, 0)))
        value_p = jnp.pad(value_p, ((0, 0), (0, pad), (0, 0)))
        query_p = jnp.pad(query_p, ((0, 0), (0, pad), (0, 0)))
        mask_p = jnp.pad(mask_p, ((0, 0), (0, pad)), constant_values=1.0)
    mask3 = mask_p.reshape(B, 1, Sp)

    # Matmul weights in bf16 (MXU native), biases/LN in f32.  The 1/sqrt(dh)
    # scale is folded into wq/bq; the head dim is zero-padded to dh_p through
    # the weights so the in-kernel head split is pure 128-aligned slicing.
    scale = 1.0 / math.sqrt(dh)
    weight_args = [
        params["ln_g"].astype(f32), params["ln_b"].astype(f32),
        _pad_head_cols(params["wk"], heads, dh, dh_p).astype(bf16),
        _pad_head_cols(params["bk"], heads, dh, dh_p).astype(f32),
        _pad_head_cols(params["wv"], heads, dh, dh_p).astype(bf16),
        _pad_head_cols(params["bv"], heads, dh, dh_p).astype(f32),
        _pad_head_cols(params["wq"] * scale, heads, dh, dh_p).astype(bf16),
        _pad_head_cols(params["bq"] * scale, heads, dh, dh_p).astype(f32),
        _pad_head_rows(params["wo"], heads, dh, dh_p).astype(bf16),
        params["bo"].astype(f32),
        params["ln2_g"].astype(f32), params["ln2_b"].astype(f32),
        params["w1"].astype(bf16), params["b1"].astype(f32),
        params["w2"].astype(bf16), params["b2"].astype(f32),
    ]

    est = _live_bytes(TQ, Sp, D, Dp, F, heads, dh_p, return_attn)
    vmem_limit = int(min(max(2 * est + (4 << 20), 32 << 20), int(0.9 * cap)))

    weight_bytes = sum(int(a.size) * a.dtype.itemsize for a in weight_args)
    flops = B * (8 * Sp * D * Dp + 4 * Sp * Sp * Dp + 4 * Sp * D * F)
    cost = pl.CostEstimate(
        flops=int(flops),
        transcendentals=int(B * heads * Sp * Sp),
        bytes_accessed=int(3 * B * Sp * D * 2 + B * Sp * 4 + weight_bytes +
                           B * Sp * D * 4 +
                           (B * Sp * Sp * 2 if return_attn else 0)),
    )

    kernel = _make_kernel(heads=heads, dh_p=dh_p, apply_ln=(iter_ != 0),
                          with_attn=return_attn)

    out_shapes = [jax.ShapeDtypeStruct((B, Sp, D), f32)]
    if return_attn:
        # bf16 attention map halves the (B, S, S) HBM writeback.
        out_shapes.append(jax.ShapeDtypeStruct((B, Sp, Sp), bf16))

    scratch_shapes = [
        pltpu.VMEM((heads, Sp, dh_p), bf16),   # K heads (cached per batch)
        pltpu.VMEM((heads, Sp, dh_p), bf16),   # V heads
    ]

    def _spec(shape, index_map, single):
        # Constant weights / the per-batch K,V slabs only need one buffer.
        if single and hasattr(pl, "Buffered"):
            try:
                return pl.BlockSpec(shape, index_map,
                                    pipeline_mode=pl.Buffered(1))
            except TypeError:
                pass
        return pl.BlockSpec(shape, index_map)

    def _call(single_buffer):
        weight_specs = [
            _spec(a.shape, lambda b, qi, _nd=a.ndim: (0,) * _nd, single_buffer)
            for a in weight_args
        ]
        kv_spec = _spec((1, Sp, D), lambda b, qi: (b, 0, 0), single_buffer)
        q_spec = pl.BlockSpec((1, TQ, D), lambda b, qi: (b, qi, 0))
        mask_spec = pl.BlockSpec((1, 1, Sp), lambda b, qi: (b, 0, 0))
        out_specs = [pl.BlockSpec((1, TQ, D), lambda b, qi: (b, qi, 0))]
        if return_attn:
            out_specs.append(pl.BlockSpec((1, TQ, Sp), lambda b, qi: (b, qi, 0)))

        res = pl.pallas_call(
            kernel,
            out_shape=tuple(out_shapes),
            grid_spec=pltpu.PrefetchScalarGridSpec(
                num_scalar_prefetch=0,
                grid=(B, n_q),
                in_specs=[kv_spec, kv_spec, q_spec, mask_spec] + weight_specs,
                out_specs=out_specs,
                scratch_shapes=scratch_shapes,
            ),
            compiler_params=pltpu.CompilerParams(
                # TODO(synk): when B < number of TensorCores (v7x), hoist the
                # K/V projection out of the kernel so the q-tile axis can also
                # be marked "parallel" and shard across cores.
                dimension_semantics=("parallel", "arbitrary"),
                vmem_limit_bytes=vmem_limit,
            ),
            cost_estimate=cost,
        )(key_p, value_p, query_p, mask3, *weight_args)
        return res

    try:
        results = _call(True)                 # single-buffered constants + K/V
        jax.block_until_ready(results)
    except Exception:
        results = _call(False)                # fallback: default double-buffer

    out = results[0]
    attn = results[1] if return_attn else None
    if Sp != S:
        out = out[:, :S, :]
        if attn is not None:
            attn = attn[:, :S, :S]
    return out, attn


def init_params(rng, d_model, d_ff):
    """Deterministic synthetic parameters (shapes from the module __init__)."""
    ks = jax.random.split(rng, 8)

    def lin(k, fan_in, fan_out):
        bound = 1.0 / math.sqrt(fan_in)
        kw, kb = jax.random.split(k)
        w = jax.random.uniform(kw, (fan_in, fan_out), jnp.float32, -bound, bound)
        b = jax.random.uniform(kb, (1, fan_out), jnp.float32, -bound, bound)
        return w, b

    wk, bk = lin(ks[0], d_model, d_model)
    wv, bv = lin(ks[1], d_model, d_model)
    wq, bq = lin(ks[2], d_model, d_model)
    wo, bo = lin(ks[3], d_model, d_model)
    w1, b1 = lin(ks[4], d_model, d_ff)
    w2, b2 = lin(ks[5], d_ff, d_model)
    return dict(
        ln_g=jnp.ones((1, d_model), jnp.float32),
        ln_b=jnp.zeros((1, d_model), jnp.float32),
        wk=wk, bk=bk, wv=wv, bv=bv, wq=wq, bq=bq, wo=wo, bo=bo,
        ln2_g=jnp.ones((1, d_model), jnp.float32),
        ln2_b=jnp.zeros((1, d_model), jnp.float32),
        w1=w1, b1=b1, w2=w2, b2=b2,
    )


def _reference(iter_, key, value, query, mask, params, heads):
    """Pure-JAX f32 reference of the PyTorch forward (eval mode)."""
    def ln(x, g, b):
        mu = jnp.mean(x, -1, keepdims=True)
        var = jnp.mean((x - mu) ** 2, -1, keepdims=True)
        return (x - mu) / jnp.sqrt(var + 1e-6) * g + b

    if iter_ != 0:
        key = ln(key, params["ln_g"], params["ln_b"])
        value = ln(value, params["ln_g"], params["ln_b"])
        query = ln(query, params["ln_g"], params["ln_b"])
    B, S, D = query.shape
    dh = D // heads
    kp = key @ params["wk"] + params["bk"]
    vp = value @ params["wv"] + params["bv"]
    qp = query @ params["wq"] + params["bq"]

    def split(x):
        return x.reshape(B, S, heads, dh).transpose(0, 2, 1, 3)

    qh, kh, vh = split(qp) / math.sqrt(dh), split(kp), split(vp)
    sc = jnp.einsum('bhqd,bhkd->bhqk', qh, kh)
    sc = jnp.where(mask[:, None, None, :] > 0.0, _NEG_INF, sc)
    p = jax.nn.softmax(sc, axis=-1)
    ctx = jnp.einsum('bhqk,bhkd->bhqd', p, vh).transpose(0, 2, 1, 3).reshape(B, S, D)
    ctx = ctx @ params["wo"] + params["bo"]
    out = ctx + query
    x = ln(out, params["ln2_g"], params["ln2_b"])
    y = jnp.maximum(x @ params["w1"] + params["b1"], 0.0) @ params["w2"] + params["b2"]
    return y + out, p[:, 0]


if __name__ == "__main__":
    B, S, D, H, F = 2, 8, 32, 4, 64

    root = jax.random.PRNGKey(0)
    kk, kv, kq, kp = jax.random.split(root, 4)
    key = jax.random.normal(kk, (B, S, D), jnp.float32)
    value = jax.random.normal(kv, (B, S, D), jnp.float32)
    query = jax.random.normal(kq, (B, S, D), jnp.float32)
    # mask: 1.0 = masked position; mask the last two keys of batch element 1.
    mask = jnp.zeros((B, S), jnp.float32).at[1, -2:].set(1.0)

    params = init_params(kp, D, F)

    # iter != 0 path (applies the shared LayerNorm to key/value/query)
    out1, attn1 = image_encoder_layer(1, key, value, query, mask, params, heads=H)
    jax.block_until_ready((out1, attn1))
    # iter == 0 path (no pre-LayerNorm)
    out0, attn0 = image_encoder_layer(0, key, value, query, mask, params, heads=H)
    jax.block_until_ready((out0, attn0))
    # attention output disabled (skips the (B,S,S) writeback when unused)
    out_na, _ = image_encoder_layer(1, key, value, query, mask, params, heads=H,
                                    return_attn=False)
    jax.block_until_ready(out_na)

    assert out1.shape == (B, S, D) and attn1.shape == (B, S, S)
    assert out0.shape == (B, S, D) and attn0.shape == (B, S, S)
    attn1_f = attn1.astype(jnp.float32)
    assert bool(jnp.all(jnp.isfinite(out1))) and bool(jnp.all(jnp.isfinite(attn1_f)))
    assert bool(jnp.all(jnp.isfinite(out0))) and bool(jnp.all(jnp.isfinite(out_na)))
    # softmax rows sum to ~1 (Newton-refined reciprocal; bf16 attn storage)
    assert bool(jnp.all(jnp.abs(jnp.sum(attn1_f, axis=-1) - 1.0) < 1e-2))

    # loose numerical check vs the f32 reference (bf16 inputs/weights at the
    # MXU boundary + bf16 attention storage -> small deviations expected)
    ref_out1, ref_attn1 = _reference(1, key, value, query, mask, params, H)
    ref_out0, _ = _reference(0, key, value, query, mask, params, H)
    assert float(jnp.max(jnp.abs(out1 - ref_out1))) < 0.2
    assert float(jnp.max(jnp.abs(out0 - ref_out0))) < 0.2
    assert float(jnp.max(jnp.abs(out_na - ref_out1))) < 0.2
    assert float(jnp.max(jnp.abs(attn1_f - ref_attn1))) < 0.05

    print("KERNEL_OK")
</pallas_src>

<mosaic_0001>
module attributes {stable_mosaic.version = 11 : i64} {
  func.func @kernel(%arg0: i32, %arg1: i32, %arg2: memref<1x8x32xbf16, #tpu.memory_space<vmem>>, %arg3: memref<1x8x32xbf16, #tpu.memory_space<vmem>>, %arg4: memref<1x8x32xbf16, #tpu.memory_space<vmem>>, %arg5: memref<1x1x8xf32, #tpu.memory_space<vmem>>, %arg6: memref<1x32xf32, #tpu.memory_space<vmem>>, %arg7: memref<1x32xf32, #tpu.memory_space<vmem>>, %arg8: memref<32x512xbf16, #tpu.memory_space<vmem>>, %arg9: memref<1x512xf32, #tpu.memory_space<vmem>>, %arg10: memref<32x512xbf16, #tpu.memory_space<vmem>>, %arg11: memref<1x512xf32, #tpu.memory_space<vmem>>, %arg12: memref<32x512xbf16, #tpu.memory_space<vmem>>, %arg13: memref<1x512xf32, #tpu.memory_space<vmem>>, %arg14: memref<512x32xbf16, #tpu.memory_space<vmem>>, %arg15: memref<1x32xf32, #tpu.memory_space<vmem>>, %arg16: memref<1x32xf32, #tpu.memory_space<vmem>>, %arg17: memref<1x32xf32, #tpu.memory_space<vmem>>, %arg18: memref<32x64xbf16, #tpu.memory_space<vmem>>, %arg19: memref<1x64xf32, #tpu.memory_space<vmem>>, %arg20: memref<64x32xbf16, #tpu.memory_space<vmem>>, %arg21: memref<1x32xf32, #tpu.memory_space<vmem>>, %arg22: memref<1x8x32xf32, #tpu.memory_space<vmem>>, %arg23: memref<1x8x8xbf16, #tpu.memory_space<vmem>>, %arg24: memref<4x8x128xbf16, #tpu.memory_space<vmem>>, %arg25: memref<4x8x128xbf16, #tpu.memory_space<vmem>>) attributes {dimension_semantics = [#tpu.dimension_semantics<parallel>, #tpu.dimension_semantics<arbitrary>], iteration_bounds = array<i64: 2, 1>, scalar_prefetch = 0 : i64, scratch_operands = 2 : i64, tpu.core_type = #tpu.core_type<tc>, window_params = [{pipeline_mode = #tpu.pipeline_mode<synchronous>, transform_indices = @transform_0, window_bounds = array<i64: 1, 8, 32>}, {pipeline_mode = #tpu.pipeline_mode<synchronous>, transform_indices = @transform_1, window_bounds = array<i64: 1, 8, 32>}, {transform_indices = @transform_2, window_bounds = array<i64: 1, 8, 32>}, {transform_indices = @transform_3, window_bounds = array<i64: 1, 1, 8>}, {pipeline_mode = #tpu.pipeline_mode<synchronous>, transform_indices = @transform_4, window_bounds = array<i64: 1, 32>}, {pipeline_mode = #tpu.pipeline_mode<synchronous>, transform_indices = @transform_5, window_bounds = array<i64: 1, 32>}, {pipeline_mode = #tpu.pipeline_mode<synchronous>, transform_indices = @transform_6, window_bounds = array<i64: 32, 512>}, {pipeline_mode = #tpu.pipeline_mode<synchronous>, transform_indices = @transform_7, window_bounds = array<i64: 1, 512>}, {pipeline_mode = #tpu.pipeline_mode<synchronous>, transform_indices = @transform_8, window_bounds = array<i64: 32, 512>}, {pipeline_mode = #tpu.pipeline_mode<synchronous>, transform_indices = @transform_9, window_bounds = array<i64: 1, 512>}, {pipeline_mode = #tpu.pipeline_mode<synchronous>, transform_indices = @transform_10, window_bounds = array<i64: 32, 512>}, {pipeline_mode = #tpu.pipeline_mode<synchronous>, transform_indices = @transform_11, window_bounds = array<i64: 1, 512>}, {pipeline_mode = #tpu.pipeline_mode<synchronous>, transform_indices = @transform_12, window_bounds = array<i64: 512, 32>}, {pipeline_mode = #tpu.pipeline_mode<synchronous>, transform_indices = @transform_13, window_bounds = array<i64: 1, 32>}, {pipeline_mode = #tpu.pipeline_mode<synchronous>, transform_indices = @transform_14, window_bounds = array<i64: 1, 32>}, {pipeline_mode = #tpu.pipeline_mode<synchronous>, transform_indices = @transform_15, window_bounds = array<i64: 1, 32>}, {pipeline_mode = #tpu.pipeline_mode<synchronous>, transform_indices = @transform_16, window_bounds = array<i64: 32, 64>}, {pipeline_mode = #tpu.pipeline_mode<synchronous>, transform_indices = @transform_17, window_bounds = array<i64: 1, 64>}, {pipeline_mode = #tpu.pipeline_mode<synchronous>, transform_indices = @transform_18, window_bounds = array<i64: 64, 32>}, {pipeline_mode = #tpu.pipeline_mode<synchronous>, transform_indices = @transform_19, window_bounds = array<i64: 1, 32>}, {transform_indices = @transform_20, window_bounds = array<i64: 1, 8, 32>}, {transform_indices = @transform_21, window_bounds = array<i64: 1, 8, 8>}]} {
    %c0_i32 = arith.constant 0 : i32
    %0 = arith.cmpi eq, %arg1, %c0_i32 : i32
    %1 = arith.extui %0 : i1 to i32
    %c0_i32_0 = arith.constant 0 : i32
    %2 = arith.cmpi ne, %1, %c0_i32_0 : i32
    scf.if %2 {
      %c0_63 = arith.constant 0 : index
      %c0_64 = arith.constant 0 : index
      %c0_65 = arith.constant 0 : index
      %138 = vector.load %arg2[%c0_63, %c0_64, %c0_65] : memref<1x8x32xbf16, #tpu.memory_space<vmem>>, vector<1x8x32xbf16>
      %139 = vector.shape_cast %138 : vector<1x8x32xbf16> to vector<8x32xbf16>
      %140 = arith.extf %139 : vector<8x32xbf16> to vector<8x32xf32>
      %c0_66 = arith.constant 0 : index
      %c0_67 = arith.constant 0 : index
      %c0_68 = arith.constant 0 : index
      %141 = vector.load %arg3[%c0_66, %c0_67, %c0_68] : memref<1x8x32xbf16, #tpu.memory_space<vmem>>, vector<1x8x32xbf16>
      %142 = vector.shape_cast %141 : vector<1x8x32xbf16> to vector<8x32xbf16>
      %143 = arith.extf %142 : vector<8x32xbf16> to vector<8x32xf32>
      %c0_69 = arith.constant 0 : index
      %c0_70 = arith.constant 0 : index
      %144 = vector.load %arg6[%c0_69, %c0_70] : memref<1x32xf32, #tpu.memory_space<vmem>>, vector<1x32xf32>
      %c0_71 = arith.constant 0 : index
      %c0_72 = arith.constant 0 : index
      %145 = vector.load %arg7[%c0_71, %c0_72] : memref<1x32xf32, #tpu.memory_space<vmem>>, vector<1x32xf32>
      %cst_73 = arith.constant dense<0.000000e+00> : vector<8xf32>
      %146 = vector.multi_reduction <add>, %140, %cst_73 [1] : vector<8x32xf32> to vector<8xf32>
      %147 = vector.shape_cast %146 : vector<8xf32> to vector<8x1xf32>
      %cst_74 = arith.constant 3.200000e+01 : f32
      %148 = vector.broadcast %cst_74 : f32 to vector<8x1xf32>
      %149 = arith.divf %147, %148 : vector<8x1xf32>
      %150 = vector.broadcast %149 : vector<8x1xf32> to vector<8x32xf32>
      %151 = arith.subf %140, %150 : vector<8x32xf32>
      %152 = arith.mulf %151, %151 : vector<8x32xf32>
      %cst_75 = arith.constant dense<0.000000e+00> : vector<8xf32>
      %153 = vector.multi_reduction <add>, %152, %cst_75 [1] : vector<8x32xf32> to vector<8xf32>
      %154 = vector.shape_cast %153 : vector<8xf32> to vector<8x1xf32>
      %cst_76 = arith.constant 3.200000e+01 : f32
      %155 = vector.broadcast %cst_76 : f32 to vector<8x1xf32>
      %156 = arith.divf %154, %155 : vector<8x1xf32>
      %157 = vector.broadcast %149 : vector<8x1xf32> to vector<8x32xf32>
      %158 = arith.subf %140, %157 : vector<8x32xf32>
      %cst_77 = arith.constant 9.99999997E-7 : f32
      %159 = vector.broadcast %cst_77 : f32 to vector<8x1xf32>
      %160 = arith.addf %156, %159 : vector<8x1xf32>
      %161 = math.rsqrt %160 : vector<8x1xf32>
      %162 = vector.broadcast %161 : vector<8x1xf32> to vector<8x32xf32>
      %163 = arith.mulf %158, %162 : vector<8x32xf32>
      %164 = vector.broadcast %144 : vector<1x32xf32> to vector<8x32xf32>
      %165 = arith.mulf %163, %164 : vector<8x32xf32>
      %166 = vector.broadcast %145 : vector<1x32xf32> to vector<8x32xf32>
      %167 = arith.addf %165, %166 : vector<8x32xf32>
      %cst_78 = arith.constant dense<0.000000e+00> : vector<8xf32>
      %168 = vector.multi_reduction <add>, %143, %cst_78 [1] : vector<8x32xf32> to vector<8xf32>
      %169 = vector.shape_cast %168 : vector<8xf32> to vector<8x1xf32>
      %cst_79 = arith.constant 3.200000e+01 : f32
      %170 = vector.broadcast %cst_79 : f32 to vector<8x1xf32>
      %171 = arith.divf %169, %170 : vector<8x1xf32>
      %172 = vector.broadcast %171 : vector<8x1xf32> to vector<8x32xf32>
      %173 = arith.subf %143, %172 : vector<8x32xf32>
      %174 = arith.mulf %173, %173 : vector<8x32xf32>
      %cst_80 = arith.constant dense<0.000000e+00> : vector<8xf32>
      %175 = vector.multi_reduction <add>, %174, %cst_80 [1] : vector<8x32xf32> to vector<8xf32>
      %176 = vector.shape_cast %175 : vector<8xf32> to vector<8x1xf32>
      %cst_81 = arith.constant 3.200000e+01 : f32
      %177 = vector.broadcast %cst_81 : f32 to vector<8x1xf32>
      %178 = arith.divf %176, %177 : vector<8x1xf32>
      %179 = vector.broadcast %171 : vector<8x1xf32> to vector<8x32xf32>
      %180 = arith.subf %143, %179 : vector<8x32xf32>
      %cst_82 = arith.constant 9.99999997E-7 : f32
      %181 = vector.broadcast %cst_82 : f32 to vector<8x1xf32>
      %182 = arith.addf %178, %181 : vector<8x1xf32>
      %183 = math.rsqrt %182 : vector<8x1xf32>
      %184 = vector.broadcast %183 : vector<8x1xf32> to vector<8x32xf32>
      %185 = arith.mulf %180, %184 : vector<8x32xf32>
      %186 = vector.broadcast %144 : vector<1x32xf32> to vector<8x32xf32>
      %187 = arith.mulf %185, %186 : vector<8x32xf32>
      %188 = vector.broadcast %145 : vector<1x32xf32> to vector<8x32xf32>
      %189 = arith.addf %187, %188 : vector<8x32xf32>
      %190 = arith.truncf %167 : vector<8x32xf32> to vector<8x32xbf16>
      %c0_83 = arith.constant 0 : index
      %c0_84 = arith.constant 0 : index
      %191 = vector.load %arg8[%c0_83, %c0_84] : memref<32x512xbf16, #tpu.memory_space<vmem>>, vector<32x512xbf16>
      %cst_85 = arith.constant dense<0.000000e+00> : vector<8x512xf32>
      %192 = tpu.matmul %190, %191, %cst_85 {dimension_numbers = #tpu.dot_dimension_numbers<[1], [0], [0], [1], [0, 0, 1, 1], [], []>} : vector<8x32xbf16>, vector<32x512xbf16>, vector<8x512xf32> -> vector<8x512xf32>
      %c0_86 = arith.constant 0 : index
      %c0_87 = arith.constant 0 : index
      %193 = vector.load %arg9[%c0_86, %c0_87] : memref<1x512xf32, #tpu.memory_space<vmem>>, vector<1x512xf32>
      %194 = vector.broadcast %193 : vector<1x512xf32> to vector<8x512xf32>
      %195 = arith.addf %192, %194 : vector<8x512xf32>
      %196 = arith.truncf %189 : vector<8x32xf32> to vector<8x32xbf16>
      %c0_88 = arith.constant 0 : index
      %c0_89 = arith.constant 0 : index
      %197 = vector.load %arg10[%c0_88, %c0_89] : memref<32x512xbf16, #tpu.memory_space<vmem>>, vector<32x512xbf16>
      %cst_90 = arith.constant dense<0.000000e+00> : vector<8x512xf32>
      %198 = tpu.matmul %196, %197, %cst_90 {dimension_numbers = #tpu.dot_dimension_numbers<[1], [0], [0], [1], [0, 0, 1, 1], [], []>} : vector<8x32xbf16>, vector<32x512xbf16>, vector<8x512xf32> -> vector<8x512xf32>
      %c0_91 = arith.constant 0 : index
      %c0_92 = arith.constant 0 : index
      %199 = vector.load %arg11[%c0_91, %c0_92] : memref<1x512xf32, #tpu.memory_space<vmem>>, vector<1x512xf32>
      %200 = vector.broadcast %199 : vector<1x512xf32> to vector<8x512xf32>
      %201 = arith.addf %198, %200 : vector<8x512xf32>
      %202 = vector.extract_strided_slice %195 {offsets = [0, 0], sizes = [8, 128], strides = [1, 1]} : vector<8x512xf32> to vector<8x128xf32>
      %203 = vector.extract_strided_slice %195 {offsets = [0, 128], sizes = [8, 128], strides = [1, 1]} : vector<8x512xf32> to vector<8x128xf32>
      %204 = vector.extract_strided_slice %195 {offsets = [0, 256], sizes = [8, 128], strides = [1, 1]} : vector<8x512xf32> to vector<8x128xf32>
      %205 = vector.extract_strided_slice %195 {offsets = [0, 384], sizes = [8, 128], strides = [1, 1]} : vector<8x512xf32> to vector<8x128xf32>
      %206 = vector.shape_cast %202 : vector<8x128xf32> to vector<1x8x128xf32>
      %207 = vector.shape_cast %203 : vector<8x128xf32> to vector<1x8x128xf32>
      %208 = vector.shape_cast %204 : vector<8x128xf32> to vector<1x8x128xf32>
      %209 = vector.shape_cast %205 : vector<8x128xf32> to vector<1x8x128xf32>
      %210 = tpu.concatenate %206, %207, %208, %209 in 0 : vector<1x8x128xf32>, vector<1x8x128xf32>, vector<1x8x128xf32>, vector<1x8x128xf32> -> vector<4x8x128xf32>
      %211 = arith.truncf %210 : vector<4x8x128xf32> to vector<4x8x128xbf16>
      %c0_93 = arith.constant 0 : index
      %c0_94 = arith.constant 0 : index
      %c0_95 = arith.constant 0 : index
      %212 = vector.load %arg24[%c0_93, %c0_94, %c0_95] : memref<4x8x128xbf16, #tpu.memory_space<vmem>>, vector<4x8x128xbf16>
      tpu.vector_store %arg24[%c0_93, %c0_94, %c0_95], %211 {strides = array<i32>} : memref<4x8x128xbf16, #tpu.memory_space<vmem>>, vector<4x8x128xbf16>,
      %213 = vector.extract_strided_slice %201 {offsets = [0, 0], sizes = [8, 128], strides = [1, 1]} : vector<8x512xf32> to vector<8x128xf32>
      %214 = vector.extract_strided_slice %201 {offsets = [0, 128], sizes = [8, 128], strides = [1, 1]} : vector<8x512xf32> to vector<8x128xf32>
      %215 = vector.extract_strided_slice %201 {offsets = [0, 256], sizes = [8, 128], strides = [1, 1]} : vector<8x512xf32> to vector<8x128xf32>
      %216 = vector.extract_strided_slice %201 {offsets = [0, 384], sizes = [8, 128], strides = [1, 1]} : vector<8x512xf32> to vector<8x128xf32>
      %217 = vector.shape_cast %213 : vector<8x128xf32> to vector<1x8x128xf32>
      %218 = vector.shape_cast %214 : vector<8x128xf32> to vector<1x8x128xf32>
      %219 = vector.shape_cast %215 : vector<8x128xf32> to vector<1x8x128xf32>
      %220 = vector.shape_cast %216 : vector<8x128xf32> to vector<1x8x128xf32>
      %221 = tpu.concatenate %217, %218, %219, %220 in 0 : vector<1x8x128xf32>, vector<1x8x128xf32>, vector<1x8x128xf32>, vector<1x8x128xf32> -> vector<4x8x128xf32>
      %222 = arith.truncf %221 : vector<4x8x128xf32> to vector<4x8x128xbf16>
      %c0_96 = arith.constant 0 : index
      %c0_97 = arith.constant 0 : index
      %c0_98 = arith.constant 0 : index
      %223 = vector.load %arg25[%c0_96, %c0_97, %c0_98] : memref<4x8x128xbf16, #tpu.memory_space<vmem>>, vector<4x8x128xbf16>
      tpu.vector_store %arg25[%c0_96, %c0_97, %c0_98], %222 {strides = array<i32>} : memref<4x8x128xbf16, #tpu.memory_space<vmem>>, vector<4x8x128xbf16>,
    } else {
    }
    %c0 = arith.constant 0 : index
    %c0_1 = arith.constant 0 : index
    %c0_2 = arith.constant 0 : index
    %3 = vector.load %arg4[%c0, %c0_1, %c0_2] : memref<1x8x32xbf16, #tpu.memory_space<vmem>>, vector<1x8x32xbf16>
    %4 = vector.shape_cast %3 : vector<1x8x32xbf16> to vector<8x32xbf16>
    %5 = arith.extf %4 : vector<8x32xbf16> to vector<8x32xf32>
    %c0_3 = arith.constant 0 : index
    %c0_4 = arith.constant 0 : index
    %6 = vector.load %arg6[%c0_3, %c0_4] : memref<1x32xf32, #tpu.memory_space<vmem>>, vector<1x32xf32>
    %c0_5 = arith.constant 0 : index
    %c0_6 = arith.constant 0 : index
    %7 = vector.load %arg7[%c0_5, %c0_6] : memref<1x32xf32, #tpu.memory_space<vmem>>, vector<1x32xf32>
    %cst = arith.constant dense<0.000000e+00> : vector<8xf32>
    %8 = vector.multi_reduction <add>, %5, %cst [1] : vector<8x32xf32> to vector<8xf32>
    %9 = vector.shape_cast %8 : vector<8xf32> to vector<8x1xf32>
    %cst_7 = arith.constant 3.200000e+01 : f32
    %10 = vector.broadcast %cst_7 : f32 to vector<8x1xf32>
    %11 = arith.divf %9, %10 : vector<8x1xf32>
    %12 = vector.broadcast %11 : vector<8x1xf32> to vector<8x32xf32>
    %13 = arith.subf %5, %12 : vector<8x32xf32>
    %14 = arith.mulf %13, %13 : vector<8x32xf32>
    %cst_8 = arith.constant dense<0.000000e+00> : vector<8xf32>
    %15 = vector.multi_reduction <add>, %14, %cst_8 [1] : vector<8x32xf32> to vector<8xf32>
    %16 = vector.shape_cast %15 : vector<8xf32> to vector<8x1xf32>
    %cst_9 = arith.constant 3.200000e+01 : f32
    %17 = vector.broadcast %cst_9 : f32 to vector<8x1xf32>
    %18 = arith.divf %16, %17 : vector<8x1xf32>
    %19 = vector.broadcast %11 : vector<8x1xf32> to vector<8x32xf32>
    %20 = arith.subf %5, %19 : vector<8x32xf32>
    %cst_10 = arith.constant 9.99999997E-7 : f32
    %21 = vector.broadcast %cst_10 : f32 to vector<8x1xf32>
    %22 = arith.addf %18, %21 : vector<8x1xf32>
    %23 = math.rsqrt %22 : vector<8x1xf32>
    %24 = vector.broadcast %23 : vector<8x1xf32> to vector<8x32xf32>
    %25 = arith.mulf %20, %24 : vector<8x32xf32>
    %26 = vector.broadcast %6 : vector<1x32xf32> to vector<8x32xf32>
    %27 = arith.mulf %25, %26 : vector<8x32xf32>
    %28 = vector.broadcast %7 : vector<1x32xf32> to vector<8x32xf32>
    %29 = arith.addf %27, %28 : vector<8x32xf32>
    %30 = arith.truncf %29 : vector<8x32xf32> to vector<8x32xbf16>
    %c0_11 = arith.constant 0 : index
    %c0_12 = arith.constant 0 : index
    %31 = vector.load %arg12[%c0_11, %c0_12] : memref<32x512xbf16, #tpu.memory_space<vmem>>, vector<32x512xbf16>
    %cst_13 = arith.constant dense<0.000000e+00> : vector<8x512xf32>
    %32 = tpu.matmul %30, %31, %cst_13 {dimension_numbers = #tpu.dot_dimension_numbers<[1], [0], [0], [1], [0, 0, 1, 1], [], []>} : vector<8x32xbf16>, vector<32x512xbf16>, vector<8x512xf32> -> vector<8x512xf32>
    %c0_14 = arith.constant 0 : index
    %c0_15 = arith.constant 0 : index
    %33 = vector.load %arg13[%c0_14, %c0_15] : memref<1x512xf32, #tpu.memory_space<vmem>>, vector<1x512xf32>
    %34 = vector.broadcast %33 : vector<1x512xf32> to vector<8x512xf32>
    %35 = arith.addf %32, %34 : vector<8x512xf32>
    %36 = vector.extract_strided_slice %35 {offsets = [0, 0], sizes = [8, 128], strides = [1, 1]} : vector<8x512xf32> to vector<8x128xf32>
    %37 = vector.extract_strided_slice %35 {offsets = [0, 128], sizes = [8, 128], strides = [1, 1]} : vector<8x512xf32> to vector<8x128xf32>
    %38 = vector.extract_strided_slice %35 {offsets = [0, 256], sizes = [8, 128], strides = [1, 1]} : vector<8x512xf32> to vector<8x128xf32>
    %39 = vector.extract_strided_slice %35 {offsets = [0, 384], sizes = [8, 128], strides = [1, 1]} : vector<8x512xf32> to vector<8x128xf32>
    %40 = vector.shape_cast %36 : vector<8x128xf32> to vector<1x8x128xf32>
    %41 = vector.shape_cast %37 : vector<8x128xf32> to vector<1x8x128xf32>
    %42 = vector.shape_cast %38 : vector<8x128xf32> to vector<1x8x128xf32>
    %43 = vector.shape_cast %39 : vector<8x128xf32> to vector<1x8x128xf32>
    %44 = tpu.concatenate %40, %41, %42, %43 in 0 : vector<1x8x128xf32>, vector<1x8x128xf32>, vector<1x8x128xf32>, vector<1x8x128xf32> -> vector<4x8x128xf32>
    %45 = arith.truncf %44 : vector<4x8x128xf32> to vector<4x8x128xbf16>
    %c0_16 = arith.constant 0 : index
    %c0_17 = arith.constant 0 : index
    %c0_18 = arith.constant 0 : index
    %46 = vector.load %arg5[%c0_16, %c0_17, %c0_18] : memref<1x1x8xf32, #tpu.memory_space<vmem>>, vector<1x1x8xf32>
    %47 = vector.shape_cast %46 : vector<1x1x8xf32> to vector<1x8xf32>
    %cst_19 = arith.constant 0.000000e+00 : f32
    %48 = vector.broadcast %cst_19 : f32 to vector<1x8xf32>
    %49 = arith.cmpf ogt, %47, %48 : vector<1x8xf32>
    %c0_20 = arith.constant 0 : index
    %c0_21 = arith.constant 0 : index
    %c0_22 = arith.constant 0 : index
    %50 = vector.load %arg24[%c0_20, %c0_21, %c0_22] : memref<4x8x128xbf16, #tpu.memory_space<vmem>>, vector<4x8x128xbf16>
    "tpu.trace_start"() <{level = 10 : i32, message = "hqd,hkd->hqk"}> : () -> ()
    %cst_23 = arith.constant dense<0.000000e+00> : vector<4x8x8xf32>
    %51 = tpu.matmul %45, %50, %cst_23 {dimension_numbers = #tpu.dot_dimension_numbers<[2], [2], [1], [1], [0, 0, 0, 1, 1, 1], [0], [0]>} : vector<4x8x128xbf16>, vector<4x8x128xbf16>, vector<4x8x8xf32> -> vector<4x8x8xf32>
    "tpu.trace_stop"() : () -> ()
    %52 = vector.shape_cast %49 : vector<1x8xi1> to vector<1x1x8xi1>
    %cst_24 = arith.constant -9.99999984E+17 : f32
    %53 = vector.shape_cast %52 : vector<1x1x8xi1> to vector<1x1x8xi1>
    %54 = vector.broadcast %53 : vector<1x1x8xi1> to vector<4x8x8xi1>
    %55 = vector.broadcast %cst_24 : f32 to vector<4x8x8xf32>
    %56 = arith.select %54, %55, %51 : vector<4x8x8xi1>, vector<4x8x8xf32>
    %cst_25 = arith.constant dense<0xFF800000> : vector<4x8xf32>
    %57 = vector.multi_reduction <maximumf>, %56, %cst_25 [2] : vector<4x8x8xf32> to vector<4x8xf32>
    %58 = vector.shape_cast %57 : vector<4x8xf32> to vector<4x8x1xf32>
    %59 = vector.broadcast %58 : vector<4x8x1xf32> to vector<4x8x8xf32>
    %60 = arith.subf %56, %59 : vector<4x8x8xf32>
    %61 = math.exp %60 : vector<4x8x8xf32>
    %cst_26 = arith.constant dense<0.000000e+00> : vector<4x8xf32>
    %62 = vector.multi_reduction <add>, %61, %cst_26 [2] : vector<4x8x8xf32> to vector<4x8xf32>
    %63 = vector.shape_cast %62 : vector<4x8xf32> to vector<4x8x1xf32>
    %64 = tpu.reciprocal %63 {approx = true} : vector<4x8x1xf32> -> vector<4x8x1xf32>
    %65 = arith.mulf %63, %64 : vector<4x8x1xf32>
    %cst_27 = arith.constant 2.000000e+00 : f32
    %66 = vector.broadcast %cst_27 : f32 to vector<4x8x1xf32>
    %67 = arith.subf %66, %65 : vector<4x8x1xf32>
    %68 = arith.mulf %64, %67 : vector<4x8x1xf32>
    %69 = vector.broadcast %68 : vector<4x8x1xf32> to vector<4x8x8xf32>
    %70 = arith.mulf %61, %69 : vector<4x8x8xf32>
    %71 = vector.extract_strided_slice %70 {offsets = [0, 0, 0], sizes = [1, 8, 8], strides = [1, 1, 1]} : vector<4x8x8xf32> to vector<1x8x8xf32>
    %72 = vector.shape_cast %71 : vector<1x8x8xf32> to vector<8x8xf32>
    %73 = arith.truncf %72 : vector<8x8xf32> to vector<8x8xbf16>
    %c0_28 = arith.constant 0 : index
    %c0_29 = arith.constant 0 : index
    %c0_30 = arith.constant 0 : index
    %74 = vector.load %arg23[%c0_28, %c0_29, %c0_30] : memref<1x8x8xbf16, #tpu.memory_space<vmem>>, vector<1x8x8xbf16>
    %75 = vector.shape_cast %74 : vector<1x8x8xbf16> to vector<8x8xbf16>
    %76 = vector.shape_cast %73 : vector<8x8xbf16> to vector<1x8x8xbf16>
    tpu.vector_store %arg23[%c0_28, %c0_29, %c0_30], %76 {strides = array<i32>} : memref<1x8x8xbf16, #tpu.memory_space<vmem>>, vector<1x8x8xbf16>,
    %77 = arith.truncf %70 : vector<4x8x8xf32> to vector<4x8x8xbf16>
    %c0_31 = arith.constant 0 : index
    %c0_32 = arith.constant 0 : index
    %c0_33 = arith.constant 0 : index
    %78 = vector.load %arg25[%c0_31, %c0_32, %c0_33] : memref<4x8x128xbf16, #tpu.memory_space<vmem>>, vector<4x8x128xbf16>
    "tpu.trace_start"() <{level = 10 : i32, message = "hqk,hkd->hqd"}> : () -> ()
    %cst_34 = arith.constant dense<0.000000e+00> : vector<4x8x128xf32>
    %79 = tpu.matmul %77, %78, %cst_34 {dimension_numbers = #tpu.dot_dimension_numbers<[2], [1], [1], [2], [0, 0, 0, 1, 1, 2], [0], [0]>} : vector<4x8x8xbf16>, vector<4x8x128xbf16>, vector<4x8x128xf32> -> vector<4x8x128xf32>
    "tpu.trace_stop"() : () -> ()
    %80 = vector.extract_strided_slice %79 {offsets = [0, 0, 0], sizes = [1, 8, 128], strides = [1, 1, 1]} : vector<4x8x128xf32> to vector<1x8x128xf32>
    %81 = vector.shape_cast %80 : vector<1x8x128xf32> to vector<8x128xf32>
    %82 = vector.extract_strided_slice %79 {offsets = [1, 0, 0], sizes = [1, 8, 128], strides = [1, 1, 1]} : vector<4x8x128xf32> to vector<1x8x128xf32>
    %83 = vector.shape_cast %82 : vector<1x8x128xf32> to vector<8x128xf32>
    %84 = vector.extract_strided_slice %79 {offsets = [2, 0, 0], sizes = [1, 8, 128], strides = [1, 1, 1]} : vector<4x8x128xf32> to vector<1x8x128xf32>
    %85 = vector.shape_cast %84 : vector<1x8x128xf32> to vector<8x128xf32>
    %86 = vector.extract_strided_slice %79 {offsets = [3, 0, 0], sizes = [1, 8, 128], strides = [1, 1, 1]} : vector<4x8x128xf32> to vector<1x8x128xf32>
    %87 = vector.shape_cast %86 : vector<1x8x128xf32> to vector<8x128xf32>
    %88 = tpu.concatenate %81, %83, %85, %87 in 1 : vector<8x128xf32>, vector<8x128xf32>, vector<8x128xf32>, vector<8x128xf32> -> vector<8x512xf32>
    %89 = arith.truncf %88 : vector<8x512xf32> to vector<8x512xbf16>
    %c0_35 = arith.constant 0 : index
    %c0_36 = arith.constant 0 : index
    %90 = vector.load %arg14[%c0_35, %c0_36] : memref<512x32xbf16, #tpu.memory_space<vmem>>, vector<512x32xbf16>
    %cst_37 = arith.constant dense<0.000000e+00> : vector<8x32xf32>
    %91 = tpu.matmul %89, %90, %cst_37 {dimension_numbers = #tpu.dot_dimension_numbers<[1], [0], [0], [1], [0, 0, 1, 1], [], []>} : vector<8x512xbf16>, vector<512x32xbf16>, vector<8x32xf32> -> vector<8x32xf32>
    %c0_38 = arith.constant 0 : index
    %c0_39 = arith.constant 0 : index
    %92 = vector.load %arg15[%c0_38, %c0_39] : memref<1x32xf32, #tpu.memory_space<vmem>>, vector<1x32xf32>
    %93 = vector.broadcast %92 : vector<1x32xf32> to vector<8x32xf32>
    %94 = arith.addf %91, %93 : vector<8x32xf32>
    %95 = arith.addf %94, %29 : vector<8x32xf32>
    %c0_40 = arith.constant 0 : index
    %c0_41 = arith.constant 0 : index
    %96 = vector.load %arg16[%c0_40, %c0_41] : memref<1x32xf32, #tpu.memory_space<vmem>>, vector<1x32xf32>
    %c0_42 = arith.constant 0 : index
    %c0_43 = arith.constant 0 : index
    %97 = vector.load %arg17[%c0_42, %c0_43] : memref<1x32xf32, #tpu.memory_space<vmem>>, vector<1x32xf32>
    %cst_44 = arith.constant dense<0.000000e+00> : vector<8xf32>
    %98 = vector.multi_reduction <add>, %95, %cst_44 [1] : vector<8x32xf32> to vector<8xf32>
    %99 = vector.shape_cast %98 : vector<8xf32> to vector<8x1xf32>
    %cst_45 = arith.constant 3.200000e+01 : f32
    %100 = vector.broadcast %cst_45 : f32 to vector<8x1xf32>
    %101 = arith.divf %99, %100 : vector<8x1xf32>
    %102 = vector.broadcast %101 : vector<8x1xf32> to vector<8x32xf32>
    %103 = arith.subf %95, %102 : vector<8x32xf32>
    %104 = arith.mulf %103, %103 : vector<8x32xf32>
    %cst_46 = arith.constant dense<0.000000e+00> : vector<8xf32>
    %105 = vector.multi_reduction <add>, %104, %cst_46 [1] : vector<8x32xf32> to vector<8xf32>
    %106 = vector.shape_cast %105 : vector<8xf32> to vector<8x1xf32>
    %cst_47 = arith.constant 3.200000e+01 : f32
    %107 = vector.broadcast %cst_47 : f32 to vector<8x1xf32>
    %108 = arith.divf %106, %107 : vector<8x1xf32>
    %109 = vector.broadcast %101 : vector<8x1xf32> to vector<8x32xf32>
    %110 = arith.subf %95, %109 : vector<8x32xf32>
    %cst_48 = arith.constant 9.99999997E-7 : f32
    %111 = vector.broadcast %cst_48 : f32 to vector<8x1xf32>
    %112 = arith.addf %108, %111 : vector<8x1xf32>
    %113 = math.rsqrt %112 : vector<8x1xf32>
    %114 = vector.broadcast %113 : vector<8x1xf32> to vector<8x32xf32>
    %115 = arith.mulf %110, %114 : vector<8x32xf32>
    %116 = vector.broadcast %96 : vector<1x32xf32> to vector<8x32xf32>
    %117 = arith.mulf %115, %116 : vector<8x32xf32>
    %118 = vector.broadcast %97 : vector<1x32xf32> to vector<8x32xf32>
    %119 = arith.addf %117, %118 : vector<8x32xf32>
    %120 = arith.truncf %119 : vector<8x32xf32> to vector<8x32xbf16>
    %c0_49 = arith.constant 0 : index
    %c0_50 = arith.constant 0 : index
    %121 = vector.load %arg18[%c0_49, %c0_50] : memref<32x64xbf16, #tpu.memory_space<vmem>>, vector<32x64xbf16>
    %cst_51 = arith.constant dense<0.000000e+00> : vector<8x64xf32>
    %122 = tpu.matmul %120, %121, %cst_51 {dimension_numbers = #tpu.dot_dimension_numbers<[1], [0], [0], [1], [0, 0, 1, 1], [], []>} : vector<8x32xbf16>, vector<32x64xbf16>, vector<8x64xf32> -> vector<8x64xf32>
    %c0_52 = arith.constant 0 : index
    %c0_53 = arith.constant 0 : index
    %123 = vector.load %arg19[%c0_52, %c0_53] : memref<1x64xf32, #tpu.memory_space<vmem>>, vector<1x64xf32>
    %124 = vector.broadcast %123 : vector<1x64xf32> to vector<8x64xf32>
    %125 = arith.addf %122, %124 : vector<8x64xf32>
    %cst_54 = arith.constant 0.000000e+00 : f32
    %126 = vector.broadcast %cst_54 : f32 to vector<8x64xf32>
    %127 = arith.maximumf %125, %126 : vector<8x64xf32>
    %128 = arith.truncf %127 : vector<8x64xf32> to vector<8x64xbf16>
    %c0_55 = arith.constant 0 : index
    %c0_56 = arith.constant 0 : index
    %129 = vector.load %arg20[%c0_55, %c0_56] : memref<64x32xbf16, #tpu.memory_space<vmem>>, vector<64x32xbf16>
    %cst_57 = arith.constant dense<0.000000e+00> : vector<8x32xf32>
    %130 = tpu.matmul %128, %129, %cst_57 {dimension_numbers = #tpu.dot_dimension_numbers<[1], [0], [0], [1], [0, 0, 1, 1], [], []>} : vector<8x64xbf16>, vector<64x32xbf16>, vector<8x32xf32> -> vector<8x32xf32>
    %c0_58 = arith.constant 0 : index
    %c0_59 = arith.constant 0 : index
    %131 = vector.load %arg21[%c0_58, %c0_59] : memref<1x32xf32, #tpu.memory_space<vmem>>, vector<1x32xf32>
    %132 = vector.broadcast %131 : vector<1x32xf32> to vector<8x32xf32>
    %133 = arith.addf %130, %132 : vector<8x32xf32>
    %134 = arith.addf %133, %95 : vector<8x32xf32>
    %c0_60 = arith.constant 0 : index
    %c0_61 = arith.constant 0 : index
    %c0_62 = arith.constant 0 : index
    %135 = vector.load %arg22[%c0_60, %c0_61, %c0_62] : memref<1x8x32xf32, #tpu.memory_space<vmem>>, vector<1x8x32xf32>
    %136 = vector.shape_cast %135 : vector<1x8x32xf32> to vector<8x32xf32>
    %137 = vector.shape_cast %134 : vector<8x32xf32> to vector<1x8x32xf32>
    tpu.vector_store %arg22[%c0_60, %c0_61, %c0_62], %137 {strides = array<i32>} : memref<1x8x32xf32, #tpu.memory_space<vmem>>, vector<1x8x32xf32>,
    return
  }
  func.func @transform_0(%arg0: i32, %arg1: i32) -> (i32, i32, i32) {
    %c0_i32 = arith.constant 0 : i32
    %c0_i32_0 = arith.constant 0 : i32
    %c0_i32_1 = arith.constant 0 : i32
    return %arg0, %c0_i32, %c0_i32_0 : i32, i32, i32
  }
  func.func @transform_1(%arg0: i32, %arg1: i32) -> (i32, i32, i32) {
    %c0_i32 = arith.constant 0 : i32
    %c0_i32_0 = arith.constant 0 : i32
    %c0_i32_1 = arith.constant 0 : i32
    return %arg0, %c0_i32, %c0_i32_0 : i32, i32, i32
  }
  func.func @transform_2(%arg0: i32, %arg1: i32) -> (i32, i32, i32) {
    %c0_i32 = arith.constant 0 : i32
    %c0_i32_0 = arith.constant 0 : i32
    return %arg0, %arg1, %c0_i32 : i32, i32, i32
  }
  func.func @transform_3(%arg0: i32, %arg1: i32) -> (i32, i32, i32) {
    %c0_i32 = arith.constant 0 : i32
    %c0_i32_0 = arith.constant 0 : i32
    %c0_i32_1 = arith.constant 0 : i32
    return %arg0, %c0_i32, %c0_i32_0 : i32, i32, i32
  }
  func.func @transform_4(%arg0: i32, %arg1: i32) -> (i32, i32) {
    %c0_i32 = arith.constant 0 : i32
    %c0_i32_0 = arith.constant 0 : i32
    %c0_i32_1 = arith.constant 0 : i32
    return %c0_i32, %c0_i32_0 : i32, i32
  }
  func.func @transform_5(%arg0: i32, %arg1: i32) -> (i32, i32) {
    %c0_i32 = arith.constant 0 : i32
    %c0_i32_0 = arith.constant 0 : i32
    %c0_i32_1 = arith.constant 0 : i32
    return %c0_i32, %c0_i32_0 : i32, i32
  }
  func.func @transform_6(%arg0: i32, %arg1: i32) -> (i32, i32) {
    %c0_i32 = arith.constant 0 : i32
    %c0_i32_0 = arith.constant 0 : i32
    %c0_i32_1 = arith.constant 0 : i32
    return %c0_i32, %c0_i32_0 : i32, i32
  }
  func.func @transform_7(%arg0: i32, %arg1: i32) -> (i32, i32) {
    %c0_i32 = arith.constant 0 : i32
    %c0_i32_0 = arith.constant 0 : i32
    %c0_i32_1 = arith.constant 0 : i32
    return %c0_i32, %c0_i32_0 : i32, i32
  }
  func.func @transform_8(%arg0: i32, %arg1: i32) -> (i32, i32) {
    %c0_i32 = arith.constant 0 : i32
    %c0_i32_0 = arith.constant 0 : i32
    %c0_i32_1 = arith.constant 0 : i32
    return %c0_i32, %c0_i32_0 : i32, i32
  }
  func.func @transform_9(%arg0: i32, %arg1: i32) -> (i32, i32) {
    %c0_i32 = arith.constant 0 : i32
    %c0_i32_0 = arith.constant 0 : i32
    %c0_i32_1 = arith.constant 0 : i32
    return %c0_i32, %c0_i32_0 : i32, i32
  }
  func.func @transform_10(%arg0: i32, %arg1: i32) -> (i32, i32) {
    %c0_i32 = arith.constant 0 : i32
    %c0_i32_0 = arith.constant 0 : i32
    %c0_i32_1 = arith.constant 0 : i32
    return %c0_i32, %c0_i32_0 : i32, i32
  }
  func.func @transform_11(%arg0: i32, %arg1: i32) -> (i32, i32) {
    %c0_i32 = arith.constant 0 : i32
    %c0_i32_0 = arith.constant 0 : i32
    %c0_i32_1 = arith.constant 0 : i32
    return %c0_i32, %c0_i32_0 : i32, i32
  }
  func.func @transform_12(%arg0: i32, %arg1: i32) -> (i32, i32) {
    %c0_i32 = arith.constant 0 : i32
    %c0_i32_0 = arith.constant 0 : i32
    %c0_i32_1 = arith.constant 0 : i32
    return %c0_i32, %c0_i32_0 : i32, i32
  }
  func.func @transform_13(%arg0: i32, %arg1: i32) -> (i32, i32) {
    %c0_i32 = arith.constant 0 : i32
    %c0_i32_0 = arith.constant 0 : i32
    %c0_i32_1 = arith.constant 0 : i32
    return %c0_i32, %c0_i32_0 : i32, i32
  }
  func.func @transform_14(%arg0: i32, %arg1: i32) -> (i32, i32) {
    %c0_i32 = arith.constant 0 : i32
    %c0_i32_0 = arith.constant 0 : i32
    %c0_i32_1 = arith.constant 0 : i32
    return %c0_i32, %c0_i32_0 : i32, i32
  }
  func.func @transform_15(%arg0: i32, %arg1: i32) -> (i32, i32) {
    %c0_i32 = arith.constant 0 : i32
    %c0_i32_0 = arith.constant 0 : i32
    %c0_i32_1 = arith.constant 0 : i32
    return %c0_i32, %c0_i32_0 : i32, i32
  }
  func.func @transform_16(%arg0: i32, %arg1: i32) -> (i32, i32) {
    %c0_i32 = arith.constant 0 : i32
    %c0_i32_0 = arith.constant 0 : i32
    %c0_i32_1 = arith.constant 0 : i32
    return %c0_i32, %c0_i32_0 : i32, i32
  }
  func.func @transform_17(%arg0: i32, %arg1: i32) -> (i32, i32) {
    %c0_i32 = arith.constant 0 : i32
    %c0_i32_0 = arith.constant 0 : i32
    %c0_i32_1 = arith.constant 0 : i32
    return %c0_i32, %c0_i32_0 : i32, i32
  }
  func.func @transform_18(%arg0: i32, %arg1: i32) -> (i32, i32) {
    %c0_i32 = arith.constant 0 : i32
    %c0_i32_0 = arith.constant 0 : i32
    %c0_i32_1 = arith.constant 0 : i32
    return %c0_i32, %c0_i32_0 : i32, i32
  }
  func.func @transform_19(%arg0: i32, %arg1: i32) -> (i32, i32) {
    %c0_i32 = arith.constant 0 : i32
    %c0_i32_0 = arith.constant 0 : i32
    %c0_i32_1 = arith.constant 0 : i32
    return %c0_i32, %c0_i32_0 : i32, i32
  }
  func.func @transform_20(%arg0: i32, %arg1: i32) -> (i32, i32, i32) {
    %c0_i32 = arith.constant 0 : i32
    %c0_i32_0 = arith.constant 0 : i32
    return %arg0, %arg1, %c0_i32 : i32, i32, i32
  }
  func.func @transform_21(%arg0: i32, %arg1: i32) -> (i32, i32, i32) {
    %c0_i32 = arith.constant 0 : i32
    %c0_i32_0 = arith.constant 0 : i32
    return %arg0, %arg1, %c0_i32 : i32, i32, i32
  }
}

module attributes {stable_mosaic.version = 11 : i64} {
  func.func @kernel(%arg0: i32, %arg1: i32, %arg2: memref<1x8x32xbf16, #tpu.memory_space<vmem>>, %arg3: memref<1x8x32xbf16, #tpu.memory_space<vmem>>, %arg4: memref<1x8x32xbf16, #tpu.memory_space<vmem>>, %arg5: memref<1x1x8xf32, #tpu.memory_space<vmem>>, %arg6: memref<1x32xf32, #tpu.memory_space<vmem>>, %arg7: memref<1x32xf32, #tpu.memory_space<vmem>>, %arg8: memref<32x512xbf16, #tpu.memory_space<vmem>>, %arg9: memref<1x512xf32, #tpu.memory_space<vmem>>, %arg10: memref<32x512xbf16, #tpu.memory_space<vmem>>, %arg11: memref<1x512xf32, #tpu.memory_space<vmem>>, %arg12: memref<32x512xbf16, #tpu.memory_space<vmem>>, %arg13: memref<1x512xf32, #tpu.memory_space<vmem>>, %arg14: memref<512x32xbf16, #tpu.memory_space<vmem>>, %arg15: memref<1x32xf32, #tpu.memory_space<vmem>>, %arg16: memref<1x32xf32, #tpu.memory_space<vmem>>, %arg17: memref<1x32xf32, #tpu.memory_space<vmem>>, %arg18: memref<32x64xbf16, #tpu.memory_space<vmem>>, %arg19: memref<1x64xf32, #tpu.memory_space<vmem>>, %arg20: memref<64x32xbf16, #tpu.memory_space<vmem>>, %arg21: memref<1x32xf32, #tpu.memory_space<vmem>>, %arg22: memref<1x8x32xf32, #tpu.memory_space<vmem>>, %arg23: memref<1x8x8xbf16, #tpu.memory_space<vmem>>, %arg24: memref<4x8x128xbf16, #tpu.memory_space<vmem>>, %arg25: memref<4x8x128xbf16, #tpu.memory_space<vmem>>) attributes {dimension_semantics = [#tpu.dimension_semantics<parallel>, #tpu.dimension_semantics<arbitrary>], iteration_bounds = array<i64: 2, 1>, scalar_prefetch = 0 : i64, scratch_operands = 2 : i64, tpu.core_type = #tpu.core_type<tc>, window_params = [{transform_indices = @transform_0, window_bounds = array<i64: 1, 8, 32>}, {transform_indices = @transform_1, window_bounds = array<i64: 1, 8, 32>}, {transform_indices = @transform_2, window_bounds = array<i64: 1, 8, 32>}, {transform_indices = @transform_3, window_bounds = array<i64: 1, 1, 8>}, {pipeline_mode = #tpu.pipeline_mode<synchronous>, transform_indices = @transform_4, window_bounds = array<i64: 1, 32>}, {pipeline_mode = #tpu.pipeline_mode<synchronous>, transform_indices = @transform_5, window_bounds = array<i64: 1, 32>}, {pipeline_mode = #tpu.pipeline_mode<synchronous>, transform_indices = @transform_6, window_bounds = array<i64: 32, 512>}, {pipeline_mode = #tpu.pipeline_mode<synchronous>, transform_indices = @transform_7, window_bounds = array<i64: 1, 512>}, {pipeline_mode = #tpu.pipeline_mode<synchronous>, transform_indices = @transform_8, window_bounds = array<i64: 32, 512>}, {pipeline_mode = #tpu.pipeline_mode<synchronous>, transform_indices = @transform_9, window_bounds = array<i64: 1, 512>}, {pipeline_mode = #tpu.pipeline_mode<synchronous>, transform_indices = @transform_10, window_bounds = array<i64: 32, 512>}, {pipeline_mode = #tpu.pipeline_mode<synchronous>, transform_indices = @transform_11, window_bounds = array<i64: 1, 512>}, {pipeline_mode = #tpu.pipeline_mode<synchronous>, transform_indices = @transform_12, window_bounds = array<i64: 512, 32>}, {pipeline_mode = #tpu.pipeline_mode<synchronous>, transform_indices = @transform_13, window_bounds = array<i64: 1, 32>}, {pipeline_mode = #tpu.pipeline_mode<synchronous>, transform_indices = @transform_14, window_bounds = array<i64: 1, 32>}, {pipeline_mode = #tpu.pipeline_mode<synchronous>, transform_indices = @transform_15, window_bounds = array<i64: 1, 32>}, {pipeline_mode = #tpu.pipeline_mode<synchronous>, transform_indices = @transform_16, window_bounds = array<i64: 32, 64>}, {pipeline_mode = #tpu.pipeline_mode<synchronous>, transform_indices = @transform_17, window_bounds = array<i64: 1, 64>}, {pipeline_mode = #tpu.pipeline_mode<synchronous>, transform_indices = @transform_18, window_bounds = array<i64: 64, 32>}, {pipeline_mode = #tpu.pipeline_mode<synchronous>, transform_indices = @transform_19, window_bounds = array<i64: 1, 32>}, {transform_indices = @transform_20, window_bounds = array<i64: 1, 8, 32>}, {transform_indices = @transform_21, window_bounds = array<i64: 1, 8, 8>}]} {
    %c0_i32 = arith.constant 0 : i32
    %0 = arith.cmpi eq, %arg1, %c0_i32 : i32
    %1 = arith.extui %0 : i1 to i32
    %c0_i32_0 = arith.constant 0 : i32
    %2 = arith.cmpi ne, %1, %c0_i32_0 : i32
    scf.if %2 {
      %c0_63 = arith.constant 0 : index
      %c0_64 = arith.constant 0 : index
      %c0_65 = arith.constant 0 : index
      %138 = vector.load %arg2[%c0_63, %c0_64, %c0_65] : memref<1x8x32xbf16, #tpu.memory_space<vmem>>, vector<1x8x32xbf16>
      %139 = vector.shape_cast %138 : vector<1x8x32xbf16> to vector<8x32xbf16>
      %140 = arith.extf %139 : vector<8x32xbf16> to vector<8x32xf32>
      %c0_66 = arith.constant 0 : index
      %c0_67 = arith.constant 0 : index
      %c0_68 = arith.constant 0 : index
      %141 = vector.load %arg3[%c0_66, %c0_67, %c0_68] : memref<1x8x32xbf16, #tpu.memory_space<vmem>>, vector<1x8x32xbf16>
      %142 = vector.shape_cast %141 : vector<1x8x32xbf16> to vector<8x32xbf16>
      %143 = arith.extf %142 : vector<8x32xbf16> to vector<8x32xf32>
      %c0_69 = arith.constant 0 : index
      %c0_70 = arith.constant 0 : index
      %144 = vector.load %arg6[%c0_69, %c0_70] : memref<1x32xf32, #tpu.memory_space<vmem>>, vector<1x32xf32>
      %c0_71 = arith.constant 0 : index
      %c0_72 = arith.constant 0 : index
      %145 = vector.load %arg7[%c0_71, %c0_72] : memref<1x32xf32, #tpu.memory_space<vmem>>, vector<1x32xf32>
      %cst_73 = arith.constant dense<0.000000e+00> : vector<8xf32>
      %146 = vector.multi_reduction <add>, %140, %cst_73 [1] : vector<8x32xf32> to vector<8xf32>
      %147 = vector.shape_cast %146 : vector<8xf32> to vector<8x1xf32>
      %cst_74 = arith.constant 3.200000e+01 : f32
      %148 = vector.broadcast %cst_74 : f32 to vector<8x1xf32>
      %149 = arith.divf %147, %148 : vector<8x1xf32>
      %150 = vector.broadcast %149 : vector<8x1xf32> to vector<8x32xf32>
      %151 = arith.subf %140, %150 : vector<8x32xf32>
      %152 = arith.mulf %151, %151 : vector<8x32xf32>
      %cst_75 = arith.constant dense<0.000000e+00> : vector<8xf32>
      %153 = vector.multi_reduction <add>, %152, %cst_75 [1] : vector<8x32xf32> to vector<8xf32>
      %154 = vector.shape_cast %153 : vector<8xf32> to vector<8x1xf32>
      %cst_76 = arith.constant 3.200000e+01 : f32
      %155 = vector.broadcast %cst_76 : f32 to vector<8x1xf32>
      %156 = arith.divf %154, %155 : vector<8x1xf32>
      %157 = vector.broadcast %149 : vector<8x1xf32> to vector<8x32xf32>
      %158 = arith.subf %140, %157 : vector<8x32xf32>
      %cst_77 = arith.constant 9.99999997E-7 : f32
      %159 = vector.broadcast %cst_77 : f32 to vector<8x1xf32>
      %160 = arith.addf %156, %159 : vector<8x1xf32>
      %161 = math.rsqrt %160 : vector<8x1xf32>
      %162 = vector.broadcast %161 : vector<8x1xf32> to vector<8x32xf32>
      %163 = arith.mulf %158, %162 : vector<8x32xf32>
      %164 = vector.broadcast %144 : vector<1x32xf32> to vector<8x32xf32>
      %165 = arith.mulf %163, %164 : vector<8x32xf32>
      %166 = vector.broadcast %145 : vector<1x32xf32> to vector<8x32xf32>
      %167 = arith.addf %165, %166 : vector<8x32xf32>
      %cst_78 = arith.constant dense<0.000000e+00> : vector<8xf32>
      %168 = vector.multi_reduction <add>, %143, %cst_78 [1] : vector<8x32xf32> to vector<8xf32>
      %169 = vector.shape_cast %168 : vector<8xf32> to vector<8x1xf32>
      %cst_79 = arith.constant 3.200000e+01 : f32
      %170 = vector.broadcast %cst_79 : f32 to vector<8x1xf32>
      %171 = arith.divf %169, %170 : vector<8x1xf32>
      %172 = vector.broadcast %171 : vector<8x1xf32> to vector<8x32xf32>
      %173 = arith.subf %143, %172 : vector<8x32xf32>
      %174 = arith.mulf %173, %173 : vector<8x32xf32>
      %cst_80 = arith.constant dense<0.000000e+00> : vector<8xf32>
      %175 = vector.multi_reduction <add>, %174, %cst_80 [1] : vector<8x32xf32> to vector<8xf32>
      %176 = vector.shape_cast %175 : vector<8xf32> to vector<8x1xf32>
      %cst_81 = arith.constant 3.200000e+01 : f32
      %177 = vector.broadcast %cst_81 : f32 to vector<8x1xf32>
      %178 = arith.divf %176, %177 : vector<8x1xf32>
      %179 = vector.broadcast %171 : vector<8x1xf32> to vector<8x32xf32>
      %180 = arith.subf %143, %179 : vector<8x32xf32>
      %cst_82 = arith.constant 9.99999997E-7 : f32
      %181 = vector.broadcast %cst_82 : f32 to vector<8x1xf32>
      %182 = arith.addf %178, %181 : vector<8x1xf32>
      %183 = math.rsqrt %182 : vector<8x1xf32>
      %184 = vector.broadcast %183 : vector<8x1xf32> to vector<8x32xf32>
      %185 = arith.mulf %180, %184 : vector<8x32xf32>
      %186 = vector.broadcast %144 : vector<1x32xf32> to vector<8x32xf32>
      %187 = arith.mulf %185, %186 : vector<8x32xf32>
      %188 = vector.broadcast %145 : vector<1x32xf32> to vector<8x32xf32>
      %189 = arith.addf %187, %188 : vector<8x32xf32>
      %190 = arith.truncf %167 : vector<8x32xf32> to vector<8x32xbf16>
      %c0_83 = arith.constant 0 : index
      %c0_84 = arith.constant 0 : index
      %191 = vector.load %arg8[%c0_83, %c0_84] : memref<32x512xbf16, #tpu.memory_space<vmem>>, vector<32x512xbf16>
      %cst_85 = arith.constant dense<0.000000e+00> : vector<8x512xf32>
      %192 = tpu.matmul %190, %191, %cst_85 {dimension_numbers = #tpu.dot_dimension_numbers<[1], [0], [0], [1], [0, 0, 1, 1], [], []>} : vector<8x32xbf16>, vector<32x512xbf16>, vector<8x512xf32> -> vector<8x512xf32>
      %c0_86 = arith.constant 0 : index
      %c0_87 = arith.constant 0 : index
      %193 = vector.load %arg9[%c0_86, %c0_87] : memref<1x512xf32, #tpu.memory_space<vmem>>, vector<1x512xf32>
      %194 = vector.broadcast %193 : vector<1x512xf32> to vector<8x512xf32>
      %195 = arith.addf %192, %194 : vector<8x512xf32>
      %196 = arith.truncf %189 : vector<8x32xf32> to vector<8x32xbf16>
      %c0_88 = arith.constant 0 : index
      %c0_89 = arith.constant 0 : index
      %197 = vector.load %arg10[%c0_88, %c0_89] : memref<32x512xbf16, #tpu.memory_space<vmem>>, vector<32x512xbf16>
      %cst_90 = arith.constant dense<0.000000e+00> : vector<8x512xf32>
      %198 = tpu.matmul %196, %197, %cst_90 {dimension_numbers = #tpu.dot_dimension_numbers<[1], [0], [0], [1], [0, 0, 1, 1], [], []>} : vector<8x32xbf16>, vector<32x512xbf16>, vector<8x512xf32> -> vector<8x512xf32>
      %c0_91 = arith.constant 0 : index
      %c0_92 = arith.constant 0 : index
      %199 = vector.load %arg11[%c0_91, %c0_92] : memref<1x512xf32, #tpu.memory_space<vmem>>, vector<1x512xf32>
      %200 = vector.broadcast %199 : vector<1x512xf32> to vector<8x512xf32>
      %201 = arith.addf %198, %200 : vector<8x512xf32>
      %202 = vector.extract_strided_slice %195 {offsets = [0, 0], sizes = [8, 128], strides = [1, 1]} : vector<8x512xf32> to vector<8x128xf32>
      %203 = vector.extract_strided_slice %195 {offsets = [0, 128], sizes = [8, 128], strides = [1, 1]} : vector<8x512xf32> to vector<8x128xf32>
      %204 = vector.extract_strided_slice %195 {offsets = [0, 256], sizes = [8, 128], strides = [1, 1]} : vector<8x512xf32> to vector<8x128xf32>
      %205 = vector.extract_strided_slice %195 {offsets = [0, 384], sizes = [8, 128], strides = [1, 1]} : vector<8x512xf32> to vector<8x128xf32>
      %206 = vector.shape_cast %202 : vector<8x128xf32> to vector<1x8x128xf32>
      %207 = vector.shape_cast %203 : vector<8x128xf32> to vector<1x8x128xf32>
      %208 = vector.shape_cast %204 : vector<8x128xf32> to vector<1x8x128xf32>
      %209 = vector.shape_cast %205 : vector<8x128xf32> to vector<1x8x128xf32>
      %210 = tpu.concatenate %206, %207, %208, %209 in 0 : vector<1x8x128xf32>, vector<1x8x128xf32>, vector<1x8x128xf32>, vector<1x8x128xf32> -> vector<4x8x128xf32>
      %211 = arith.truncf %210 : vector<4x8x128xf32> to vector<4x8x128xbf16>
      %c0_93 = arith.constant 0 : index
      %c0_94 = arith.constant 0 : index
      %c0_95 = arith.constant 0 : index
      %212 = vector.load %arg24[%c0_93, %c0_94, %c0_95] : memref<4x8x128xbf16, #tpu.memory_space<vmem>>, vector<4x8x128xbf16>
      tpu.vector_store %arg24[%c0_93, %c0_94, %c0_95], %211 {strides = array<i32>} : memref<4x8x128xbf16, #tpu.memory_space<vmem>>, vector<4x8x128xbf16>,
      %213 = vector.extract_strided_slice %201 {offsets = [0, 0], sizes = [8, 128], strides = [1, 1]} : vector<8x512xf32> to vector<8x128xf32>
      %214 = vector.extract_strided_slice %201 {offsets = [0, 128], sizes = [8, 128], strides = [1, 1]} : vector<8x512xf32> to vector<8x128xf32>
      %215 = vector.extract_strided_slice %201 {offsets = [0, 256], sizes = [8, 128], strides = [1, 1]} : vector<8x512xf32> to vector<8x128xf32>
      %216 = vector.extract_strided_slice %201 {offsets = [0, 384], sizes = [8, 128], strides = [1, 1]} : vector<8x512xf32> to vector<8x128xf32>
      %217 = vector.shape_cast %213 : vector<8x128xf32> to vector<1x8x128xf32>
      %218 = vector.shape_cast %214 : vector<8x128xf32> to vector<1x8x128xf32>
      %219 = vector.shape_cast %215 : vector<8x128xf32> to vector<1x8x128xf32>
      %220 = vector.shape_cast %216 : vector<8x128xf32> to vector<1x8x128xf32>
      %221 = tpu.concatenate %217, %218, %219, %220 in 0 : vector<1x8x128xf32>, vector<1x8x128xf32>, vector<1x8x128xf32>, vector<1x8x128xf32> -> vector<4x8x128xf32>
      %222 = arith.truncf %221 : vector<4x8x128xf32> to vector<4x8x128xbf16>
      %c0_96 = arith.constant 0 : index
      %c0_97 = arith.constant 0 : index
      %c0_98 = arith.constant 0 : index
      %223 = vector.load %arg25[%c0_96, %c0_97, %c0_98] : memref<4x8x128xbf16, #tpu.memory_space<vmem>>, vector<4x8x128xbf16>
      tpu.vector_store %arg25[%c0_96, %c0_97, %c0_98], %222 {strides = array<i32>} : memref<4x8x128xbf16, #tpu.memory_space<vmem>>, vector<4x8x128xbf16>,
    } else {
    }
    %c0 = arith.constant 0 : index
    %c0_1 = arith.constant 0 : index
    %c0_2 = arith.constant 0 : index
    %3 = vector.load %arg4[%c0, %c0_1, %c0_2] : memref<1x8x32xbf16, #tpu.memory_space<vmem>>, vector<1x8x32xbf16>
    %4 = vector.shape_cast %3 : vector<1x8x32xbf16> to vector<8x32xbf16>
    %5 = arith.extf %4 : vector<8x32xbf16> to vector<8x32xf32>
    %c0_3 = arith.constant 0 : index
    %c0_4 = arith.constant 0 : index
    %6 = vector.load %arg6[%c0_3, %c0_4] : memref<1x32xf32, #tpu.memory_space<vmem>>, vector<1x32xf32>
    %c0_5 = arith.constant 0 : index
    %c0_6 = arith.constant 0 : index
    %7 = vector.load %arg7[%c0_5, %c0_6] : memref<1x32xf32, #tpu.memory_space<vmem>>, vector<1x32xf32>
    %cst = arith.constant dense<0.000000e+00> : vector<8xf32>
    %8 = vector.multi_reduction <add>, %5, %cst [1] : vector<8x32xf32> to vector<8xf32>
    %9 = vector.shape_cast %8 : vector<8xf32> to vector<8x1xf32>
    %cst_7 = arith.constant 3.200000e+01 : f32
    %10 = vector.broadcast %cst_7 : f32 to vector<8x1xf32>
    %11 = arith.divf %9, %10 : vector<8x1xf32>
    %12 = vector.broadcast %11 : vector<8x1xf32> to vector<8x32xf32>
    %13 = arith.subf %5, %12 : vector<8x32xf32>
    %14 = arith.mulf %13, %13 : vector<8x32xf32>
    %cst_8 = arith.constant dense<0.000000e+00> : vector<8xf32>
    %15 = vector.multi_reduction <add>, %14, %cst_8 [1] : vector<8x32xf32> to vector<8xf32>
    %16 = vector.shape_cast %15 : vector<8xf32> to vector<8x1xf32>
    %cst_9 = arith.constant 3.200000e+01 : f32
    %17 = vector.broadcast %cst_9 : f32 to vector<8x1xf32>
    %18 = arith.divf %16, %17 : vector<8x1xf32>
    %19 = vector.broadcast %11 : vector<8x1xf32> to vector<8x32xf32>
    %20 = arith.subf %5, %19 : vector<8x32xf32>
    %cst_10 = arith.constant 9.99999997E-7 : f32
    %21 = vector.broadcast %cst_10 : f32 to vector<8x1xf32>
    %22 = arith.addf %18, %21 : vector<8x1xf32>
    %23 = math.rsqrt %22 : vector<8x1xf32>
    %24 = vector.broadcast %23 : vector<8x1xf32> to vector<8x32xf32>
    %25 = arith.mulf %20, %24 : vector<8x32xf32>
    %26 = vector.broadcast %6 : vector<1x32xf32> to vector<8x32xf32>
    %27 = arith.mulf %25, %26 : vector<8x32xf32>
    %28 = vector.broadcast %7 : vector<1x32xf32> to vector<8x32xf32>
    %29 = arith.addf %27, %28 : vector<8x32xf32>
    %30 = arith.truncf %29 : vector<8x32xf32> to vector<8x32xbf16>
    %c0_11 = arith.constant 0 : index
    %c0_12 = arith.constant 0 : index
    %31 = vector.load %arg12[%c0_11, %c0_12] : memref<32x512xbf16, #tpu.memory_space<vmem>>, vector<32x512xbf16>
    %cst_13 = arith.constant dense<0.000000e+00> : vector<8x512xf32>
    %32 = tpu.matmul %30, %31, %cst_13 {dimension_numbers = #tpu.dot_dimension_numbers<[1], [0], [0], [1], [0, 0, 1, 1], [], []>} : vector<8x32xbf16>, vector<32x512xbf16>, vector<8x512xf32> -> vector<8x512xf32>
    %c0_14 = arith.constant 0 : index
    %c0_15 = arith.constant 0 : index
    %33 = vector.load %arg13[%c0_14, %c0_15] : memref<1x512xf32, #tpu.memory_space<vmem>>, vector<1x512xf32>
    %34 = vector.broadcast %33 : vector<1x512xf32> to vector<8x512xf32>
    %35 = arith.addf %32, %34 : vector<8x512xf32>
    %36 = vector.extract_strided_slice %35 {offsets = [0, 0], sizes = [8, 128], strides = [1, 1]} : vector<8x512xf32> to vector<8x128xf32>
    %37 = vector.extract_strided_slice %35 {offsets = [0, 128], sizes = [8, 128], strides = [1, 1]} : vector<8x512xf32> to vector<8x128xf32>
    %38 = vector.extract_strided_slice %35 {offsets = [0, 256], sizes = [8, 128], strides = [1, 1]} : vector<8x512xf32> to vector<8x128xf32>
    %39 = vector.extract_strided_slice %35 {offsets = [0, 384], sizes = [8, 128], strides = [1, 1]} : vector<8x512xf32> to vector<8x128xf32>
    %40 = vector.shape_cast %36 : vector<8x128xf32> to vector<1x8x128xf32>
    %41 = vector.shape_cast %37 : vector<8x128xf32> to vector<1x8x128xf32>
    %42 = vector.shape_cast %38 : vector<8x128xf32> to vector<1x8x128xf32>
    %43 = vector.shape_cast %39 : vector<8x128xf32> to vector<1x8x128xf32>
    %44 = tpu.concatenate %40, %41, %42, %43 in 0 : vector<1x8x128xf32>, vector<1x8x128xf32>, vector<1x8x128xf32>, vector<1x8x128xf32> -> vector<4x8x128xf32>
    %45 = arith.truncf %44 : vector<4x8x128xf32> to vector<4x8x128xbf16>
    %c0_16 = arith.constant 0 : index
    %c0_17 = arith.constant 0 : index
    %c0_18 = arith.constant 0 : index
    %46 = vector.load %arg5[%c0_16, %c0_17, %c0_18] : memref<1x1x8xf32, #tpu.memory_space<vmem>>, vector<1x1x8xf32>
    %47 = vector.shape_cast %46 : vector<1x1x8xf32> to vector<1x8xf32>
    %cst_19 = arith.constant 0.000000e+00 : f32
    %48 = vector.broadcast %cst_19 : f32 to vector<1x8xf32>
    %49 = arith.cmpf ogt, %47, %48 : vector<1x8xf32>
    %c0_20 = arith.constant 0 : index
    %c0_21 = arith.constant 0 : index
    %c0_22 = arith.constant 0 : index
    %50 = vector.load %arg24[%c0_20, %c0_21, %c0_22] : memref<4x8x128xbf16, #tpu.memory_space<vmem>>, vector<4x8x128xbf16>
    "tpu.trace_start"() <{level = 10 : i32, message = "hqd,hkd->hqk"}> : () -> ()
    %cst_23 = arith.constant dense<0.000000e+00> : vector<4x8x8xf32>
    %51 = tpu.matmul %45, %50, %cst_23 {dimension_numbers = #tpu.dot_dimension_numbers<[2], [2], [1], [1], [0, 0, 0, 1, 1, 1], [0], [0]>} : vector<4x8x128xbf16>, vector<4x8x128xbf16>, vector<4x8x8xf32> -> vector<4x8x8xf32>
    "tpu.trace_stop"() : () -> ()
    %52 = vector.shape_cast %49 : vector<1x8xi1> to vector<1x1x8xi1>
    %cst_24 = arith.constant -9.99999984E+17 : f32
    %53 = vector.shape_cast %52 : vector<1x1x8xi1> to vector<1x1x8xi1>
    %54 = vector.broadcast %53 : vector<1x1x8xi1> to vector<4x8x8xi1>
    %55 = vector.broadcast %cst_24 : f32 to vector<4x8x8xf32>
    %56 = arith.select %54, %55, %51 : vector<4x8x8xi1>, vector<4x8x8xf32>
    %cst_25 = arith.constant dense<0xFF800000> : vector<4x8xf32>
    %57 = vector.multi_reduction <maximumf>, %56, %cst_25 [2] : vector<4x8x8xf32> to vector<4x8xf32>
    %58 = vector.shape_cast %57 : vector<4x8xf32> to vector<4x8x1xf32>
    %59 = vector.broadcast %58 : vector<4x8x1xf32> to vector<4x8x8xf32>
    %60 = arith.subf %56, %59 : vector<4x8x8xf32>
    %61 = math.exp %60 : vector<4x8x8xf32>
    %cst_26 = arith.constant dense<0.000000e+00> : vector<4x8xf32>
    %62 = vector.multi_reduction <add>, %61, %cst_26 [2] : vector<4x8x8xf32> to vector<4x8xf32>
    %63 = vector.shape_cast %62 : vector<4x8xf32> to vector<4x8x1xf32>
    %64 = tpu.reciprocal %63 {approx = true} : vector<4x8x1xf32> -> vector<4x8x1xf32>
    %65 = arith.mulf %63, %64 : vector<4x8x1xf32>
    %cst_27 = arith.constant 2.000000e+00 : f32
    %66 = vector.broadcast %cst_27 : f32 to vector<4x8x1xf32>
    %67 = arith.subf %66, %65 : vector<4x8x1xf32>
    %68 = arith.mulf %64, %67 : vector<4x8x1xf32>
    %69 = vector.broadcast %68 : vector<4x8x1xf32> to vector<4x8x8xf32>
    %70 = arith.mulf %61, %69 : vector<4x8x8xf32>
    %71 = vector.extract_strided_slice %70 {offsets = [0, 0, 0], sizes = [1, 8, 8], strides = [1, 1, 1]} : vector<4x8x8xf32> to vector<1x8x8xf32>
    %72 = vector.shape_cast %71 : vector<1x8x8xf32> to vector<8x8xf32>
    %73 = arith.truncf %72 : vector<8x8xf32> to vector<8x8xbf16>
    %c0_28 = arith.constant 0 : index
    %c0_29 = arith.constant 0 : index
    %c0_30 = arith.constant 0 : index
    %74 = vector.load %arg23[%c0_28, %c0_29, %c0_30] : memref<1x8x8xbf16, #tpu.memory_space<vmem>>, vector<1x8x8xbf16>
    %75 = vector.shape_cast %74 : vector<1x8x8xbf16> to vector<8x8xbf16>
    %76 = vector.shape_cast %73 : vector<8x8xbf16> to vector<1x8x8xbf16>
    tpu.vector_store %arg23[%c0_28, %c0_29, %c0_30], %76 {strides = array<i32>} : memref<1x8x8xbf16, #tpu.memory_space<vmem>>, vector<1x8x8xbf16>,
    %77 = arith.truncf %70 : vector<4x8x8xf32> to vector<4x8x8xbf16>
    %c0_31 = arith.constant 0 : index
    %c0_32 = arith.constant 0 : index
    %c0_33 = arith.constant 0 : index
    %78 = vector.load %arg25[%c0_31, %c0_32, %c0_33] : memref<4x8x128xbf16, #tpu.memory_space<vmem>>, vector<4x8x128xbf16>
    "tpu.trace_start"() <{level = 10 : i32, message = "hqk,hkd->hqd"}> : () -> ()
    %cst_34 = arith.constant dense<0.000000e+00> : vector<4x8x128xf32>
    %79 = tpu.matmul %77, %78, %cst_34 {dimension_numbers = #tpu.dot_dimension_numbers<[2], [1], [1], [2], [0, 0, 0, 1, 1, 2], [0], [0]>} : vector<4x8x8xbf16>, vector<4x8x128xbf16>, vector<4x8x128xf32> -> vector<4x8x128xf32>
    "tpu.trace_stop"() : () -> ()
    %80 = vector.extract_strided_slice %79 {offsets = [0, 0, 0], sizes = [1, 8, 128], strides = [1, 1, 1]} : vector<4x8x128xf32> to vector<1x8x128xf32>
    %81 = vector.shape_cast %80 : vector<1x8x128xf32> to vector<8x128xf32>
    %82 = vector.extract_strided_slice %79 {offsets = [1, 0, 0], sizes = [1, 8, 128], strides = [1, 1, 1]} : vector<4x8x128xf32> to vector<1x8x128xf32>
    %83 = vector.shape_cast %82 : vector<1x8x128xf32> to vector<8x128xf32>
    %84 = vector.extract_strided_slice %79 {offsets = [2, 0, 0], sizes = [1, 8, 128], strides = [1, 1, 1]} : vector<4x8x128xf32> to vector<1x8x128xf32>
    %85 = vector.shape_cast %84 : vector<1x8x128xf32> to vector<8x128xf32>
    %86 = vector.extract_strided_slice %79 {offsets = [3, 0, 0], sizes = [1, 8, 128], strides = [1, 1, 1]} : vector<4x8x128xf32> to vector<1x8x128xf32>
    %87 = vector.shape_cast %86 : vector<1x8x128xf32> to vector<8x128xf32>
    %88 = tpu.concatenate %81, %83, %85, %87 in 1 : vector<8x128xf32>, vector<8x128xf32>, vector<8x128xf32>, vector<8x128xf32> -> vector<8x512xf32>
    %89 = arith.truncf %88 : vector<8x512xf32> to vector<8x512xbf16>
    %c0_35 = arith.constant 0 : index
    %c0_36 = arith.constant 0 : index
    %90 = vector.load %arg14[%c0_35, %c0_36] : memref<512x32xbf16, #tpu.memory_space<vmem>>, vector<512x32xbf16>
    %cst_37 = arith.constant dense<0.000000e+00> : vector<8x32xf32>
    %91 = tpu.matmul %89, %90, %cst_37 {dimension_numbers = #tpu.dot_dimension_numbers<[1], [0], [0], [1], [0, 0, 1, 1], [], []>} : vector<8x512xbf16>, vector<512x32xbf16>, vector<8x32xf32> -> vector<8x32xf32>
    %c0_38 = arith.constant 0 : index
    %c0_39 = arith.constant 0 : index
    %92 = vector.load %arg15[%c0_38, %c0_39] : memref<1x32xf32, #tpu.memory_space<vmem>>, vector<1x32xf32>
    %93 = vector.broadcast %92 : vector<1x32xf32> to vector<8x32xf32>
    %94 = arith.addf %91, %93 : vector<8x32xf32>
    %95 = arith.addf %94, %29 : vector<8x32xf32>
    %c0_40 = arith.constant 0 : index
    %c0_41 = arith.constant 0 : index
    %96 = vector.load %arg16[%c0_40, %c0_41] : memref<1x32xf32, #tpu.memory_space<vmem>>, vector<1x32xf32>
    %c0_42 = arith.constant 0 : index
    %c0_43 = arith.constant 0 : index
    %97 = vector.load %arg17[%c0_42, %c0_43] : memref<1x32xf32, #tpu.memory_space<vmem>>, vector<1x32xf32>
    %cst_44 = arith.constant dense<0.000000e+00> : vector<8xf32>
    %98 = vector.multi_reduction <add>, %95, %cst_44 [1] : vector<8x32xf32> to vector<8xf32>
    %99 = vector.shape_cast %98 : vector<8xf32> to vector<8x1xf32>
    %cst_45 = arith.constant 3.200000e+01 : f32
    %100 = vector.broadcast %cst_45 : f32 to vector<8x1xf32>
    %101 = arith.divf %99, %100 : vector<8x1xf32>
    %102 = vector.broadcast %101 : vector<8x1xf32> to vector<8x32xf32>
    %103 = arith.subf %95, %102 : vector<8x32xf32>
    %104 = arith.mulf %103, %103 : vector<8x32xf32>
    %cst_46 = arith.constant dense<0.000000e+00> : vector<8xf32>
    %105 = vector.multi_reduction <add>, %104, %cst_46 [1] : vector<8x32xf32> to vector<8xf32>
    %106 = vector.shape_cast %105 : vector<8xf32> to vector<8x1xf32>
    %cst_47 = arith.constant 3.200000e+01 : f32
    %107 = vector.broadcast %cst_47 : f32 to vector<8x1xf32>
    %108 = arith.divf %106, %107 : vector<8x1xf32>
    %109 = vector.broadcast %101 : vector<8x1xf32> to vector<8x32xf32>
    %110 = arith.subf %95, %109 : vector<8x32xf32>
    %cst_48 = arith.constant 9.99999997E-7 : f32
    %111 = vector.broadcast %cst_48 : f32 to vector<8x1xf32>
    %112 = arith.addf %108, %111 : vector<8x1xf32>
    %113 = math.rsqrt %112 : vector<8x1xf32>
    %114 = vector.broadcast %113 : vector<8x1xf32> to vector<8x32xf32>
    %115 = arith.mulf %110, %114 : vector<8x32xf32>
    %116 = vector.broadcast %96 : vector<1x32xf32> to vector<8x32xf32>
    %117 = arith.mulf %115, %116 : vector<8x32xf32>
    %118 = vector.broadcast %97 : vector<1x32xf32> to vector<8x32xf32>
    %119 = arith.addf %117, %118 : vector<8x32xf32>
    %120 = arith.truncf %119 : vector<8x32xf32> to vector<8x32xbf16>
    %c0_49 = arith.constant 0 : index
    %c0_50 = arith.constant 0 : index
    %121 = vector.load %arg18[%c0_49, %c0_50] : memref<32x64xbf16, #tpu.memory_space<vmem>>, vector<32x64xbf16>
    %cst_51 = arith.constant dense<0.000000e+00> : vector<8x64xf32>
    %122 = tpu.matmul %120, %121, %cst_51 {dimension_numbers = #tpu.dot_dimension_numbers<[1], [0], [0], [1], [0, 0, 1, 1], [], []>} : vector<8x32xbf16>, vector<32x64xbf16>, vector<8x64xf32> -> vector<8x64xf32>
    %c0_52 = arith.constant 0 : index
    %c0_53 = arith.constant 0 : index
    %123 = vector.load %arg19[%c0_52, %c0_53] : memref<1x64xf32, #tpu.memory_space<vmem>>, vector<1x64xf32>
    %124 = vector.broadcast %123 : vector<1x64xf32> to vector<8x64xf32>
    %125 = arith.addf %122, %124 : vector<8x64xf32>
    %cst_54 = arith.constant 0.000000e+00 : f32
    %126 = vector.broadcast %cst_54 : f32 to vector<8x64xf32>
    %127 = arith.maximumf %125, %126 : vector<8x64xf32>
    %128 = arith.truncf %127 : vector<8x64xf32> to vector<8x64xbf16>
    %c0_55 = arith.constant 0 : index
    %c0_56 = arith.constant 0 : index
    %129 = vector.load %arg20[%c0_55, %c0_56] : memref<64x32xbf16, #tpu.memory_space<vmem>>, vector<64x32xbf16>
    %cst_57 = arith.constant dense<0.000000e+00> : vector<8x32xf32>
    %130 = tpu.matmul %128, %129, %cst_57 {dimension_numbers = #tpu.dot_dimension_numbers<[1], [0], [0], [1], [0, 0, 1, 1], [], []>} : vector<8x64xbf16>, vector<64x32xbf16>, vector<8x32xf32> -> vector<8x32xf32>
    %c0_58 = arith.constant 0 : index
    %c0_59 = arith.constant 0 : index
    %131 = vector.load %arg21[%c0_58, %c0_59] : memref<1x32xf32, #tpu.memory_space<vmem>>, vector<1x32xf32>
    %132 = vector.broadcast %131 : vector<1x32xf32> to vector<8x32xf32>
    %133 = arith.addf %130, %132 : vector<8x32xf32>
    %134 = arith.addf %133, %95 : vector<8x32xf32>
    %c0_60 = arith.constant 0 : index
    %c0_61 = arith.constant 0 : index
    %c0_62 = arith.constant 0 : index
    %135 = vector.load %arg22[%c0_60, %c0_61, %c0_62] : memref<1x8x32xf32, #tpu.memory_space<vmem>>, vector<1x8x32xf32>
    %136 = vector.shape_cast %135 : vector<1x8x32xf32> to vector<8x32xf32>
    %137 = vector.shape_cast %134 : vector<8x32xf32> to vector<1x8x32xf32>
    tpu.vector_store %arg22[%c0_60, %c0_61, %c0_62], %137 {strides = array<i32>} : memref<1x8x32xf32, #tpu.memory_space<vmem>>, vector<1x8x32xf32>,
    return
  }
  func.func @transform_0(%arg0: i32, %arg1: i32) -> (i32, i32, i32) {
    %c0_i32 = arith.constant 0 : i32
    %c0_i32_0 = arith.constant 0 : i32
    %c0_i32_1 = arith.constant 0 : i32
    return %arg0, %c0_i32, %c0_i32_0 : i32, i32, i32
  }
  func.func @transform_1(%arg0: i32, %arg1: i32) -> (i32, i32, i32) {
    %c0_i32 = arith.constant 0 : i32
    %c0_i32_0 = arith.constant 0 : i32
    %c0_i32_1 = arith.constant 0 : i32
    return %arg0, %c0_i32, %c0_i32_0 : i32, i32, i32
  }
  func.func @transform_2(%arg0: i32, %arg1: i32) -> (i32, i32, i32) {
    %c0_i32 = arith.constant 0 : i32
    %c0_i32_0 = arith.constant 0 : i32
    return %arg0, %arg1, %c0_i32 : i32, i32, i32
  }
  func.func @transform_3(%arg0: i32, %arg1: i32) -> (i32, i32, i32) {
    %c0_i32 = arith.constant 0 : i32
    %c0_i32_0 = arith.constant 0 : i32
    %c0_i32_1 = arith.constant 0 : i32
    return %arg0, %c0_i32, %c0_i32_0 : i32, i32, i32
  }
  func.func @transform_4(%arg0: i32, %arg1: i32) -> (i32, i32) {
    %c0_i32 = arith.constant 0 : i32
    %c0_i32_0 = arith.constant 0 : i32
    %c0_i32_1 = arith.constant 0 : i32
    return %c0_i32, %c0_i32_0 : i32, i32
  }
  func.func @transform_5(%arg0: i32, %arg1: i32) -> (i32, i32) {
    %c0_i32 = arith.constant 0 : i32
    %c0_i32_0 = arith.constant 0 : i32
    %c0_i32_1 = arith.constant 0 : i32
    return %c0_i32, %c0_i32_0 : i32, i32
  }
  func.func @transform_6(%arg0: i32, %arg1: i32) -> (i32, i32) {
    %c0_i32 = arith.constant 0 : i32
    %c0_i32_0 = arith.constant 0 : i32
    %c0_i32_1 = arith.constant 0 : i32
    return %c0_i32, %c0_i32_0 : i32, i32
  }
  func.func @transform_7(%arg0: i32, %arg1: i32) -> (i32, i32) {
    %c0_i32 = arith.constant 0 : i32
    %c0_i32_0 = arith.constant 0 : i32
    %c0_i32_1 = arith.constant 0 : i32
    return %c0_i32, %c0_i32_0 : i32, i32
  }
  func.func @transform_8(%arg0: i32, %arg1: i32) -> (i32, i32) {
    %c0_i32 = arith.constant 0 : i32
    %c0_i32_0 = arith.constant 0 : i32
    %c0_i32_1 = arith.constant 0 : i32
    return %c0_i32, %c0_i32_0 : i32, i32
  }
  func.func @transform_9(%arg0: i32, %arg1: i32) -> (i32, i32) {
    %c0_i32 = arith.constant 0 : i32
    %c0_i32_0 = arith.constant 0 : i32
    %c0_i32_1 = arith.constant 0 : i32
    return %c0_i32, %c0_i32_0 : i32, i32
  }
  func.func @transform_10(%arg0: i32, %arg1: i32) -> (i32, i32) {
    %c0_i32 = arith.constant 0 : i32
    %c0_i32_0 = arith.constant 0 : i32
    %c0_i32_1 = arith.constant 0 : i32
    return %c0_i32, %c0_i32_0 : i32, i32
  }
  func.func @transform_11(%arg0: i32, %arg1: i32) -> (i32, i32) {
    %c0_i32 = arith.constant 0 : i32
    %c0_i32_0 = arith.constant 0 : i32
    %c0_i32_1 = arith.constant 0 : i32
    return %c0_i32, %c0_i32_0 : i32, i32
  }
  func.func @transform_12(%arg0: i32, %arg1: i32) -> (i32, i32) {
    %c0_i32 = arith.constant 0 : i32
    %c0_i32_0 = arith.constant 0 : i32
    %c0_i32_1 = arith.constant 0 : i32
    return %c0_i32, %c0_i32_0 : i32, i32
  }
  func.func @transform_13(%arg0: i32, %arg1: i32) -> (i32, i32) {
    %c0_i32 = arith.constant 0 : i32
    %c0_i32_0 = arith.constant 0 : i32
    %c0_i32_1 = arith.constant 0 : i32
    return %c0_i32, %c0_i32_0 : i32, i32
  }
  func.func @transform_14(%arg0: i32, %arg1: i32) -> (i32, i32) {
    %c0_i32 = arith.constant 0 : i32
    %c0_i32_0 = arith.constant 0 : i32
    %c0_i32_1 = arith.constant 0 : i32
    return %c0_i32, %c0_i32_0 : i32, i32
  }
  func.func @transform_15(%arg0: i32, %arg1: i32) -> (i32, i32) {
    %c0_i32 = arith.constant 0 : i32
    %c0_i32_0 = arith.constant 0 : i32
    %c0_i32_1 = arith.constant 0 : i32
    return %c0_i32, %c0_i32_0 : i32, i32
  }
  func.func @transform_16(%arg0: i32, %arg1: i32) -> (i32, i32) {
    %c0_i32 = arith.constant 0 : i32
    %c0_i32_0 = arith.constant 0 : i32
    %c0_i32_1 = arith.constant 0 : i32
    return %c0_i32, %c0_i32_0 : i32, i32
  }
  func.func @transform_17(%arg0: i32, %arg1: i32) -> (i32, i32) {
    %c0_i32 = arith.constant 0 : i32
    %c0_i32_0 = arith.constant 0 : i32
    %c0_i32_1 = arith.constant 0 : i32
    return %c0_i32, %c0_i32_0 : i32, i32
  }
  func.func @transform_18(%arg0: i32, %arg1: i32) -> (i32, i32) {
    %c0_i32 = arith.constant 0 : i32
    %c0_i32_0 = arith.constant 0 : i32
    %c0_i32_1 = arith.constant 0 : i32
    return %c0_i32, %c0_i32_0 : i32, i32
  }
  func.func @transform_19(%arg0: i32, %arg1: i32) -> (i32, i32) {
    %c0_i32 = arith.constant 0 : i32
    %c0_i32_0 = arith.constant 0 : i32
    %c0_i32_1 = arith.constant 0 : i32
    return %c0_i32, %c0_i32_0 : i32, i32
  }
  func.func @transform_20(%arg0: i32, %arg1: i32) -> (i32, i32, i32) {
    %c0_i32 = arith.constant 0 : i32
    %c0_i32_0 = arith.constant 0 : i32
    return %arg0, %arg1, %c0_i32 : i32, i32, i32
  }
  func.func @transform_21(%arg0: i32, %arg1: i32) -> (i32, i32, i32) {
    %c0_i32 = arith.constant 0 : i32
    %c0_i32_0 = arith.constant 0 : i32
    return %arg0, %arg1, %c0_i32 : i32, i32, i32
  }
}

</mosaic_0001>

<llo_original>
// kernel: tpu_custom_call.1
$region0: #{tpu_custom_call.1}
  #allocation0 [shape = 'u32[]', space=smem, size = 0x4, offset = 0x4, fixed_abs, tag = 'smem constant byte address 0x4 - core index']
  #allocation1 [shape = 'u32[72,128]{1,0:T(1,128)}', space=vmem, size = 0x9000, scoped, tag = 'internal scratch']
  #allocation2 [shape = 'bf16[4,8,128]{2,1,0:T(8,128)(2,1)}', space=vmem, size = 0x2000, scoped, tag = 'scratch operand']
  #allocation3 [shape = 'bf16[4,8,128]{2,1,0:T(8,128)(2,1)}', space=vmem, size = 0x2000, scoped, tag = 'scratch operand']
  %s0 = inlined_call_operand.vmem [shape: bf16[2,8,32], index: 0, kind: input, shape index: {}]
  %s1 = inlined_call_operand.vmem [shape: bf16[2,8,32], index: 1, kind: input, shape index: {}]
  %s2 = inlined_call_operand.vmem [shape: bf16[2,8,32], index: 2, kind: input, shape index: {}]
  %s3 = inlined_call_operand.vmem [shape: f32[2,1,8], index: 3, kind: input, shape index: {}]
  %s4 = inlined_call_operand.vmem [shape: f32[1,32], index: 4, kind: input, shape index: {}]
  %s5 = inlined_call_operand.vmem [shape: f32[1,32], index: 5, kind: input, shape index: {}]
  %s6 = inlined_call_operand.vmem [shape: bf16[32,512], index: 6, kind: input, shape index: {}]
  %s7 = inlined_call_operand.vmem [shape: f32[1,512], index: 7, kind: input, shape index: {}]
  %s8 = inlined_call_operand.vmem [shape: bf16[32,512], index: 8, kind: input, shape index: {}]
  %s9 = inlined_call_operand.vmem [shape: f32[1,512], index: 9, kind: input, shape index: {}]
  %s10 = inlined_call_operand.vmem [shape: bf16[32,512], index: 10, kind: input, shape index: {}]
  %s11 = inlined_call_operand.vmem [shape: f32[1,512], index: 11, kind: input, shape index: {}]
  %s12 = inlined_call_operand.vmem [shape: bf16[512,32], index: 12, kind: input, shape index: {}]
  %s13 = inlined_call_operand.vmem [shape: f32[1,32], index: 13, kind: input, shape index: {}]
  %s14 = inlined_call_operand.vmem [shape: f32[1,32], index: 14, kind: input, shape index: {}]
  %s15 = inlined_call_operand.vmem [shape: f32[1,32], index: 15, kind: input, shape index: {}]
  %s16 = inlined_call_operand.vmem [shape: bf16[32,64], index: 16, kind: input, shape index: {}]
  %s17 = inlined_call_operand.vmem [shape: f32[1,64], index: 17, kind: input, shape index: {}]
  %s18 = inlined_call_operand.vmem [shape: bf16[64,32], index: 18, kind: input, shape index: {}]
  %s19 = inlined_call_operand.vmem [shape: f32[1,32], index: 19, kind: input, shape index: {}]
  %s20 = inlined_call_operand.hbm [shape: f32[2,8,32], index: 20, kind: output, shape index: {0}]
  %s21 = inlined_call_operand.hbm [shape: bf16[2,8,8], index: 21, kind: output, shape index: {1}]
  %22 = xla_tuple %s20, %s21
  %s23 = sld [smem:[#allocation0]]
  $region125: #{tpu_custom_call.1} parent=0
    _
  %s25 = ssub.s32 1, %s23
  %s26 = scalar_select 0, %s25, %s23
  $region1: #{tpu_custom_call.1} parent=0
    #allocation4 [shape = 'u8[8192]{0}', space=vmem, size = 0x2000, scoped, tag = 'output window, operand 0']
    #allocation5 [shape = 's32[2]{0}', space=sflag, size = 0x8, scoped, tag = 'scoped memory for tpu_custom_call.1']
    #allocation6 [shape = 'u8[4096]{0}', space=vmem, size = 0x1000, scoped, tag = 'output window, operand 1']
    #allocation7 [shape = 's32[2]{0}', space=sflag, size = 0x8, scoped, tag = 'scoped memory for tpu_custom_call.1']
    %27 = vsyncpa [#allocation5], 0
    %s28 = scalar_lea.sflag [#allocation5], 1
    %29 = vsyncpa %s28, 0
    %30 = vsyncpa [#allocation7], 0
    %s31 = scalar_lea.sflag [#allocation7], 1
    %32 = vsyncpa %s31, 0
    loop: start=0, step=1, limit=4
    $region2: #{tpu_custom_call.1} parent=1 // loop_pre_header
      _
    $region3: #{tpu_custom_call.1} parent=1 // loop_header
      %s34 = sphi 0, %s38
      %p35 = scmp.ge.s32.totalorder %s34, 4
      %s41 = sphi 0, %s53
      %s42 = sphi 0, %s49
      %s43 = sphi 0, %s41
      %s44 = sphi 0, %s42
      %s45 = sphi 0, %s43
      %s46 = sphi 0, %s44
      %s56 = sphi 0, %s58
      %s59 = sphi 0, %s56
      %s60 = sphi 0, %s59
      %s76 = sphi 0, %s60
      %s82 = sphi 0, %s84
      %s85 = sphi 0, %s82
      %s86 = sphi 0, %s85
      %s102 = sphi 0, %s86
      %s110 = sphi 0, %s112
      %s113 = sphi 0, %s110
      %s114 = sphi 0, %s113
      %s130 = sphi 0, %s114
      %s136 = sphi 0, %s138
      %s139 = sphi 0, %s136
      %s140 = sphi 0, %s139
      %s156 = sphi 0, %s140
      %s160 = sphi 0, %s160
      %s162 = sphi 0, %s160
      %s163 = sphi 0, %s162
      %s177 = sphi 0, %s163
      %s181 = sphi 0, %s181
      %s183 = sphi 0, %s181
      %s184 = sphi 0, %s183
      %s198 = sphi 0, %s184
      %s202 = sphi 0, %s202
      %s204 = sphi 0, %s202
      %s205 = sphi 0, %s204
      %s219 = sphi 0, %s205
      %s223 = sphi 0, %s223
      %s225 = sphi 0, %s223
      %s226 = sphi 0, %s225
      %s240 = sphi 0, %s226
      %s244 = sphi 0, %s244
      %s246 = sphi 0, %s244
      %s247 = sphi 0, %s246
      %s261 = sphi 0, %s247
      %s265 = sphi 0, %s265
      %s267 = sphi 0, %s265
      %s268 = sphi 0, %s267
      %s282 = sphi 0, %s268
      %s286 = sphi 0, %s286
      %s288 = sphi 0, %s286
      %s289 = sphi 0, %s288
      %s303 = sphi 0, %s289
      %s307 = sphi 0, %s307
      %s309 = sphi 0, %s307
      %s310 = sphi 0, %s309
      %s324 = sphi 0, %s310
      %s328 = sphi 0, %s328
      %s330 = sphi 0, %s328
      %s331 = sphi 0, %s330
      %s345 = sphi 0, %s331
      %s349 = sphi 0, %s349
      %s351 = sphi 0, %s349
      %s352 = sphi 0, %s351
      %s366 = sphi 0, %s352
      %s370 = sphi 0, %s370
      %s372 = sphi 0, %s370
      %s373 = sphi 0, %s372
      %s387 = sphi 0, %s373
      %s391 = sphi 0, %s391
      %s393 = sphi 0, %s391
      %s394 = sphi 0, %s393
      %s408 = sphi 0, %s394
      %s412 = sphi 0, %s412
      %s414 = sphi 0, %s412
      %s415 = sphi 0, %s414
      %s429 = sphi 0, %s415
      %s433 = sphi 0, %s433
      %s435 = sphi 0, %s433
      %s436 = sphi 0, %s435
      %s450 = sphi 0, %s436
      %s454 = sphi 0, %s454
      %s456 = sphi 0, %s454
      %s457 = sphi 0, %s456
      %s471 = sphi 0, %s457
      %s475 = sphi 0, %s475
      %s477 = sphi 0, %s475
      %s478 = sphi 0, %s477
      %s492 = sphi 0, %s478
      %s500 = sphi 0, %s502
      %s503 = sphi 0, %s500
      %s504 = sphi 0, %s503
      %s520 = sphi 0, %s504
      %s528 = sphi 0, %s530
      %s531 = sphi 0, %s528
      %s532 = sphi 0, %s531
      %s548 = sphi 0, %s532
    $region4: #{tpu_custom_call.1} parent=1 // loop_header_branch
      %37 = sbr.rel (%p35) target = $region8
    $region5: #{tpu_custom_call.1} parent=1 // loop_body
      %s39 = ssub.s32 %s34, 1
      %s40 = ssub.s32 %s34, 2
      %s47 = sadd.s32 1, %s42
      %p48 = scmp.ge.s32.totalorder %s47, 1
      %s49 = scalar_select %p48, 0, %s47
      %s50 = sadd.s32 1, %s41
      %s51 = scalar_select %p48, %s50, %s41
      %p52 = scmp.ge.s32.totalorder %s51, 2
      %s53 = scalar_select %p52, 0, %s51
      %s54 = ssub.s32 %s41, %s53
      %p55 = scmp.eq.s32.totalorder %s54, 0
      %s57 = sadd.s32 %s56, 1
      %s58 = scalar_select %p55, %s56, %s57
      %p61 = pneg %p55
      %p62 = scmp.eq.s32.totalorder %s34, 1
      %p63 = por %p61, %p62
      %p64 = scmp.ne.s32.totalorder %s56, %s59
      %p65 = scmp.eq.s32.totalorder %s34, 0
      %p66 = por %p64, %p65
      %p67 = scmp.ne.s32.totalorder %s56, %s59
      %p68 = scmp.eq.s32.totalorder %s39, 1
      %p69 = por %p67, %p68
      %p70 = scmp.ne.s32.totalorder %s59, %s60
      %p71 = scmp.eq.s32.totalorder %s39, 0
      %p72 = por %p70, %p71
      %p73 = scmp.ne.s32.totalorder %s59, %s60
      %p74 = scmp.eq.s32.totalorder %s40, 1
      %p75 = por %p73, %p74
      %p77 = scmp.ne.s32.totalorder %s60, %s76
      %p78 = scmp.eq.s32.totalorder %s40, 0
      %p79 = por %p77, %p78
      %s80 = ssub.s32 %s41, %s53
      %p81 = scmp.eq.s32.totalorder %s80, 0
      %s83 = sadd.s32 %s82, 1
      %s84 = scalar_select %p81, %s82, %s83
      %p87 = pneg %p81
      %p88 = scmp.eq.s32.totalorder %s34, 1
      %p89 = por %p87, %p88
      %p90 = scmp.ne.s32.totalorder %s82, %s85
      %p91 = scmp.eq.s32.totalorder %s34, 0
      %p92 = por %p90, %p91
      %p93 = scmp.ne.s32.totalorder %s82, %s85
      %p94 = scmp.eq.s32.totalorder %s39, 1
      %p95 = por %p93, %p94
      %p96 = scmp.ne.s32.totalorder %s85, %s86
      %p97 = scmp.eq.s32.totalorder %s39, 0
      %p98 = por %p96, %p97
      %p99 = scmp.ne.s32.totalorder %s85, %s86
      %p100 = scmp.eq.s32.totalorder %s40, 1
      %p101 = por %p99, %p100
      %p103 = scmp.ne.s32.totalorder %s86, %s102
      %p104 = scmp.eq.s32.totalorder %s40, 0
      %p105 = por %p103, %p104
      %s106 = ssub.s32 %s41, %s53
      %s107 = ssub.s32 %s42, %s49
      %s108 = sor.u32 %s106, %s107
      %p109 = scmp.eq.s32.totalorder %s108, 0
      %s111 = sadd.s32 %s110, 1
      %s112 = scalar_select %p109, %s110, %s111
      %p115 = pneg %p109
      %p116 = scmp.eq.s32.totalorder %s34, 1
      %p117 = por %p115, %p116
      %p118 = scmp.ne.s32.totalorder %s110, %s113
      %p119 = scmp.eq.s32.totalorder %s34, 0
      %p120 = por %p118, %p119
      %p121 = scmp.ne.s32.totalorder %s110, %s113
      %p122 = scmp.eq.s32.totalorder %s39, 1
      %p123 = por %p121, %p122
      %p124 = scmp.ne.s32.totalorder %s113, %s114
      %p125 = scmp.eq.s32.totalorder %s39, 0
      %p126 = por %p124, %p125
      %p127 = scmp.ne.s32.totalorder %s113, %s114
      %p128 = scmp.eq.s32.totalorder %s40, 1
      %p129 = por %p127, %p128
      %p131 = scmp.ne.s32.totalorder %s114, %s130
      %p132 = scmp.eq.s32.totalorder %s40, 0
      %p133 = por %p131, %p132
      %s134 = ssub.s32 %s41, %s53
      %p135 = scmp.eq.s32.totalorder %s134, 0
      %s137 = sadd.s32 %s136, 1
      %s138 = scalar_select %p135, %s136, %s137
      %p141 = pneg %p135
      %p142 = scmp.eq.s32.totalorder %s34, 1
      %p143 = por %p141, %p142
      %p144 = scmp.ne.s32.totalorder %s136, %s139
      %p145 = scmp.eq.s32.totalorder %s34, 0
      %p146 = por %p144, %p145
      %p147 = scmp.ne.s32.totalorder %s136, %s139
      %p148 = scmp.eq.s32.totalorder %s39, 1
      %p149 = por %p147, %p148
      %p150 = scmp.ne.s32.totalorder %s139, %s140
      %p151 = scmp.eq.s32.totalorder %s39, 0
      %p152 = por %p150, %p151
      %p153 = scmp.ne.s32.totalorder %s139, %s140
      %p154 = scmp.eq.s32.totalorder %s40, 1
      %p155 = por %p153, %p154
      %p157 = scmp.ne.s32.totalorder %s140, %s156
      %p158 = scmp.eq.s32.totalorder %s40, 0
      %p159 = por %p157, %p158
      %s161 = sadd.s32 %s160, 1
      %p164 = scmp.eq.s32.totalorder %s34, 1
      %p165 = scmp.ne.s32.totalorder %s160, %s162
      %p166 = scmp.eq.s32.totalorder %s34, 0
      %p167 = por %p165, %p166
      %p168 = scmp.ne.s32.totalorder %s160, %s162
      %p169 = scmp.eq.s32.totalorder %s39, 1
      %p170 = por %p168, %p169
      %p171 = scmp.ne.s32.totalorder %s162, %s163
      %p172 = scmp.eq.s32.totalorder %s39, 0
      %p173 = por %p171, %p172
      %p174 = scmp.ne.s32.totalorder %s162, %s163
      %p175 = scmp.eq.s32.totalorder %s40, 1
      %p176 = por %p174, %p175
      %p178 = scmp.ne.s32.totalorder %s163, %s177
      %p179 = scmp.eq.s32.totalorder %s40, 0
      %p180 = por %p178, %p179
      %s182 = sadd.s32 %s181, 1
      %p185 = scmp.eq.s32.totalorder %s34, 1
      %p186 = scmp.ne.s32.totalorder %s181, %s183
      %p187 = scmp.eq.s32.totalorder %s34, 0
      %p188 = por %p186, %p187
      %p189 = scmp.ne.s32.totalorder %s181, %s183
      %p190 = scmp.eq.s32.totalorder %s39, 1
      %p191 = por %p189, %p190
      %p192 = scmp.ne.s32.totalorder %s183, %s184
      %p193 = scmp.eq.s32.totalorder %s39, 0
      %p194 = por %p192, %p193
      %p195 = scmp.ne.s32.totalorder %s183, %s184
      %p196 = scmp.eq.s32.totalorder %s40, 1
      %p197 = por %p195, %p196
      %p199 = scmp.ne.s32.totalorder %s184, %s198
      %p200 = scmp.eq.s32.totalorder %s40, 0
      %p201 = por %p199, %p200
      %s203 = sadd.s32 %s202, 1
      %p206 = scmp.eq.s32.totalorder %s34, 1
      %p207 = scmp.ne.s32.totalorder %s202, %s204
      %p208 = scmp.eq.s32.totalorder %s34, 0
      %p209 = por %p207, %p208
      %p210 = scmp.ne.s32.totalorder %s202, %s204
      %p211 = scmp.eq.s32.totalorder %s39, 1
      %p212 = por %p210, %p211
      %p213 = scmp.ne.s32.totalorder %s204, %s205
      %p214 = scmp.eq.s32.totalorder %s39, 0
      %p215 = por %p213, %p214
      %p216 = scmp.ne.s32.totalorder %s204, %s205
      %p217 = scmp.eq.s32.totalorder %s40, 1
      %p218 = por %p216, %p217
      %p220 = scmp.ne.s32.totalorder %s205, %s219
      %p221 = scmp.eq.s32.totalorder %s40, 0
      %p222 = por %p220, %p221
      %s224 = sadd.s32 %s223, 1
      %p227 = scmp.eq.s32.totalorder %s34, 1
      %p228 = scmp.ne.s32.totalorder %s223, %s225
      %p229 = scmp.eq.s32.totalorder %s34, 0
      %p230 = por %p228, %p229
      %p231 = scmp.ne.s32.totalorder %s223, %s225
      %p232 = scmp.eq.s32.totalorder %s39, 1
      %p233 = por %p231, %p232
      %p234 = scmp.ne.s32.totalorder %s225, %s226
      %p235 = scmp.eq.s32.totalorder %s39, 0
      %p236 = por %p234, %p235
      %p237 = scmp.ne.s32.totalorder %s225, %s226
      %p238 = scmp.eq.s32.totalorder %s40, 1
      %p239 = por %p237, %p238
      %p241 = scmp.ne.s32.totalorder %s226, %s240
      %p242 = scmp.eq.s32.totalorder %s40, 0
      %p243 = por %p241, %p242
      %s245 = sadd.s32 %s244, 1
      %p248 = scmp.eq.s32.totalorder %s34, 1
      %p249 = scmp.ne.s32.totalorder %s244, %s246
      %p250 = scmp.eq.s32.totalorder %s34, 0
      %p251 = por %p249, %p250
      %p252 = scmp.ne.s32.totalorder %s244, %s246
      %p253 = scmp.eq.s32.totalorder %s39, 1
      %p254 = por %p252, %p253
      %p255 = scmp.ne.s32.totalorder %s246, %s247
      %p256 = scmp.eq.s32.totalorder %s39, 0
      %p257 = por %p255, %p256
      %p258 = scmp.ne.s32.totalorder %s246, %s247
      %p259 = scmp.eq.s32.totalorder %s40, 1
      %p260 = por %p258, %p259
      %p262 = scmp.ne.s32.totalorder %s247, %s261
      %p263 = scmp.eq.s32.totalorder %s40, 0
      %p264 = por %p262, %p263
      %s266 = sadd.s32 %s265, 1
      %p269 = scmp.eq.s32.totalorder %s34, 1
      %p270 = scmp.ne.s32.totalorder %s265, %s267
      %p271 = scmp.eq.s32.totalorder %s34, 0
      %p272 = por %p270, %p271
      %p273 = scmp.ne.s32.totalorder %s265, %s267
      %p274 = scmp.eq.s32.totalorder %s39, 1
      %p275 = por %p273, %p274
      %p276 = scmp.ne.s32.totalorder %s267, %s268
      %p277 = scmp.eq.s32.totalorder %s39, 0
      %p278 = por %p276, %p277
      %p279 = scmp.ne.s32.totalorder %s267, %s268
      %p280 = scmp.eq.s32.totalorder %s40, 1
      %p281 = por %p279, %p280
      %p283 = scmp.ne.s32.totalorder %s268, %s282
      %p284 = scmp.eq.s32.totalorder %s40, 0
      %p285 = por %p283, %p284
      %s287 = sadd.s32 %s286, 1
      %p290 = scmp.eq.s32.totalorder %s34, 1
      %p291 = scmp.ne.s32.totalorder %s286, %s288
      %p292 = scmp.eq.s32.totalorder %s34, 0
      %p293 = por %p291, %p292
      %p294 = scmp.ne.s32.totalorder %s286, %s288
      %p295 = scmp.eq.s32.totalorder %s39, 1
      %p296 = por %p294, %p295
      %p297 = scmp.ne.s32.totalorder %s288, %s289
      %p298 = scmp.eq.s32.totalorder %s39, 0
      %p299 = por %p297, %p298
      %p300 = scmp.ne.s32.totalorder %s288, %s289
      %p301 = scmp.eq.s32.totalorder %s40, 1
      %p302 = por %p300, %p301
      %p304 = scmp.ne.s32.totalorder %s289, %s303
      %p305 = scmp.eq.s32.totalorder %s40, 0
      %p306 = por %p304, %p305
      %s308 = sadd.s32 %s307, 1
      %p311 = scmp.eq.s32.totalorder %s34, 1
      %p312 = scmp.ne.s32.totalorder %s307, %s309
      %p313 = scmp.eq.s32.totalorder %s34, 0
      %p314 = por %p312, %p313
      %p315 = scmp.ne.s32.totalorder %s307, %s309
      %p316 = scmp.eq.s32.totalorder %s39, 1
      %p317 = por %p315, %p316
      %p318 = scmp.ne.s32.totalorder %s309, %s310
      %p319 = scmp.eq.s32.totalorder %s39, 0
      %p320 = por %p318, %p319
      %p321 = scmp.ne.s32.totalorder %s309, %s310
      %p322 = scmp.eq.s32.totalorder %s40, 1
      %p323 = por %p321, %p322
      %p325 = scmp.ne.s32.totalorder %s310, %s324
      %p326 = scmp.eq.s32.totalorder %s40, 0
      %p327 = por %p325, %p326
      %s329 = sadd.s32 %s328, 1
      %p332 = scmp.eq.s32.totalorder %s34, 1
      %p333 = scmp.ne.s32.totalorder %s328, %s330
      %p334 = scmp.eq.s32.totalorder %s34, 0
      %p335 = por %p333, %p334
      %p336 = scmp.ne.s32.totalorder %s328, %s330
      %p337 = scmp.eq.s32.totalorder %s39, 1
      %p338 = por %p336, %p337
      %p339 = scmp.ne.s32.totalorder %s330, %s331
      %p340 = scmp.eq.s32.totalorder %s39, 0
      %p341 = por %p339, %p340
      %p342 = scmp.ne.s32.totalorder %s330, %s331
      %p343 = scmp.eq.s32.totalorder %s40, 1
      %p344 = por %p342, %p343
      %p346 = scmp.ne.s32.totalorder %s331, %s345
      %p347 = scmp.eq.s32.totalorder %s40, 0
      %p348 = por %p346, %p347
      %s350 = sadd.s32 %s349, 1
      %p353 = scmp.eq.s32.totalorder %s34, 1
      %p354 = scmp.ne.s32.totalorder %s349, %s351
      %p355 = scmp.eq.s32.totalorder %s34, 0
      %p356 = por %p354, %p355
      %p357 = scmp.ne.s32.totalorder %s349, %s351
      %p358 = scmp.eq.s32.totalorder %s39, 1
      %p359 = por %p357, %p358
      %p360 = scmp.ne.s32.totalorder %s351, %s352
      %p361 = scmp.eq.s32.totalorder %s39, 0
      %p362 = por %p360, %p361
      %p363 = scmp.ne.s32.totalorder %s351, %s352
      %p364 = scmp.eq.s32.totalorder %s40, 1
      %p365 = por %p363, %p364
      %p367 = scmp.ne.s32.totalorder %s352, %s366
      %p368 = scmp.eq.s32.totalorder %s40, 0
      %p369 = por %p367, %p368
      %s371 = sadd.s32 %s370, 1
      %p374 = scmp.eq.s32.totalorder %s34, 1
      %p375 = scmp.ne.s32.totalorder %s370, %s372
      %p376 = scmp.eq.s32.totalorder %s34, 0
      %p377 = por %p375, %p376
      %p378 = scmp.ne.s32.totalorder %s370, %s372
      %p379 = scmp.eq.s32.totalorder %s39, 1
      %p380 = por %p378, %p379
      %p381 = scmp.ne.s32.totalorder %s372, %s373
      %p382 = scmp.eq.s32.totalorder %s39, 0
      %p383 = por %p381, %p382
      %p384 = scmp.ne.s32.totalorder %s372, %s373
      %p385 = scmp.eq.s32.totalorder %s40, 1
      %p386 = por %p384, %p385
      %p388 = scmp.ne.s32.totalorder %s373, %s387
      %p389 = scmp.eq.s32.totalorder %s40, 0
      %p390 = por %p388, %p389
      %s392 = sadd.s32 %s391, 1
      %p395 = scmp.eq.s32.totalorder %s34, 1
      %p396 = scmp.ne.s32.totalorder %s391, %s393
      %p397 = scmp.eq.s32.totalorder %s34, 0
      %p398 = por %p396, %p397
      %p399 = scmp.ne.s32.totalorder %s391, %s393
      %p400 = scmp.eq.s32.totalorder %s39, 1
      %p401 = por %p399, %p400
      %p402 = scmp.ne.s32.totalorder %s393, %s394
      %p403 = scmp.eq.s32.totalorder %s39, 0
      %p404 = por %p402, %p403
      %p405 = scmp.ne.s32.totalorder %s393, %s394
      %p406 = scmp.eq.s32.totalorder %s40, 1
      %p407 = por %p405, %p406
      %p409 = scmp.ne.s32.totalorder %s394, %s408
      %p410 = scmp.eq.s32.totalorder %s40, 0
      %p411 = por %p409, %p410
      %s413 = sadd.s32 %s412, 1
      %p416 = scmp.eq.s32.totalorder %s34, 1
      %p417 = scmp.ne.s32.totalorder %s412, %s414
      %p418 = scmp.eq.s32.totalorder %s34, 0
      %p419 = por %p417, %p418
      %p420 = scmp.ne.s32.totalorder %s412, %s414
      %p421 = scmp.eq.s32.totalorder %s39, 1
      %p422 = por %p420, %p421
      %p423 = scmp.ne.s32.totalorder %s414, %s415
      %p424 = scmp.eq.s32.totalorder %s39, 0
      %p425 = por %p423, %p424
      %p426 = scmp.ne.s32.totalorder %s414, %s415
      %p427 = scmp.eq.s32.totalorder %s40, 1
      %p428 = por %p426, %p427
      %p430 = scmp.ne.s32.totalorder %s415, %s429
      %p431 = scmp.eq.s32.totalorder %s40, 0
      %p432 = por %p430, %p431
      %s434 = sadd.s32 %s433, 1
      %p437 = scmp.eq.s32.totalorder %s34, 1
      %p438 = scmp.ne.s32.totalorder %s433, %s435
      %p439 = scmp.eq.s32.totalorder %s34, 0
      %p440 = por %p438, %p439
      %p441 = scmp.ne.s32.totalorder %s433, %s435
      %p442 = scmp.eq.s32.totalorder %s39, 1
      %p443 = por %p441, %p442
      %p444 = scmp.ne.s32.totalorder %s435, %s436
      %p445 = scmp.eq.s32.totalorder %s39, 0
      %p446 = por %p444, %p445
      %p447 = scmp.ne.s32.totalorder %s435, %s436
      %p448 = scmp.eq.s32.totalorder %s40, 1
      %p449 = por %p447, %p448
      %p451 = scmp.ne.s32.totalorder %s436, %s450
      %p452 = scmp.eq.s32.totalorder %s40, 0
      %p453 = por %p451, %p452
      %s455 = sadd.s32 %s454, 1
      %p458 = scmp.eq.s32.totalorder %s34, 1
      %p459 = scmp.ne.s32.totalorder %s454, %s456
      %p460 = scmp.eq.s32.totalorder %s34, 0
      %p461 = por %p459, %p460
      %p462 = scmp.ne.s32.totalorder %s454, %s456
      %p463 = scmp.eq.s32.totalorder %s39, 1
      %p464 = por %p462, %p463
      %p465 = scmp.ne.s32.totalorder %s456, %s457
      %p466 = scmp.eq.s32.totalorder %s39, 0
      %p467 = por %p465, %p466
      %p468 = scmp.ne.s32.totalorder %s456, %s457
      %p469 = scmp.eq.s32.totalorder %s40, 1
      %p470 = por %p468, %p469
      %p472 = scmp.ne.s32.totalorder %s457, %s471
      %p473 = scmp.eq.s32.totalorder %s40, 0
      %p474 = por %p472, %p473
      %s476 = sadd.s32 %s475, 1
      %p479 = scmp.eq.s32.totalorder %s34, 1
      %p480 = scmp.ne.s32.totalorder %s475, %s477
      %p481 = scmp.eq.s32.totalorder %s34, 0
      %p482 = por %p480, %p481
      %p483 = scmp.ne.s32.totalorder %s475, %s477
      %p484 = scmp.eq.s32.totalorder %s39, 1
      %p485 = por %p483, %p484
      %p486 = scmp.ne.s32.totalorder %s477, %s478
      %p487 = scmp.eq.s32.totalorder %s39, 0
      %p488 = por %p486, %p487
      %p489 = scmp.ne.s32.totalorder %s477, %s478
      %p490 = scmp.eq.s32.totalorder %s40, 1
      %p491 = por %p489, %p490
      %p493 = scmp.ne.s32.totalorder %s478, %s492
      %p494 = scmp.eq.s32.totalorder %s40, 0
      %p495 = por %p493, %p494
      %s496 = ssub.s32 %s41, %s53
      %s497 = ssub.s32 %s42, %s49
      %s498 = sor.u32 %s496, %s497
      %p499 = scmp.eq.s32.totalorder %s498, 0
      %s501 = sadd.s32 %s500, 1
      %s502 = scalar_select %p499, %s500, %s501
      %p505 = pneg %p499
      %p506 = scmp.eq.s32.totalorder %s34, 1
      %p507 = por %p505, %p506
      %p508 = scmp.ne.s32.totalorder %s500, %s503
      %p509 = scmp.eq.s32.totalorder %s34, 0
      %p510 = por %p508, %p509
      %p511 = scmp.ne.s32.totalorder %s500, %s503
      %p512 = scmp.eq.s32.totalorder %s39, 1
      %p513 = por %p511, %p512
      %p514 = scmp.ne.s32.totalorder %s503, %s504
      %p515 = scmp.eq.s32.totalorder %s39, 0
      %p516 = por %p514, %p515
      %p517 = scmp.ne.s32.totalorder %s503, %s504
      %p518 = scmp.eq.s32.totalorder %s40, 1
      %p519 = por %p517, %p518
      %p521 = scmp.ne.s32.totalorder %s504, %s520
      %p522 = scmp.eq.s32.totalorder %s40, 0
      %p523 = por %p521, %p522
      %s524 = ssub.s32 %s41, %s53
      %s525 = ssub.s32 %s42, %s49
      %s526 = sor.u32 %s524, %s525
      %p527 = scmp.eq.s32.totalorder %s526, 0
      %s529 = sadd.s32 %s528, 1
      %s530 = scalar_select %p527, %s528, %s529
      %p533 = pneg %p527
      %p534 = scmp.eq.s32.totalorder %s34, 1
      %p535 = por %p533, %p534
      %p536 = scmp.ne.s32.totalorder %s528, %s531
      %p537 = scmp.eq.s32.totalorder %s34, 0
      %p538 = por %p536, %p537
      %p539 = scmp.ne.s32.totalorder %s528, %s531
      %p540 = scmp.eq.s32.totalorder %s39, 1
      %p541 = por %p539, %p540
      %p542 = scmp.ne.s32.totalorder %s531, %s532
      %p543 = scmp.eq.s32.totalorder %s39, 0
      %p544 = por %p542, %p543
      %p545 = scmp.ne.s32.totalorder %s531, %s532
      %p546 = scmp.eq.s32.totalorder %s40, 1
      %p547 = por %p545, %p546
      %p549 = scmp.ne.s32.totalorder %s532, %s548
      %p550 = scmp.eq.s32.totalorder %s40, 0
      %p551 = por %p549, %p550
      %p552 = scmp.le.s32.totalorder 1, %s34
      %p553 = scmp.lt.s32.totalorder %s34, 3
      %p554 = pnand %p552, %p553
      %p555 = pneg %p554
      // Predicated region
      $region9: #{tpu_custom_call.1} parent=5 // pred_check
        _
      $region10: #{tpu_custom_call.1} parent=5 // pred_check_branch
        %557 = sbr.rel (%p554) target = $region12
      $region11: #{tpu_custom_call.1} parent=5 // pred_region
        %s558 = ssub.s32 %s34, 1
        // Predicated region
        $region13: #{tpu_custom_call.1} parent=11 // pred_check
          %p559 = pneg %p72
        $region14: #{tpu_custom_call.1} parent=11 // pred_check_branch
          %561 = sbr.rel (%p559) target = $region16
        $region15: #{tpu_custom_call.1} parent=11 // pred_region
          %p562 = scmp.lt.s32.totalorder %s43, 1
          %s563 = scalar_select %p562, %s43, 1
          %s564 = smul.addr %s563, 4
          %s565 = scalar_lea.vmem %s0, %s564
        $region16: #{tpu_custom_call.1} parent=11 // pred_fallthru
          _
        // Predicated region
        $region17: #{tpu_custom_call.1} parent=11 // pred_check
          %p566 = pneg %p98
        $region18: #{tpu_custom_call.1} parent=11 // pred_check_branch
          %568 = sbr.rel (%p566) target = $region20
        $region19: #{tpu_custom_call.1} parent=11 // pred_region
          %p569 = scmp.lt.s32.totalorder %s43, 1
          %s570 = scalar_select %p569, %s43, 1
          %s571 = smul.addr %s570, 4
          %s572 = scalar_lea.vmem %s1, %s571
        $region20: #{tpu_custom_call.1} parent=11 // pred_fallthru
          _
        // Predicated region
        $region21: #{tpu_custom_call.1} parent=11 // pred_check
          %p573 = pneg %p173
        $region22: #{tpu_custom_call.1} parent=11 // pred_check_branch
          %575 = sbr.rel (%p573) target = $region24
        $region23: #{tpu_custom_call.1} parent=11 // pred_region
          _
        $region24: #{tpu_custom_call.1} parent=11 // pred_fallthru
          _
        // Predicated region
        $region25: #{tpu_custom_call.1} parent=11 // pred_check
          %p576 = pneg %p194
        $region26: #{tpu_custom_call.1} parent=11 // pred_check_branch
          %578 = sbr.rel (%p576) target = $region28
        $region27: #{tpu_custom_call.1} parent=11 // pred_region
          _
        $region28: #{tpu_custom_call.1} parent=11 // pred_fallthru
          _
        // Predicated region
        $region29: #{tpu_custom_call.1} parent=11 // pred_check
          %p579 = pneg %p215
        $region30: #{tpu_custom_call.1} parent=11 // pred_check_branch
          %581 = sbr.rel (%p579) target = $region32
        $region31: #{tpu_custom_call.1} parent=11 // pred_region
          _
        $region32: #{tpu_custom_call.1} parent=11 // pred_fallthru
          _
        // Predicated region
        $region33: #{tpu_custom_call.1} parent=11 // pred_check
          %p582 = pneg %p236
        $region34: #{tpu_custom_call.1} parent=11 // pred_check_branch
          %584 = sbr.rel (%p582) target = $region36
        $region35: #{tpu_custom_call.1} parent=11 // pred_region
          _
        $region36: #{tpu_custom_call.1} parent=11 // pred_fallthru
          _
        // Predicated region
        $region37: #{tpu_custom_call.1} parent=11 // pred_check
          %p585 = pneg %p257
        $region38: #{tpu_custom_call.1} parent=11 // pred_check_branch
          %587 = sbr.rel (%p585) target = $region40
        $region39: #{tpu_custom_call.1} parent=11 // pred_region
          _
        $region40: #{tpu_custom_call.1} parent=11 // pred_fallthru
          _
        // Predicated region
        $region41: #{tpu_custom_call.1} parent=11 // pred_check
          %p588 = pneg %p278
        $region42: #{tpu_custom_call.1} parent=11 // pred_check_branch
          %590 = sbr.rel (%p588) target = $region44
        $region43: #{tpu_custom_call.1} parent=11 // pred_region
          _
        $region44: #{tpu_custom_call.1} parent=11 // pred_fallthru
          _
        // Predicated region
        $region45: #{tpu_custom_call.1} parent=11 // pred_check
          %p591 = pneg %p299
        $region46: #{tpu_custom_call.1} parent=11 // pred_check_branch
          %593 = sbr.rel (%p591) target = $region48
        $region47: #{tpu_custom_call.1} parent=11 // pred_region
          _
        $region48: #{tpu_custom_call.1} parent=11 // pred_fallthru
          _
        // Predicated region
        $region49: #{tpu_custom_call.1} parent=11 // pred_check
          %p594 = pneg %p320
        $region50: #{tpu_custom_call.1} parent=11 // pred_check_branch
          %596 = sbr.rel (%p594) target = $region52
        $region51: #{tpu_custom_call.1} parent=11 // pred_region
          _
        $region52: #{tpu_custom_call.1} parent=11 // pred_fallthru
          _
        // Predicated region
        $region53: #{tpu_custom_call.1} parent=11 // pred_check
          %p597 = pneg %p341
        $region54: #{tpu_custom_call.1} parent=11 // pred_check_branch
          %599 = sbr.rel (%p597) target = $region56
        $region55: #{tpu_custom_call.1} parent=11 // pred_region
          _
        $region56: #{tpu_custom_call.1} parent=11 // pred_fallthru
          _
        // Predicated region
        $region57: #{tpu_custom_call.1} parent=11 // pred_check
          %p600 = pneg %p362
        $region58: #{tpu_custom_call.1} parent=11 // pred_check_branch
          %602 = sbr.rel (%p600) target = $region60
        $region59: #{tpu_custom_call.1} parent=11 // pred_region
          _
        $region60: #{tpu_custom_call.1} parent=11 // pred_fallthru
          _
        // Predicated region
        $region61: #{tpu_custom_call.1} parent=11 // pred_check
          %p603 = pneg %p383
        $region62: #{tpu_custom_call.1} parent=11 // pred_check_branch
          %605 = sbr.rel (%p603) target = $region64
        $region63: #{tpu_custom_call.1} parent=11 // pred_region
          _
        $region64: #{tpu_custom_call.1} parent=11 // pred_fallthru
          _
        // Predicated region
        $region65: #{tpu_custom_call.1} parent=11 // pred_check
          %p606 = pneg %p404
        $region66: #{tpu_custom_call.1} parent=11 // pred_check_branch
          %608 = sbr.rel (%p606) target = $region68
        $region67: #{tpu_custom_call.1} parent=11 // pred_region
          _
        $region68: #{tpu_custom_call.1} parent=11 // pred_fallthru
          _
        // Predicated region
        $region69: #{tpu_custom_call.1} parent=11 // pred_check
          %p609 = pneg %p425
        $region70: #{tpu_custom_call.1} parent=11 // pred_check_branch
          %611 = sbr.rel (%p609) target = $region72
        $region71: #{tpu_custom_call.1} parent=11 // pred_region
          _
        $region72: #{tpu_custom_call.1} parent=11 // pred_fallthru
          _
        // Predicated region
        $region73: #{tpu_custom_call.1} parent=11 // pred_check
          %p612 = pneg %p446
        $region74: #{tpu_custom_call.1} parent=11 // pred_check_branch
          %614 = sbr.rel (%p612) target = $region76
        $region75: #{tpu_custom_call.1} parent=11 // pred_region
          _
        $region76: #{tpu_custom_call.1} parent=11 // pred_fallthru
          _
        // Predicated region
        $region77: #{tpu_custom_call.1} parent=11 // pred_check
          %p615 = pneg %p467
        $region78: #{tpu_custom_call.1} parent=11 // pred_check_branch
          %617 = sbr.rel (%p615) target = $region80
        $region79: #{tpu_custom_call.1} parent=11 // pred_region
          _
        $region80: #{tpu_custom_call.1} parent=11 // pred_fallthru
          _
        // Predicated region
        $region81: #{tpu_custom_call.1} parent=11 // pred_check
          %p618 = pneg %p488
        $region82: #{tpu_custom_call.1} parent=11 // pred_check_branch
          %620 = sbr.rel (%p618) target = $region84
        $region83: #{tpu_custom_call.1} parent=11 // pred_region
          _
        $region84: #{tpu_custom_call.1} parent=11 // pred_fallthru
          _
      $region12: #{tpu_custom_call.1} parent=5 // pred_fallthru
        _
      %p621 = scmp.lt.s32.totalorder %s34, 2
      // Predicated region
      $region85: #{tpu_custom_call.1} parent=5 // pred_check
        %p622 = pneg %p621
      $region86: #{tpu_custom_call.1} parent=5 // pred_check_branch
        %624 = sbr.rel (%p622) target = $region88
      $region87: #{tpu_custom_call.1} parent=5 // pred_region
        // Predicated region
        $region89: #{tpu_custom_call.1} parent=87 // pred_check
          %p625 = pneg %p120
        $region90: #{tpu_custom_call.1} parent=87 // pred_check_branch
          %627 = sbr.rel (%p625) target = $region92
        $region91: #{tpu_custom_call.1} parent=87 // pred_region
          %p628 = scmp.lt.s32.totalorder %s41, 1
          %s629 = scalar_select %p628, %s41, 1
          %p630 = scmp.lt.s32.totalorder %s42, 0
          %s631 = scalar_select %p630, %s42, 0
          %s632 = sadd.s32 %s631, %s629
          %s633 = smul.addr %s632, 4
          %s634 = scalar_lea.vmem %s2, %s633
        $region92: #{tpu_custom_call.1} parent=87 // pred_fallthru
          _
        // Predicated region
        $region93: #{tpu_custom_call.1} parent=87 // pred_check
          %p635 = pneg %p146
        $region94: #{tpu_custom_call.1} parent=87 // pred_check_branch
          %637 = sbr.rel (%p635) target = $region96
        $region95: #{tpu_custom_call.1} parent=87 // pred_region
          %p638 = scmp.lt.s32.totalorder %s41, 1
          %s639 = scalar_select %p638, %s41, 1
          %s640 = scalar_lea.vmem %s3, %s639
        $region96: #{tpu_custom_call.1} parent=87 // pred_fallthru
          _
      $region88: #{tpu_custom_call.1} parent=5 // pred_fallthru
        _
      %p641 = scmp.le.s32.totalorder 1, %s34
      %p642 = scmp.lt.s32.totalorder %s34, 3
      %p643 = pnand %p641, %p642
      %p644 = pneg %p643
      // Predicated region
      $region97: #{tpu_custom_call.1} parent=5 // pred_check
        _
      $region98: #{tpu_custom_call.1} parent=5 // pred_check_branch
        %646 = sbr.rel (%p643) target = $region100
      $region99: #{tpu_custom_call.1} parent=5 // pred_region
        %s647 = ssub.s32 %s34, 1
        %p648 = scmp.lt.s32.totalorder %s43, 1
        %s649 = scalar_select %p648, %s43, 1
        %s650 = smul.addr %s649, 4
        %s651 = scalar_lea.vmem %s0, %s650
        %p652 = pneg %p72
        %p653 = pneg %p69
        %p654 = scmp.lt.s32.totalorder %s43, 1
        %s655 = scalar_select %p654, %s43, 1
        %s656 = smul.addr %s655, 4
        %s657 = scalar_lea.vmem %s1, %s656
        %p658 = pneg %p98
        %p659 = pneg %p95
        %p660 = scmp.lt.s32.totalorder %s43, 1
        %s661 = scalar_select %p660, %s43, 1
        %p662 = scmp.lt.s32.totalorder %s44, 0
        %s663 = scalar_select %p662, %s44, 0
        %s664 = sadd.s32 %s663, %s661
        %s665 = smul.addr %s664, 4
        %s666 = scalar_lea.vmem %s2, %s665
        %p667 = pneg %p126
        %p668 = pneg %p123
        %p669 = scmp.lt.s32.totalorder %s43, 1
        %s670 = scalar_select %p669, %s43, 1
        %s671 = scalar_lea.vmem %s3, %s670
        %p672 = pneg %p152
        %p673 = pneg %p149
        %p674 = pneg %p173
        %p675 = pneg %p170
        %p676 = pneg %p194
        %p677 = pneg %p191
        %p678 = pneg %p215
        %p679 = pneg %p212
        %p680 = pneg %p236
        %p681 = pneg %p233
        %p682 = pneg %p257
        %p683 = pneg %p254
        %p684 = pneg %p278
        %p685 = pneg %p275
        %p686 = pneg %p299
        %p687 = pneg %p296
        %p688 = pneg %p320
        %p689 = pneg %p317
        %p690 = pneg %p341
        %p691 = pneg %p338
        %p692 = pneg %p362
        %p693 = pneg %p359
        %p694 = pneg %p383
        %p695 = pneg %p380
        %p696 = pneg %p404
        %p697 = pneg %p401
        %p698 = pneg %p425
        %p699 = pneg %p422
        %p700 = pneg %p446
        %p701 = pneg %p443
        %p702 = pneg %p467
        %p703 = pneg %p464
        %p704 = pneg %p488
        %p705 = pneg %p485
        %p706 = pneg %p516
        %p707 = pneg %p513
        %s708 = sand.u32 %s503, 1
        %s709 = scalar_lea.sflag [#allocation5], %s708
        %s710 = sand.u32 %s503, 1
        %s711 = smul.addr %s710, 8
        %s712 = scalar_lea.vmem [#allocation4], %s711
        %p713 = pneg %p544
        %p714 = pneg %p541
        %s715 = sand.u32 %s531, 1
        %s716 = scalar_lea.sflag [#allocation7], %s715
        %s717 = sand.u32 %s531, 1
        %s718 = smul.addr %s717, 4
        %s719 = scalar_lea.vmem [#allocation6], %s718
        %p720 = scmp.lt.s32.totalorder %s43, 1
        %s721 = scalar_select %p720, %s43, 1
        %s722 = smul.addr %s721, 4
        %s723 = scalar_lea.vmem %s0, %s722
        %p724 = scmp.lt.s32.totalorder %s43, 1
        %s725 = scalar_select %p724, %s43, 1
        %s726 = smul.addr %s725, 4
        %s727 = scalar_lea.vmem %s1, %s726
        %p728 = scmp.lt.s32.totalorder %s43, 1
        %s729 = scalar_select %p728, %s43, 1
        %p730 = scmp.lt.s32.totalorder %s44, 0
        %s731 = scalar_select %p730, %s44, 0
        %s732 = sadd.s32 %s731, %s729
        %s733 = smul.addr %s732, 4
        %s734 = scalar_lea.vmem %s2, %s733
        %p735 = scmp.lt.s32.totalorder %s43, 1
        %s736 = scalar_select %p735, %s43, 1
        %s737 = scalar_lea.vmem %s3, %s736
        %p739 = scmp.eq.s32.totalorder %s44, 0
        // Predicated region
        $region101: #{tpu_custom_call.1} parent=99 // pred_check
          %p740 = pneg %p739
        $region102: #{tpu_custom_call.1} parent=99 // pred_check_branch
          %742 = sbr.rel (%p740) target = $region104
        $region103: #{tpu_custom_call.1} parent=99 // pred_region
          %v743 = vld [vmem:[%s723] sm:$0xf]
          %v744 = vunpack.c.l.bf16 %v743
          %v745 = vld [vmem:[%s727] sm:$0xf]
          %v746 = vunpack.c.l.bf16 %v745
          %v747 = vld [vmem:[%s4] sm:$0x1]
          %v748 = vld [vmem:[%s5] sm:$0x1]
          %vm749 = vcmask 261120
          %v750 = vsel %vm749, %v744, 0.0
          %751 = vadd.xlane.f32.xlu0 %v750
          %v752 = vpop.xlane.xlu0 %751
          %v753 = vrcp.pop 32.0
          %v754 = vmul.f32 32.0, %v753
          %v755 = vsub.f32 1.0, %v754
          %v756 = vmul.f32 %v753, %v755
          %v757 = vadd.f32 %v753, %v756
          %vm758 = vweird.f32 %v753
          %v759 = vsel %vm758, %v753, %v757
          %v760 = vmul.f32 %v752, %v759
          %v761 = vsub.f32 %v744, %v760
          %v762 = vmul.f32 %v761, %v761
          %v763 = vsel %vm749, %v762, 0.0
          %764 = vadd.xlane.f32.xlu0 %v763
          %v765 = vpop.xlane.xlu0 %764
          %v766 = vmul.f32 %v765, %v759
          %v767 = vadd.f32 %v766, 1e-06
          %v768 = vrsqrt.pop %v767
          %v769 = vmul.f32 %v768, %v767
          %v770 = vmul.f32 %v769, %v768
          %v771 = vmul.f32 0.5, %v770
          %v772 = vsub.f32 1.5, %v771
          %v773 = vmul.f32 %v768, %v772
          %vm774 = vweird.f32 %v767
          %vm775 = vweird.f32 %v768
          %vm776 = vmor %vm774, %vm775
          %v777 = vsel %vm776, %v768, %v773
          %v778 = vmul.f32 %v761, %v777
          %v780 = vperm.slane %v747, 0
          %v782 = vmul.f32 %v778, %v780
          %v784 = vperm.slane %v748, 0
          %v786 = vadd.f32 %v782, %v784
          %v787 = vsel %vm749, %v746, 0.0
          %788 = vadd.xlane.f32.xlu0 %v787
          %v789 = vpop.xlane.xlu0 %788
          %v790 = vmul.f32 %v789, %v759
          %v791 = vsub.f32 %v746, %v790
          %v792 = vmul.f32 %v791, %v791
          %v793 = vsel %vm749, %v792, 0.0
          %794 = vadd.xlane.f32.xlu0 %v793
          %v795 = vpop.xlane.xlu0 %794
          %v796 = vmul.f32 %v795, %v759
          %v797 = vadd.f32 %v796, 1e-06
          %v798 = vrsqrt.pop %v797
          %v799 = vmul.f32 %v798, %v797
          %v800 = vmul.f32 %v799, %v798
          %v801 = vmul.f32 0.5, %v800
          %v802 = vsub.f32 1.5, %v801
          %v803 = vmul.f32 %v798, %v802
          %vm804 = vweird.f32 %v797
          %vm805 = vweird.f32 %v798
          %vm806 = vmor %vm804, %vm805
          %v807 = vsel %vm806, %v798, %v803
          %v808 = vmul.f32 %v791, %v807
          %v809 = vmul.f32 %v808, %v780
          %v810 = vadd.f32 %v809, %v784
          %v811 = vpack.c.bf16 %v786, %v786
          %v812 = vld [vmem:[%s6] sm:$0xff]
          %v813 = vld [vmem:[%s6 + $0x8] sm:$0xff]
          %v814 = vld [vmem:[%s6 + $0x10] sm:$0xff]
          %v815 = vld [vmem:[%s6 + $0x18] sm:$0xff]
          %v816 = vld [vmem:[%s6 + $0x20] sm:$0xff]
          %v817 = vld [vmem:[%s6 + $0x28] sm:$0xff]
          %v818 = vld [vmem:[%s6 + $0x30] sm:$0xff]
          %v819 = vld [vmem:[%s6 + $0x38] sm:$0xff]
          %v820 = vld [vmem:[%s7] sm:$0xf]
          %v822 = vperm.slane %v820, 0
          %v823 = vperm.slane %v820, 1
          %v824 = vperm.slane %v820, 2
          %v825 = vperm.slane %v820, 3
          %v838 = vunpack.c.l.b16 %v812
          %v839 = vunpack.c.h.b16 %v812
          %v840 = vunpack.c.l.b16 %v813
          %v841 = vunpack.c.h.b16 %v813
          %v842 = vunpack.c.l.b16 %v814
          %v843 = vunpack.c.h.b16 %v814
          %v844 = vunpack.c.l.b16 %v815
          %v845 = vunpack.c.h.b16 %v815
          %v846 = vunpack.c.l.b16 %v816
          %v847 = vunpack.c.h.b16 %v816
          %v848 = vunpack.c.l.b16 %v817
          %v849 = vunpack.c.h.b16 %v817
          %v850 = vunpack.c.l.b16 %v818
          %v851 = vunpack.c.h.b16 %v818
          %v852 = vunpack.c.l.b16 %v819
          %v853 = vunpack.c.h.b16 %v819
          %v854 = vpack.c.b16 %v842, %v838
          %v855 = vpack.c.b16 %v843, %v839
          %v856 = vpack.c.b16 %v844, %v840
          %v857 = vpack.c.b16 %v845, %v841
          %v858 = vpack.c.b16 %v850, %v846
          %v859 = vpack.c.b16 %v851, %v847
          %v860 = vpack.c.b16 %v852, %v848
          %v861 = vpack.c.b16 %v853, %v849
          %v871 = vsel %vm749, %v811, 0
          %873 = vmatpush.bf16.msra.mxu0 0
          %874 = vmatpush.bf16.msra.mxu0 0
          %875 = vmatpush.bf16.msra.mxu0 0
          %876 = vmatpush.bf16.msra.mxu0 0
          %877 = vmatpush.bf16.msra.mxu0 0
          %878 = vmatpush.bf16.msra.mxu0 0
          %879 = vmatpush.bf16.msra.mxu0 %v858
          %880 = vmatpush.bf16.msra.mxu0 %v854
          %881 = vmatmul.bf16.gmra.mxu0 %v871
          %v882 = vpop.f32.mrf.mxu0
          %v883 = vadd.f32 %v822, %v882
          %v884 = vpop.f32.mrf.mxu0
          %885 = vdwg.mxu0
          %886 = vmatpush.bf16.msra.mxu0 0
          %887 = vmatpush.bf16.msra.mxu0 0
          %888 = vmatpush.bf16.msra.mxu0 0
          %889 = vmatpush.bf16.msra.mxu0 0
          %890 = vmatpush.bf16.msra.mxu0 0
          %891 = vmatpush.bf16.msra.mxu0 0
          %892 = vmatpush.bf16.msra.mxu0 %v859
          %893 = vmatpush.bf16.msra.mxu0 %v855
          %894 = vmatmul.bf16.gmra.mxu0 %v871
          %v895 = vpop.f32.mrf.mxu0
          %v896 = vadd.f32 %v823, %v895
          %v897 = vpop.f32.mrf.mxu0
          %898 = vdwg.mxu0
          %899 = vmatpush.bf16.msra.mxu0 0
          %900 = vmatpush.bf16.msra.mxu0 0
          %901 = vmatpush.bf16.msra.mxu0 0
          %902 = vmatpush.bf16.msra.mxu0 0
          %903 = vmatpush.bf16.msra.mxu0 0
          %904 = vmatpush.bf16.msra.mxu0 0
          %905 = vmatpush.bf16.msra.mxu0 %v860
          %906 = vmatpush.bf16.msra.mxu0 %v856
          %907 = vmatmul.bf16.gmra.mxu0 %v871
          %v908 = vpop.f32.mrf.mxu0
          %v909 = vadd.f32 %v824, %v908
          %v910 = vpop.f32.mrf.mxu0
          %911 = vdwg.mxu0
          %912 = vmatpush.bf16.msra.mxu0 0
          %913 = vmatpush.bf16.msra.mxu0 0
          %914 = vmatpush.bf16.msra.mxu0 0
          %915 = vmatpush.bf16.msra.mxu0 0
          %916 = vmatpush.bf16.msra.mxu0 0
          %917 = vmatpush.bf16.msra.mxu0 0
          %918 = vmatpush.bf16.msra.mxu0 %v861
          %919 = vmatpush.bf16.msra.mxu0 %v857
          %920 = vmatmul.bf16.gmra.mxu0 %v871
          %v921 = vpop.f32.mrf.mxu0
          %v922 = vadd.f32 %v825, %v921
          %v923 = vpop.f32.mrf.mxu0
          %924 = vdwg.mxu0
          %v925 = vpack.c.bf16 %v810, %v810
          %v926 = vld [vmem:[%s8] sm:$0xff]
          %v927 = vld [vmem:[%s8 + $0x8] sm:$0xff]
          %v928 = vld [vmem:[%s8 + $0x10] sm:$0xff]
          %v929 = vld [vmem:[%s8 + $0x18] sm:$0xff]
          %v930 = vld [vmem:[%s8 + $0x20] sm:$0xff]
          %v931 = vld [vmem:[%s8 + $0x28] sm:$0xff]
          %v932 = vld [vmem:[%s8 + $0x30] sm:$0xff]
          %v933 = vld [vmem:[%s8 + $0x38] sm:$0xff]
          %v934 = vld [vmem:[%s9] sm:$0xf]
          %v936 = vperm.slane %v934, 0
          %v937 = vperm.slane %v934, 1
          %v938 = vperm.slane %v934, 2
          %v939 = vperm.slane %v934, 3
          %v952 = vunpack.c.l.b16 %v926
          %v953 = vunpack.c.h.b16 %v926
          %v954 = vunpack.c.l.b16 %v927
          %v955 = vunpack.c.h.b16 %v927
          %v956 = vunpack.c.l.b16 %v928
          %v957 = vunpack.c.h.b16 %v928
          %v958 = vunpack.c.l.b16 %v929
          %v959 = vunpack.c.h.b16 %v929
          %v960 = vunpack.c.l.b16 %v930
          %v961 = vunpack.c.h.b16 %v930
          %v962 = vunpack.c.l.b16 %v931
          %v963 = vunpack.c.h.b16 %v931
          %v964 = vunpack.c.l.b16 %v932
          %v965 = vunpack.c.h.b16 %v932
          %v966 = vunpack.c.l.b16 %v933
          %v967 = vunpack.c.h.b16 %v933
          %v968 = vpack.c.b16 %v956, %v952
          %v969 = vpack.c.b16 %v957, %v953
          %v970 = vpack.c.b16 %v958, %v954
          %v971 = vpack.c.b16 %v959, %v955
          %v972 = vpack.c.b16 %v964, %v960
          %v973 = vpack.c.b16 %v965, %v961
          %v974 = vpack.c.b16 %v966, %v962
          %v975 = vpack.c.b16 %v967, %v963
          %v985 = vsel %vm749, %v925, 0
          %987 = vmatpush.bf16.msra.mxu0 0
          %988 = vmatpush.bf16.msra.mxu0 0
          %989 = vmatpush.bf16.msra.mxu0 0
          %990 = vmatpush.bf16.msra.mxu0 0
          %991 = vmatpush.bf16.msra.mxu0 0
          %992 = vmatpush.bf16.msra.mxu0 0
          %993 = vmatpush.bf16.msra.mxu0 %v972
          %994 = vmatpush.bf16.msra.mxu0 %v968
          %995 = vmatmul.bf16.gmra.mxu0 %v985
          %v996 = vpop.f32.mrf.mxu0
          %v997 = vadd.f32 %v936, %v996
          %v998 = vpop.f32.mrf.mxu0
          %999 = vdwg.mxu0
          %1000 = vmatpush.bf16.msra.mxu0 0
          %1001 = vmatpush.bf16.msra.mxu0 0
          %1002 = vmatpush.bf16.msra.mxu0 0
          %1003 = vmatpush.bf16.msra.mxu0 0
          %1004 = vmatpush.bf16.msra.mxu0 0
          %1005 = vmatpush.bf16.msra.mxu0 0
          %1006 = vmatpush.bf16.msra.mxu0 %v973
          %1007 = vmatpush.bf16.msra.mxu0 %v969
          %1008 = vmatmul.bf16.gmra.mxu0 %v985
          %v1009 = vpop.f32.mrf.mxu0
          %v1010 = vadd.f32 %v937, %v1009
          %v1011 = vpop.f32.mrf.mxu0
          %1012 = vdwg.mxu0
          %1013 = vmatpush.bf16.msra.mxu0 0
          %1014 = vmatpush.bf16.msra.mxu0 0
          %1015 = vmatpush.bf16.msra.mxu0 0
          %1016 = vmatpush.bf16.msra.mxu0 0
          %1017 = vmatpush.bf16.msra.mxu0 0
          %1018 = vmatpush.bf16.msra.mxu0 0
          %1019 = vmatpush.bf16.msra.mxu0 %v974
          %1020 = vmatpush.bf16.msra.mxu0 %v970
          %1021 = vmatmul.bf16.gmra.mxu0 %v985
          %v1022 = vpop.f32.mrf.mxu0
          %v1023 = vadd.f32 %v938, %v1022
          %v1024 = vpop.f32.mrf.mxu0
          %1025 = vdwg.mxu0
          %1026 = vmatpush.bf16.msra.mxu0 0
          %1027 = vmatpush.bf16.msra.mxu0 0
          %1028 = vmatpush.bf16.msra.mxu0 0
          %1029 = vmatpush.bf16.msra.mxu0 0
          %1030 = vmatpush.bf16.msra.mxu0 0
          %1031 = vmatpush.bf16.msra.mxu0 0
          %1032 = vmatpush.bf16.msra.mxu0 %v975
          %1033 = vmatpush.bf16.msra.mxu0 %v971
          %1034 = vmatmul.bf16.gmra.mxu0 %v985
          %v1035 = vpop.f32.mrf.mxu0
          %v1036 = vadd.f32 %v939, %v1035
          %v1037 = vpop.f32.mrf.mxu0
          %1038 = vdwg.mxu0
          %v1039 = vpack.c.bf16 %v883, %v883
          %v1040 = vpack.c.bf16 %v896, %v896
          %v1041 = vpack.c.bf16 %v909, %v909
          %v1042 = vpack.c.bf16 %v922, %v922
          %1043 = vst [vmem:[#allocation2] sm:$0xf] %v1039
          %1044 = vst [vmem:[#allocation2 + $0x4] sm:$0xf] %v1040
          %1045 = vst [vmem:[#allocation2 + $0x8] sm:$0xf] %v1041
          %1046 = vst [vmem:[#allocation2 + $0xc] sm:$0xf] %v1042
          %v1047 = vpack.c.bf16 %v997, %v997
          %v1048 = vpack.c.bf16 %v1010, %v1010
          %v1049 = vpack.c.bf16 %v1023, %v1023
          %v1050 = vpack.c.bf16 %v1036, %v1036
          %1051 = vst [vmem:[#allocation3] sm:$0xf] %v1047
          %1052 = vst [vmem:[#allocation3 + $0x4] sm:$0xf] %v1048
          %1053 = vst [vmem:[#allocation3 + $0x8] sm:$0xf] %v1049
          %1054 = vst [vmem:[#allocation3 + $0xc] sm:$0xf] %v1050
        $region104: #{tpu_custom_call.1} parent=99 // pred_fallthru
          _
        %v1055 = vld [vmem:[%s734] sm:$0xf]
        %v1056 = vunpack.c.l.bf16 %v1055
        %v1057 = vld [vmem:[%s4] sm:$0x1]
        %v1058 = vld [vmem:[%s5] sm:$0x1]
        %vm1059 = vcmask 261120
        %v1060 = vsel %vm1059, %v1056, 0.0
        %1061 = vadd.xlane.f32.xlu0 %v1060
        %v1062 = vpop.xlane.xlu0 %1061
        %v1063 = vrcp.pop 32.0
        %v1064 = vmul.f32 32.0, %v1063
        %v1065 = vsub.f32 1.0, %v1064
        %v1066 = vmul.f32 %v1063, %v1065
        %v1067 = vadd.f32 %v1063, %v1066
        %vm1068 = vweird.f32 %v1063
        %v1069 = vsel %vm1068, %v1063, %v1067
        %v1070 = vmul.f32 %v1062, %v1069
        %v1071 = vsub.f32 %v1056, %v1070
        %v1072 = vmul.f32 %v1071, %v1071
        %v1073 = vsel %vm1059, %v1072, 0.0
        %1074 = vadd.xlane.f32.xlu0 %v1073
        %v1075 = vpop.xlane.xlu0 %1074
        %v1076 = vmul.f32 %v1075, %v1069
        %v1077 = vadd.f32 %v1076, 1e-06
        %v1078 = vrsqrt.pop %v1077
        %v1079 = vmul.f32 %v1078, %v1077
        %v1080 = vmul.f32 %v1079, %v1078
        %v1081 = vmul.f32 0.5, %v1080
        %v1082 = vsub.f32 1.5, %v1081
        %v1083 = vmul.f32 %v1078, %v1082
        %vm1084 = vweird.f32 %v1077
        %vm1085 = vweird.f32 %v1078
        %vm1086 = vmor %vm1084, %vm1085
        %v1087 = vsel %vm1086, %v1078, %v1083
        %v1088 = vmul.f32 %v1071, %v1087
        %v1090 = vperm.slane %v1057, 0
        %v1092 = vmul.f32 %v1088, %v1090
        %v1094 = vperm.slane %v1058, 0
        %v1096 = vadd.f32 %v1092, %v1094
        %v1097 = vpack.c.bf16 %v1096, %v1096
        %v1098 = vld [vmem:[%s10] sm:$0xff]
        %v1099 = vld [vmem:[%s10 + $0x8] sm:$0xff]
        %v1100 = vld [vmem:[%s10 + $0x10] sm:$0xff]
        %v1101 = vld [vmem:[%s10 + $0x18] sm:$0xff]
        %v1102 = vld [vmem:[%s10 + $0x20] sm:$0xff]
        %v1103 = vld [vmem:[%s10 + $0x28] sm:$0xff]
        %v1104 = vld [vmem:[%s10 + $0x30] sm:$0xff]
        %v1105 = vld [vmem:[%s10 + $0x38] sm:$0xff]
        %v1106 = vld [vmem:[%s11] sm:$0xf]
        %v1108 = vperm.slane %v1106, 0
        %v1109 = vperm.slane %v1106, 1
        %v1110 = vperm.slane %v1106, 2
        %v1111 = vperm.slane %v1106, 3
        %v1124 = vunpack.c.l.b16 %v1098
        %v1125 = vunpack.c.h.b16 %v1098
        %v1126 = vunpack.c.l.b16 %v1099
        %v1127 = vunpack.c.h.b16 %v1099
        %v1128 = vunpack.c.l.b16 %v1100
        %v1129 = vunpack.c.h.b16 %v1100
        %v1130 = vunpack.c.l.b16 %v1101
        %v1131 = vunpack.c.h.b16 %v1101
        %v1132 = vunpack.c.l.b16 %v1102
        %v1133 = vunpack.c.h.b16 %v1102
        %v1134 = vunpack.c.l.b16 %v1103
        %v1135 = vunpack.c.h.b16 %v1103
        %v1136 = vunpack.c.l.b16 %v1104
        %v1137 = vunpack.c.h.b16 %v1104
        %v1138 = vunpack.c.l.b16 %v1105
        %v1139 = vunpack.c.h.b16 %v1105
        %v1140 = vpack.c.b16 %v1128, %v1124
        %v1141 = vpack.c.b16 %v1129, %v1125
        %v1142 = vpack.c.b16 %v1130, %v1126
        %v1143 = vpack.c.b16 %v1131, %v1127
        %v1144 = vpack.c.b16 %v1136, %v1132
        %v1145 = vpack.c.b16 %v1137, %v1133
        %v1146 = vpack.c.b16 %v1138, %v1134
        %v1147 = vpack.c.b16 %v1139, %v1135
        %v1157 = vsel %vm1059, %v1097, 0
        %1159 = vmatpush.bf16.msra.mxu0 0
        %1160 = vmatpush.bf16.msra.mxu0 0
        %1161 = vmatpush.bf16.msra.mxu0 0
        %1162 = vmatpush.bf16.msra.mxu0 0
        %1163 = vmatpush.bf16.msra.mxu0 0
        %1164 = vmatpush.bf16.msra.mxu0 0
        %1165 = vmatpush.bf16.msra.mxu0 %v1144
        %1166 = vmatpush.bf16.msra.mxu0 %v1140
        %1167 = vmatmul.bf16.gmra.mxu0 %v1157
        %v1168 = vpop.f32.mrf.mxu0
        %v1169 = vadd.f32 %v1108, %v1168
        %v1170 = vpop.f32.mrf.mxu0
        %1171 = vdwg.mxu0
        %1172 = vmatpush.bf16.msra.mxu0 0
        %1173 = vmatpush.bf16.msra.mxu0 0
        %1174 = vmatpush.bf16.msra.mxu0 0
        %1175 = vmatpush.bf16.msra.mxu0 0
        %1176 = vmatpush.bf16.msra.mxu0 0
        %1177 = vmatpush.bf16.msra.mxu0 0
        %1178 = vmatpush.bf16.msra.mxu0 %v1145
        %1179 = vmatpush.bf16.msra.mxu0 %v1141
        %1180 = vmatmul.bf16.gmra.mxu0 %v1157
        %v1181 = vpop.f32.mrf.mxu0
        %v1182 = vadd.f32 %v1109, %v1181
        %v1183 = vpop.f32.mrf.mxu0
        %1184 = vdwg.mxu0
        %1185 = vmatpush.bf16.msra.mxu0 0
        %1186 = vmatpush.bf16.msra.mxu0 0
        %1187 = vmatpush.bf16.msra.mxu0 0
        %1188 = vmatpush.bf16.msra.mxu0 0
        %1189 = vmatpush.bf16.msra.mxu0 0
        %1190 = vmatpush.bf16.msra.mxu0 0
        %1191 = vmatpush.bf16.msra.mxu0 %v1146
        %1192 = vmatpush.bf16.msra.mxu0 %v1142
        %1193 = vmatmul.bf16.gmra.mxu0 %v1157
        %v1194 = vpop.f32.mrf.mxu0
        %v1195 = vadd.f32 %v1110, %v1194
        %v1196 = vpop.f32.mrf.mxu0
        %1197 = vdwg.mxu0
        %1198 = vmatpush.bf16.msra.mxu0 0
        %1199 = vmatpush.bf16.msra.mxu0 0
        %1200 = vmatpush.bf16.msra.mxu0 0
        %1201 = vmatpush.bf16.msra.mxu0 0
        %1202 = vmatpush.bf16.msra.mxu0 0
        %1203 = vmatpush.bf16.msra.mxu0 0
        %1204 = vmatpush.bf16.msra.mxu0 %v1147
        %1205 = vmatpush.bf16.msra.mxu0 %v1143
        %1206 = vmatmul.bf16.gmra.mxu0 %v1157
        %v1207 = vpop.f32.mrf.mxu0
        %v1208 = vadd.f32 %v1111, %v1207
        %v1209 = vpop.f32.mrf.mxu0
        %1210 = vdwg.mxu0
        %v1211 = vpack.c.bf16 %v1169, %v1169
        %v1212 = vpack.c.bf16 %v1182, %v1182
        %v1213 = vpack.c.bf16 %v1195, %v1195
        %v1214 = vpack.c.bf16 %v1208, %v1208
        %v1215 = vld [vmem:[%s737] sm:$0x1]
        %vm1216 = vcmp.gt.f32.partialorder %v1215, 0.0
        %v1217 = vld [vmem:[#allocation2] sm:$0xf]
        %v1218 = vld [vmem:[#allocation2 + $0x4] sm:$0xf]
        %v1219 = vld [vmem:[#allocation2 + $0x8] sm:$0xf]
        %v1220 = vld [vmem:[#allocation2 + $0xc] sm:$0xf]
        %1221 = vmatpush.bf16.xpose.msra.mxu0 0
        %1222 = vmatpush.bf16.xpose.msra.mxu0 0
        %1223 = vmatpush.bf16.xpose.msra.mxu0 0
        %1224 = vmatpush.bf16.xpose.msra.mxu0 0
        %1225 = vmatpush.bf16.xpose.msra.mxu0 0
        %1226 = vmatpush.bf16.xpose.msra.mxu0 0
        %1227 = vmatpush.bf16.xpose.msra.mxu0 0
        %1228 = vmatpush.bf16.xpose.msra.mxu0 %v1217
        %1229 = vmatmul.bf16.gmra.mxu0 %v1211
        %v1230 = vpop.f32.mrf.mxu0
        %v1231 = vadd.f32 0.0, %v1230
        %v1232 = vpop.f32.mrf.mxu0
        %1233 = vdwg.mxu0
        %1234 = vmatpush.bf16.xpose.msra.mxu0 0
        %1235 = vmatpush.bf16.xpose.msra.mxu0 0
        %1236 = vmatpush.bf16.xpose.msra.mxu0 0
        %1237 = vmatpush.bf16.xpose.msra.mxu0 0
        %1238 = vmatpush.bf16.xpose.msra.mxu0 0
        %1239 = vmatpush.bf16.xpose.msra.mxu0 0
        %1240 = vmatpush.bf16.xpose.msra.mxu0 0
        %1241 = vmatpush.bf16.xpose.msra.mxu0 %v1218
        %1242 = vmatmul.bf16.gmra.mxu0 %v1212
        %v1243 = vpop.f32.mrf.mxu0
        %v1244 = vadd.f32 0.0, %v1243
        %v1245 = vpop.f32.mrf.mxu0
        %1246 = vdwg.mxu0
        %1247 = vmatpush.bf16.xpose.msra.mxu0 0
        %1248 = vmatpush.bf16.xpose.msra.mxu0 0
        %1249 = vmatpush.bf16.xpose.msra.mxu0 0
        %1250 = vmatpush.bf16.xpose.msra.mxu0 0
        %1251 = vmatpush.bf16.xpose.msra.mxu0 0
        %1252 = vmatpush.bf16.xpose.msra.mxu0 0
        %1253 = vmatpush.bf16.xpose.msra.mxu0 0
        %1254 = vmatpush.bf16.xpose.msra.mxu0 %v1219
        %1255 = vmatmul.bf16.gmra.mxu0 %v1213
        %v1256 = vpop.f32.mrf.mxu0
        %v1257 = vadd.f32 0.0, %v1256
        %v1258 = vpop.f32.mrf.mxu0
        %1259 = vdwg.mxu0
        %1260 = vmatpush.bf16.xpose.msra.mxu0 0
        %1261 = vmatpush.bf16.xpose.msra.mxu0 0
        %1262 = vmatpush.bf16.xpose.msra.mxu0 0
        %1263 = vmatpush.bf16.xpose.msra.mxu0 0
        %1264 = vmatpush.bf16.xpose.msra.mxu0 0
        %1265 = vmatpush.bf16.xpose.msra.mxu0 0
        %1266 = vmatpush.bf16.xpose.msra.mxu0 0
        %1267 = vmatpush.bf16.xpose.msra.mxu0 %v1220
        %1268 = vmatmul.bf16.gmra.mxu0 %v1214
        %v1269 = vpop.f32.mrf.mxu0
        %v1270 = vadd.f32 0.0, %v1269
        %v1271 = vpop.f32.mrf.mxu0
        %1272 = vdwg.mxu0
        %v1273 = vsel %vm1216, 1, 0
        %v1274 = vperm.slane %v1273, 0
        %vm1275 = vcmp.eq.s32.totalorder %v1274, 1
        %v1276 = vsel %vm1275, -1e+18, %v1231
        %v1277 = vsel %vm1275, -1e+18, %v1244
        %v1278 = vsel %vm1275, -1e+18, %v1257
        %v1279 = vsel %vm1275, -1e+18, %v1270
        %vm1280 = vcmask 64512
        %v1281 = vsel %vm1280, %v1276, -inf
        %1282 = vmax.xlane.f32.xlu0 %v1281
        %v1283 = vpop.xlane.xlu0 %1282
        %v1284 = vsel %vm1280, %v1277, -inf
        %1285 = vmax.xlane.f32.xlu0 %v1284
        %v1286 = vpop.xlane.xlu0 %1285
        %v1287 = vsel %vm1280, %v1278, -inf
        %1288 = vmax.xlane.f32.xlu0 %v1287
        %v1289 = vpop.xlane.xlu0 %1288
        %v1290 = vsel %vm1280, %v1279, -inf
        %1291 = vmax.xlane.f32.xlu0 %v1290
        %v1292 = vpop.xlane.xlu0 %1291
        %v1293 = vsub.f32 %v1276, %v1283
        %v1294 = vsub.f32 %v1277, %v1286
        %v1295 = vsub.f32 %v1278, %v1289
        %v1296 = vsub.f32 %v1279, %v1292
        %v1297 = vmul.f32 %v1293, 1.442695
        %v1298 = vpow.pop %v1297
        %v1299 = vmul.f32 %v1294, 1.442695
        %v1300 = vpow.pop %v1299
        %v1301 = vmul.f32 %v1295, 1.442695
        %v1302 = vpow.pop %v1301
        %v1303 = vmul.f32 %v1296, 1.442695
        %v1304 = vpow.pop %v1303
        %v1305 = vsel %vm1280, %v1298, 0.0
        %1306 = vadd.xlane.f32.xlu0 %v1305
        %v1307 = vpop.xlane.xlu0 %1306
        %v1308 = vsel %vm1280, %v1300, 0.0
        %1309 = vadd.xlane.f32.xlu0 %v1308
        %v1310 = vpop.xlane.xlu0 %1309
        %v1311 = vsel %vm1280, %v1302, 0.0
        %1312 = vadd.xlane.f32.xlu0 %v1311
        %v1313 = vpop.xlane.xlu0 %1312
        %v1314 = vsel %vm1280, %v1304, 0.0
        %1315 = vadd.xlane.f32.xlu0 %v1314
        %v1316 = vpop.xlane.xlu0 %1315
        %v1317 = vrcp.pop %v1307
        %v1318 = vrcp.pop %v1310
        %v1319 = vrcp.pop %v1313
        %v1320 = vrcp.pop %v1316
        %v1321 = vmul.f32 %v1307, %v1317
        %v1322 = vmul.f32 %v1310, %v1318
        %v1323 = vmul.f32 %v1313, %v1319
        %v1324 = vmul.f32 %v1316, %v1320
        %v1325 = vsub.f32 2.0, %v1321
        %v1326 = vsub.f32 2.0, %v1322
        %v1327 = vsub.f32 2.0, %v1323
        %v1328 = vsub.f32 2.0, %v1324
        %v1329 = vmul.f32 %v1317, %v1325
        %v1330 = vmul.f32 %v1318, %v1326
        %v1331 = vmul.f32 %v1319, %v1327
        %v1332 = vmul.f32 %v1320, %v1328
        %v1333 = vmul.f32 %v1298, %v1329
        %v1334 = vmul.f32 %v1300, %v1330
        %v1335 = vmul.f32 %v1302, %v1331
        %v1336 = vmul.f32 %v1304, %v1332
        %v1337 = vpack.c.bf16 %v1333, %v1333
        %vm1338 = vcmask 60416
        %1339 = vst.msk [vmem:[%s719] sm:$0xf] %vm1338, %v1337
        %v1340 = vpack.c.bf16 %v1334, %v1334
        %v1341 = vpack.c.bf16 %v1335, %v1335
        %v1342 = vpack.c.bf16 %v1336, %v1336
        %v1343 = vld [vmem:[#allocation3] sm:$0xf]
        %v1344 = vld [vmem:[#allocation3 + $0x4] sm:$0xf]
        %v1345 = vld [vmem:[#allocation3 + $0x8] sm:$0xf]
        %v1346 = vld [vmem:[#allocation3 + $0xc] sm:$0xf]
        %v1348 = vsel %vm1280, %v1337, 0
        %vm1350 = vcmask 1043456
        %v1352 = vsel %vm1350, %v1343, 0
        %1354 = vmatpush.bf16.msra.mxu0 0
        %1355 = vmatpush.bf16.msra.mxu0 0
        %1356 = vmatpush.bf16.msra.mxu0 0
        %1357 = vmatpush.bf16.msra.mxu0 0
        %1358 = vmatpush.bf16.msra.mxu0 0
        %1359 = vmatpush.bf16.msra.mxu0 0
        %1360 = vmatpush.bf16.msra.mxu0 0
        %1361 = vmatpush.bf16.msra.mxu0 %v1352
        %1362 = vmatmul.bf16.gmra.mxu0 %v1348
        %v1363 = vpop.f32.mrf.mxu0
        %v1364 = vadd.f32 0.0, %v1363
        %v1365 = vpop.f32.mrf.mxu0
        %1366 = vdwg.mxu0
        %v1368 = vsel %vm1280, %v1340, 0
        %v1371 = vsel %vm1350, %v1344, 0
        %1373 = vmatpush.bf16.msra.mxu0 0
        %1374 = vmatpush.bf16.msra.mxu0 0
        %1375 = vmatpush.bf16.msra.mxu0 0
        %1376 = vmatpush.bf16.msra.mxu0 0
        %1377 = vmatpush.bf16.msra.mxu0 0
        %1378 = vmatpush.bf16.msra.mxu0 0
        %1379 = vmatpush.bf16.msra.mxu0 0
        %1380 = vmatpush.bf16.msra.mxu0 %v1371
        %1381 = vmatmul.bf16.gmra.mxu0 %v1368
        %v1382 = vpop.f32.mrf.mxu0
        %v1383 = vadd.f32 0.0, %v1382
        %v1384 = vpop.f32.mrf.mxu0
        %1385 = vdwg.mxu0
        %v1387 = vsel %vm1280, %v1341, 0
        %v1390 = vsel %vm1350, %v1345, 0
        %1392 = vmatpush.bf16.msra.mxu0 0
        %1393 = vmatpush.bf16.msra.mxu0 0
        %1394 = vmatpush.bf16.msra.mxu0 0
        %1395 = vmatpush.bf16.msra.mxu0 0
        %1396 = vmatpush.bf16.msra.mxu0 0
        %1397 = vmatpush.bf16.msra.mxu0 0
        %1398 = vmatpush.bf16.msra.mxu0 0
        %1399 = vmatpush.bf16.msra.mxu0 %v1390
        %1400 = vmatmul.bf16.gmra.mxu0 %v1387
        %v1401 = vpop.f32.mrf.mxu0
        %v1402 = vadd.f32 0.0, %v1401
        %v1403 = vpop.f32.mrf.mxu0
        %1404 = vdwg.mxu0
        %v1406 = vsel %vm1280, %v1342, 0
        %v1409 = vsel %vm1350, %v1346, 0
        %1411 = vmatpush.bf16.msra.mxu0 0
        %1412 = vmatpush.bf16.msra.mxu0 0
        %1413 = vmatpush.bf16.msra.mxu0 0
        %1414 = vmatpush.bf16.msra.mxu0 0
        %1415 = vmatpush.bf16.msra.mxu0 0
        %1416 = vmatpush.bf16.msra.mxu0 0
        %1417 = vmatpush.bf16.msra.mxu0 0
        %1418 = vmatpush.bf16.msra.mxu0 %v1409
        %1419 = vmatmul.bf16.gmra.mxu0 %v1406
        %v1420 = vpop.f32.mrf.mxu0
        %v1421 = vadd.f32 0.0, %v1420
        %v1422 = vpop.f32.mrf.mxu0
        %1423 = vdwg.mxu0
        %v1424 = vpack.c.bf16 %v1364, %v1364
        %v1425 = vpack.c.bf16 %v1383, %v1383
        %v1426 = vpack.c.bf16 %v1402, %v1402
        %v1427 = vpack.c.bf16 %v1421, %v1421
        %v1428 = vld [vmem:[%s12] sm:$0xf]
        %v1429 = vld [vmem:[%s12 + $0x4] sm:$0xf]
        %v1430 = vld [vmem:[%s12 + $0x8] sm:$0xf]
        %v1431 = vld [vmem:[%s12 + $0xc] sm:$0xf]
        %v1432 = vld [vmem:[%s12 + $0x10] sm:$0xf]
        %v1433 = vld [vmem:[%s12 + $0x14] sm:$0xf]
        %v1434 = vld [vmem:[%s12 + $0x18] sm:$0xf]
        %v1435 = vld [vmem:[%s12 + $0x1c] sm:$0xf]
        %v1436 = vld [vmem:[%s12 + $0x20] sm:$0xf]
        %v1437 = vld [vmem:[%s12 + $0x24] sm:$0xf]
        %v1438 = vld [vmem:[%s12 + $0x28] sm:$0xf]
        %v1439 = vld [vmem:[%s12 + $0x2c] sm:$0xf]
        %v1440 = vld [vmem:[%s12 + $0x30] sm:$0xf]
        %v1441 = vld [vmem:[%s12 + $0x34] sm:$0xf]
        %v1442 = vld [vmem:[%s12 + $0x38] sm:$0xf]
        %v1443 = vld [vmem:[%s12 + $0x3c] sm:$0xf]
        %v1444 = vld [vmem:[%s12 + $0x40] sm:$0xf]
        %v1445 = vld [vmem:[%s12 + $0x44] sm:$0xf]
        %v1446 = vld [vmem:[%s12 + $0x48] sm:$0xf]
        %v1447 = vld [vmem:[%s12 + $0x4c] sm:$0xf]
        %v1448 = vld [vmem:[%s12 + $0x50] sm:$0xf]
        %v1449 = vld [vmem:[%s12 + $0x54] sm:$0xf]
        %v1450 = vld [vmem:[%s12 + $0x58] sm:$0xf]
        %v1451 = vld [vmem:[%s12 + $0x5c] sm:$0xf]
        %v1452 = vld [vmem:[%s12 + $0x60] sm:$0xf]
        %v1453 = vld [vmem:[%s12 + $0x64] sm:$0xf]
        %v1454 = vld [vmem:[%s12 + $0x68] sm:$0xf]
        %v1455 = vld [vmem:[%s12 + $0x6c] sm:$0xf]
        %v1456 = vld [vmem:[%s12 + $0x70] sm:$0xf]
        %v1457 = vld [vmem:[%s12 + $0x74] sm:$0xf]
        %v1458 = vld [vmem:[%s12 + $0x78] sm:$0xf]
        %v1459 = vld [vmem:[%s12 + $0x7c] sm:$0xf]
        %v1460 = vld [vmem:[%s12 + $0x80] sm:$0xf]
        %v1461 = vld [vmem:[%s12 + $0x84] sm:$0xf]
        %v1462 = vld [vmem:[%s12 + $0x88] sm:$0xf]
        %v1463 = vld [vmem:[%s12 + $0x8c] sm:$0xf]
        %v1464 = vld [vmem:[%s12 + $0x90] sm:$0xf]
        %v1465 = vld [vmem:[%s12 + $0x94] sm:$0xf]
        %v1466 = vld [vmem:[%s12 + $0x98] sm:$0xf]
        %v1467 = vld [vmem:[%s12 + $0x9c] sm:$0xf]
        %v1468 = vld [vmem:[%s12 + $0xa0] sm:$0xf]
        %v1469 = vld [vmem:[%s12 + $0xa4] sm:$0xf]
        %v1470 = vld [vmem:[%s12 + $0xa8] sm:$0xf]
        %v1471 = vld [vmem:[%s12 + $0xac] sm:$0xf]
        %v1472 = vld [vmem:[%s12 + $0xb0] sm:$0xf]
        %v1473 = vld [vmem:[%s12 + $0xb4] sm:$0xf]
        %v1474 = vld [vmem:[%s12 + $0xb8] sm:$0xf]
        %v1475 = vld [vmem:[%s12 + $0xbc] sm:$0xf]
        %v1476 = vld [vmem:[%s12 + $0xc0] sm:$0xf]
        %v1477 = vld [vmem:[%s12 + $0xc4] sm:$0xf]
        %v1478 = vld [vmem:[%s12 + $0xc8] sm:$0xf]
        %v1479 = vld [vmem:[%s12 + $0xcc] sm:$0xf]
        %v1480 = vld [vmem:[%s12 + $0xd0] sm:$0xf]
        %v1481 = vld [vmem:[%s12 + $0xd4] sm:$0xf]
        %v1482 = vld [vmem:[%s12 + $0xd8] sm:$0xf]
        %v1483 = vld [vmem:[%s12 + $0xdc] sm:$0xf]
        %v1484 = vld [vmem:[%s12 + $0xe0] sm:$0xf]
        %v1485 = vld [vmem:[%s12 + $0xe4] sm:$0xf]
        %v1486 = vld [vmem:[%s12 + $0xe8] sm:$0xf]
        %v1487 = vld [vmem:[%s12 + $0xec] sm:$0xf]
        %v1488 = vld [vmem:[%s12 + $0xf0] sm:$0xf]
        %v1489 = vld [vmem:[%s12 + $0xf4] sm:$0xf]
        %v1490 = vld [vmem:[%s12 + $0xf8] sm:$0xf]
        %v1491 = vld [vmem:[%s12 + $0xfc] sm:$0xf]
        %v1492 = vld [vmem:[%s13] sm:$0x1]
        %v1494 = vperm.slane %v1492, 0
        %v1560 = vunpack.c.l.b16 %v1428
        %v1561 = vunpack.c.l.b16 %v1429
        %v1562 = vunpack.c.l.b16 %v1430
        %v1563 = vunpack.c.l.b16 %v1431
        %v1564 = vunpack.c.l.b16 %v1432
        %v1565 = vunpack.c.l.b16 %v1433
        %v1566 = vunpack.c.l.b16 %v1434
        %v1567 = vunpack.c.l.b16 %v1435
        %v1568 = vunpack.c.l.b16 %v1436
        %v1569 = vunpack.c.l.b16 %v1437
        %v1570 = vunpack.c.l.b16 %v1438
        %v1571 = vunpack.c.l.b16 %v1439
        %v1572 = vunpack.c.l.b16 %v1440
        %v1573 = vunpack.c.l.b16 %v1441
        %v1574 = vunpack.c.l.b16 %v1442
        %v1575 = vunpack.c.l.b16 %v1443
        %v1576 = vunpack.c.l.b16 %v1444
        %v1577 = vunpack.c.l.b16 %v1445
        %v1578 = vunpack.c.l.b16 %v1446
        %v1579 = vunpack.c.l.b16 %v1447
        %v1580 = vunpack.c.l.b16 %v1448
        %v1581 = vunpack.c.l.b16 %v1449
        %v1582 = vunpack.c.l.b16 %v1450
        %v1583 = vunpack.c.l.b16 %v1451
        %v1584 = vunpack.c.l.b16 %v1452
        %v1585 = vunpack.c.l.b16 %v1453
        %v1586 = vunpack.c.l.b16 %v1454
        %v1587 = vunpack.c.l.b16 %v1455
        %v1588 = vunpack.c.l.b16 %v1456
        %v1589 = vunpack.c.l.b16 %v1457
        %v1590 = vunpack.c.l.b16 %v1458
        %v1591 = vunpack.c.l.b16 %v1459
        %v1592 = vunpack.c.l.b16 %v1460
        %v1593 = vunpack.c.l.b16 %v1461
        %v1594 = vunpack.c.l.b16 %v1462
        %v1595 = vunpack.c.l.b16 %v1463
        %v1596 = vunpack.c.l.b16 %v1464
        %v1597 = vunpack.c.l.b16 %v1465
        %v1598 = vunpack.c.l.b16 %v1466
        %v1599 = vunpack.c.l.b16 %v1467
        %v1600 = vunpack.c.l.b16 %v1468
        %v1601 = vunpack.c.l.b16 %v1469
        %v1602 = vunpack.c.l.b16 %v1470
        %v1603 = vunpack.c.l.b16 %v1471
        %v1604 = vunpack.c.l.b16 %v1472
        %v1605 = vunpack.c.l.b16 %v1473
        %v1606 = vunpack.c.l.b16 %v1474
        %v1607 = vunpack.c.l.b16 %v1475
        %v1608 = vunpack.c.l.b16 %v1476
        %v1609 = vunpack.c.l.b16 %v1477
        %v1610 = vunpack.c.l.b16 %v1478
        %v1611 = vunpack.c.l.b16 %v1479
        %v1612 = vunpack.c.l.b16 %v1480
        %v1613 = vunpack.c.l.b16 %v1481
        %v1614 = vunpack.c.l.b16 %v1482
        %v1615 = vunpack.c.l.b16 %v1483
        %v1616 = vunpack.c.l.b16 %v1484
        %v1617 = vunpack.c.l.b16 %v1485
        %v1618 = vunpack.c.l.b16 %v1486
        %v1619 = vunpack.c.l.b16 %v1487
        %v1620 = vunpack.c.l.b16 %v1488
        %v1621 = vunpack.c.l.b16 %v1489
        %v1622 = vunpack.c.l.b16 %v1490
        %v1623 = vunpack.c.l.b16 %v1491
        %v1624 = vpack.c.b16 %v1561, %v1560
        %v1625 = vpack.c.b16 %v1563, %v1562
        %v1626 = vpack.c.b16 %v1565, %v1564
        %v1627 = vpack.c.b16 %v1567, %v1566
        %v1628 = vpack.c.b16 %v1569, %v1568
        %v1629 = vpack.c.b16 %v1571, %v1570
        %v1630 = vpack.c.b16 %v1573, %v1572
        %v1631 = vpack.c.b16 %v1575, %v1574
        %v1632 = vpack.c.b16 %v1577, %v1576
        %v1633 = vpack.c.b16 %v1579, %v1578
        %v1634 = vpack.c.b16 %v1581, %v1580
        %v1635 = vpack.c.b16 %v1583, %v1582
        %v1636 = vpack.c.b16 %v1585, %v1584
        %v1637 = vpack.c.b16 %v1587, %v1586
        %v1638 = vpack.c.b16 %v1589, %v1588
        %v1639 = vpack.c.b16 %v1591, %v1590
        %v1640 = vpack.c.b16 %v1593, %v1592
        %v1641 = vpack.c.b16 %v1595, %v1594
        %v1642 = vpack.c.b16 %v1597, %v1596
        %v1643 = vpack.c.b16 %v1599, %v1598
        %v1644 = vpack.c.b16 %v1601, %v1600
        %v1645 = vpack.c.b16 %v1603, %v1602
        %v1646 = vpack.c.b16 %v1605, %v1604
        %v1647 = vpack.c.b16 %v1607, %v1606
        %v1648 = vpack.c.b16 %v1609, %v1608
        %v1649 = vpack.c.b16 %v1611, %v1610
        %v1650 = vpack.c.b16 %v1613, %v1612
        %v1651 = vpack.c.b16 %v1615, %v1614
        %v1652 = vpack.c.b16 %v1617, %v1616
        %v1653 = vpack.c.b16 %v1619, %v1618
        %v1654 = vpack.c.b16 %v1621, %v1620
        %v1655 = vpack.c.b16 %v1623, %v1622
        %1688 = vmatpush.bf16.msra.mxu0 %v1631
        %1689 = vmatpush.bf16.msra.mxu0 %v1630
        %1690 = vmatpush.bf16.msra.mxu0 %v1629
        %1691 = vmatpush.bf16.msra.mxu0 %v1628
        %1692 = vmatpush.bf16.msra.mxu0 %v1627
        %1693 = vmatpush.bf16.msra.mxu0 %v1626
        %1694 = vmatpush.bf16.msra.mxu0 %v1625
        %1695 = vmatpush.bf16.msra.mxu0 %v1624
        %1696 = vmatmul.bf16.gmra.mxu0 %v1424
        %v1697 = vpop.f32.mrf.mxu0
        %v1698 = vadd.f32 %v1494, %v1697
        %v1699 = vpop.f32.mrf.mxu0
        %1700 = vdwg.mxu0
        %1701 = vmatpush.bf16.msra.mxu0 %v1639
        %1702 = vmatpush.bf16.msra.mxu0 %v1638
        %1703 = vmatpush.bf16.msra.mxu0 %v1637
        %1704 = vmatpush.bf16.msra.mxu0 %v1636
        %1705 = vmatpush.bf16.msra.mxu0 %v1635
        %1706 = vmatpush.bf16.msra.mxu0 %v1634
        %1707 = vmatpush.bf16.msra.mxu0 %v1633
        %1708 = vmatpush.bf16.msra.mxu0 %v1632
        %1709 = vmatmul.bf16.gmra.mxu0 %v1425
        %v1710 = vpop.f32.mrf.mxu0
        %v1711 = vadd.f32 %v1698, %v1710
        %v1712 = vpop.f32.mrf.mxu0
        %1713 = vdwg.mxu0
        %1714 = vmatpush.bf16.msra.mxu0 %v1647
        %1715 = vmatpush.bf16.msra.mxu0 %v1646
        %1716 = vmatpush.bf16.msra.mxu0 %v1645
        %1717 = vmatpush.bf16.msra.mxu0 %v1644
        %1718 = vmatpush.bf16.msra.mxu0 %v1643
        %1719 = vmatpush.bf16.msra.mxu0 %v1642
        %1720 = vmatpush.bf16.msra.mxu0 %v1641
        %1721 = vmatpush.bf16.msra.mxu0 %v1640
        %1722 = vmatmul.bf16.gmra.mxu0 %v1426
        %v1723 = vpop.f32.mrf.mxu0
        %v1724 = vadd.f32 %v1711, %v1723
        %v1725 = vpop.f32.mrf.mxu0
        %1726 = vdwg.mxu0
        %1727 = vmatpush.bf16.msra.mxu0 %v1655
        %1728 = vmatpush.bf16.msra.mxu0 %v1654
        %1729 = vmatpush.bf16.msra.mxu0 %v1653
        %1730 = vmatpush.bf16.msra.mxu0 %v1652
        %1731 = vmatpush.bf16.msra.mxu0 %v1651
        %1732 = vmatpush.bf16.msra.mxu0 %v1650
        %1733 = vmatpush.bf16.msra.mxu0 %v1649
        %1734 = vmatpush.bf16.msra.mxu0 %v1648
        %1735 = vmatmul.bf16.gmra.mxu0 %v1427
        %v1736 = vpop.f32.mrf.mxu0
        %v1737 = vadd.f32 %v1724, %v1736
        %v1738 = vpop.f32.mrf.mxu0
        %1739 = vdwg.mxu0
        %v1740 = vadd.f32 %v1737, %v1096
        %v1741 = vld [vmem:[%s14] sm:$0x1]
        %v1742 = vld [vmem:[%s15] sm:$0x1]
        %v1743 = vsel %vm1059, %v1740, 0.0
        %1744 = vadd.xlane.f32.xlu0 %v1743
        %v1745 = vpop.xlane.xlu0 %1744
        %v1746 = vmul.f32 %v1745, %v1069
        %v1747 = vsub.f32 %v1740, %v1746
        %v1748 = vmul.f32 %v1747, %v1747
        %v1749 = vsel %vm1059, %v1748, 0.0
        %1750 = vadd.xlane.f32.xlu0 %v1749
        %v1751 = vpop.xlane.xlu0 %1750
        %v1752 = vmul.f32 %v1751, %v1069
        %v1753 = vadd.f32 %v1752, 1e-06
        %v1754 = vrsqrt.pop %v1753
        %v1755 = vmul.f32 %v1754, %v1753
        %v1756 = vmul.f32 %v1755, %v1754
        %v1757 = vmul.f32 0.5, %v1756
        %v1758 = vsub.f32 1.5, %v1757
        %v1759 = vmul.f32 %v1754, %v1758
        %vm1760 = vweird.f32 %v1753
        %vm1761 = vweird.f32 %v1754
        %vm1762 = vmor %vm1760, %vm1761
        %v1763 = vsel %vm1762, %v1754, %v1759
        %v1764 = vmul.f32 %v1747, %v1763
        %v1766 = vperm.slane %v1741, 0
        %v1768 = vmul.f32 %v1764, %v1766
        %v1770 = vperm.slane %v1742, 0
        %v1772 = vadd.f32 %v1768, %v1770
        %v1773 = vpack.c.bf16 %v1772, %v1772
        %v1774 = vld [vmem:[%s16] sm:$0xf]
        %v1775 = vld [vmem:[%s16 + $0x4] sm:$0xf]
        %v1776 = vld [vmem:[%s16 + $0x8] sm:$0xf]
        %v1777 = vld [vmem:[%s16 + $0xc] sm:$0xf]
        %v1778 = vld [vmem:[%s17] sm:$0x1]
        %v1780 = vperm.slane %v1778, 0
        %v1786 = vunpack.c.l.b16 %v1774
        %v1787 = vunpack.c.l.b16 %v1775
        %v1788 = vunpack.c.l.b16 %v1776
        %v1789 = vunpack.c.l.b16 %v1777
        %v1790 = vpack.c.b16 %v1787, %v1786
        %v1791 = vpack.c.b16 %v1789, %v1788
        %v1795 = vsel %vm1059, %v1773, 0
        %1797 = vmatpush.bf16.msra.mxu0 0
        %1798 = vmatpush.bf16.msra.mxu0 0
        %1799 = vmatpush.bf16.msra.mxu0 0
        %1800 = vmatpush.bf16.msra.mxu0 0
        %1801 = vmatpush.bf16.msra.mxu0 0
        %1802 = vmatpush.bf16.msra.mxu0 0
        %1803 = vmatpush.bf16.msra.mxu0 %v1791
        %1804 = vmatpush.bf16.msra.mxu0 %v1790
        %1805 = vmatmul.bf16.gmra.mxu0 %v1795
        %v1806 = vpop.f32.mrf.mxu0
        %v1807 = vadd.f32 %v1780, %v1806
        %v1808 = vpop.f32.mrf.mxu0
        %1809 = vdwg.mxu0
        %v1810 = vmax.f32 %v1807, 0.0
        %v1811 = vpack.c.bf16 %v1810, %v1810
        %v1812 = vld [vmem:[%s18] sm:$0xf]
        %v1813 = vld [vmem:[%s18 + $0x4] sm:$0xf]
        %v1814 = vld [vmem:[%s18 + $0x8] sm:$0xf]
        %v1815 = vld [vmem:[%s18 + $0xc] sm:$0xf]
        %v1816 = vld [vmem:[%s18 + $0x10] sm:$0xf]
        %v1817 = vld [vmem:[%s18 + $0x14] sm:$0xf]
        %v1818 = vld [vmem:[%s18 + $0x18] sm:$0xf]
        %v1819 = vld [vmem:[%s18 + $0x1c] sm:$0xf]
        %v1820 = vld [vmem:[%s19] sm:$0x1]
        %v1822 = vperm.slane %v1820, 0
        %v1832 = vunpack.c.l.b16 %v1812
        %v1833 = vunpack.c.l.b16 %v1813
        %v1834 = vunpack.c.l.b16 %v1814
        %v1835 = vunpack.c.l.b16 %v1815
        %v1836 = vunpack.c.l.b16 %v1816
        %v1837 = vunpack.c.l.b16 %v1817
        %v1838 = vunpack.c.l.b16 %v1818
        %v1839 = vunpack.c.l.b16 %v1819
        %v1840 = vpack.c.b16 %v1833, %v1832
        %v1841 = vpack.c.b16 %v1835, %v1834
        %v1842 = vpack.c.b16 %v1837, %v1836
        %v1843 = vpack.c.b16 %v1839, %v1838
        %vm1848 = vcmask 523264
        %v1850 = vsel %vm1848, %v1811, 0
        %1852 = vmatpush.bf16.msra.mxu0 0
        %1853 = vmatpush.bf16.msra.mxu0 0
        %1854 = vmatpush.bf16.msra.mxu0 0
        %1855 = vmatpush.bf16.msra.mxu0 0
        %1856 = vmatpush.bf16.msra.mxu0 %v1843
        %1857 = vmatpush.bf16.msra.mxu0 %v1842
        %1858 = vmatpush.bf16.msra.mxu0 %v1841
        %1859 = vmatpush.bf16.msra.mxu0 %v1840
        %1860 = vmatmul.bf16.gmra.mxu0 %v1850
        %v1861 = vpop.f32.mrf.mxu0
        %v1862 = vadd.f32 %v1822, %v1861
        %v1863 = vpop.f32.mrf.mxu0
        %1864 = vdwg.mxu0
        %v1865 = vadd.f32 %v1862, %v1740
        %1866 = vst.msk [vmem:[%s712] sm:$0xff] %vm1059, %v1865
        %s1867 = sand.u32 %s503, 1
        %s1868 = scalar_lea.sflag [#allocation5], %s1867
        %s1869 = sand.u32 %s503, 1
        %s1870 = smul.addr %s1869, 8
        %s1871 = scalar_lea.vmem [#allocation4], %s1870
        %s1872 = sand.u32 %s531, 1
        %s1873 = scalar_lea.sflag [#allocation7], %s1872
        %s1874 = sand.u32 %s531, 1
        %s1875 = smul.addr %s1874, 4
        %s1876 = scalar_lea.vmem [#allocation6], %s1875
        // Predicated region
        $region105: #{tpu_custom_call.1} parent=99 // pred_check
          %p1877 = pneg %p513
        $region106: #{tpu_custom_call.1} parent=99 // pred_check_branch
          %1879 = sbr.rel (%p1877) target = $region108
        $region107: #{tpu_custom_call.1} parent=99 // pred_region
          %1881 = vsyncadd %s1868, 0
          %s1882 = sadd.s32 %s44, %s43
          %s1883 = smul.addr %s1882, 8
          %s1884 = scalar_lea.hbm %s20, %s1883
          %s1886 = sshll.u32 %s1871, 4
          %s1887 = int_to_ptr.vmem [resolvable:$true] %s1886
          %s1888 = sshll.u32 %s1884, 4
          %s1889 = int_to_ptr.hbm [resolvable:$true] %s1888
          %1891 = dma.vmem_to_hbm [thread:$0]  %s1887, 128, %s1889, %s1868
        $region108: #{tpu_custom_call.1} parent=99 // pred_fallthru
          _
        // Predicated region
        $region109: #{tpu_custom_call.1} parent=99 // pred_check
          %p1892 = pneg %p541
        $region110: #{tpu_custom_call.1} parent=99 // pred_check_branch
          %1894 = sbr.rel (%p1892) target = $region112
        $region111: #{tpu_custom_call.1} parent=99 // pred_region
          %1896 = vsyncadd %s1873, 0
          %s1897 = sadd.s32 %s44, %s43
          %s1898 = smul.addr %s1897, 4
          %s1899 = scalar_lea.hbm %s21, %s1898
          %s1901 = sshll.u32 %s1876, 4
          %s1902 = int_to_ptr.vmem [resolvable:$true] %s1901
          %s1903 = sshll.u32 %s1899, 4
          %s1904 = int_to_ptr.hbm [resolvable:$true] %s1903
          %1906 = dma.vmem_to_hbm [thread:$0]  %s1902, 64, %s1904, %s1873
        $region112: #{tpu_custom_call.1} parent=99 // pred_fallthru
          _
      $region100: #{tpu_custom_call.1} parent=5 // pred_fallthru
        _
      %p1907 = scmp.le.s32.totalorder 2, %s34
      // Predicated region
      $region113: #{tpu_custom_call.1} parent=5 // pred_check
        %p1908 = pneg %p1907
      $region114: #{tpu_custom_call.1} parent=5 // pred_check_branch
        %1910 = sbr.rel (%p1908) target = $region116
      $region115: #{tpu_custom_call.1} parent=5 // pred_region
        %s1911 = ssub.s32 %s34, 2
        // Predicated region
        $region117: #{tpu_custom_call.1} parent=115 // pred_check
          %p1912 = pneg %p519
        $region118: #{tpu_custom_call.1} parent=115 // pred_check_branch
          %1914 = sbr.rel (%p1912) target = $region120
        $region119: #{tpu_custom_call.1} parent=115 // pred_region
          %s1915 = sand.u32 %s504, 1
          %s1916 = scalar_lea.sflag [#allocation5], %s1915
          %s1917 = sand.u32 %s504, 1
          %s1918 = smul.addr %s1917, 8
          %s1919 = scalar_lea.vmem [#allocation4], %s1918
          %1921 = dma.done %s1916, 128
        $region120: #{tpu_custom_call.1} parent=115 // pred_fallthru
          _
        // Predicated region
        $region121: #{tpu_custom_call.1} parent=115 // pred_check
          %p1922 = pneg %p547
        $region122: #{tpu_custom_call.1} parent=115 // pred_check_branch
          %1924 = sbr.rel (%p1922) target = $region124
        $region123: #{tpu_custom_call.1} parent=115 // pred_region
          %s1925 = sand.u32 %s532, 1
          %s1926 = scalar_lea.sflag [#allocation7], %s1925
          %s1927 = sand.u32 %s532, 1
          %s1928 = smul.addr %s1927, 4
          %s1929 = scalar_lea.vmem [#allocation6], %s1928
          %1931 = dma.done %s1926, 64
        $region124: #{tpu_custom_call.1} parent=115 // pred_fallthru
          _
      $region116: #{tpu_custom_call.1} parent=5 // pred_fallthru
        _
    $region6: #{tpu_custom_call.1} parent=1 // loop_footer
      %s38 = sadd.s32 1, %s34
    $region7: #{tpu_custom_call.1} parent=1 // loop_footer_branch
      %33 = sbr.rel target = $region3
    $region8: #{tpu_custom_call.1} parent=1 // loop_exit
      _
    %1932 = vsyncpa [#allocation5], 1
    %s1933 = scalar_lea.sflag [#allocation5], 1
    %1934 = vsyncpa %s1933, 1
    %1935 = vsyncpa [#allocation7], 1
    %s1936 = scalar_lea.sflag [#allocation7], 1
    %1937 = vsyncpa %s1936, 1

// kernel: tpu_custom_call.1
$region0: #{tpu_custom_call.1}
  #allocation0 [shape = 'u32[]', space=smem, size = 0x4, offset = 0x4, fixed_abs, tag = 'smem constant byte address 0x4 - core index']
  #allocation1 [shape = 'u32[72,128]{1,0:T(1,128)}', space=vmem, size = 0x9000, scoped, tag = 'internal scratch']
  #allocation2 [shape = 'bf16[4,8,128]{2,1,0:T(8,128)(2,1)}', space=vmem, size = 0x2000, scoped, tag = 'scratch operand']
  #allocation3 [shape = 'bf16[4,8,128]{2,1,0:T(8,128)(2,1)}', space=vmem, size = 0x2000, scoped, tag = 'scratch operand']
  %s0 = inlined_call_operand.vmem [shape: bf16[2,8,32], index: 0, kind: input, shape index: {}]
  %s1 = inlined_call_operand.vmem [shape: bf16[2,8,32], index: 1, kind: input, shape index: {}]
  %s2 = inlined_call_operand.vmem [shape: bf16[2,8,32], index: 2, kind: input, shape index: {}]
  %s3 = inlined_call_operand.vmem [shape: f32[2,1,8], index: 3, kind: input, shape index: {}]
  %s4 = inlined_call_operand.vmem [shape: f32[1,32], index: 4, kind: input, shape index: {}]
  %s5 = inlined_call_operand.vmem [shape: f32[1,32], index: 5, kind: input, shape index: {}]
  %s6 = inlined_call_operand.vmem [shape: bf16[32,512], index: 6, kind: input, shape index: {}]
  %s7 = inlined_call_operand.vmem [shape: f32[1,512], index: 7, kind: input, shape index: {}]
  %s8 = inlined_call_operand.vmem [shape: bf16[32,512], index: 8, kind: input, shape index: {}]
  %s9 = inlined_call_operand.vmem [shape: f32[1,512], index: 9, kind: input, shape index: {}]
  %s10 = inlined_call_operand.vmem [shape: bf16[32,512], index: 10, kind: input, shape index: {}]
  %s11 = inlined_call_operand.vmem [shape: f32[1,512], index: 11, kind: input, shape index: {}]
  %s12 = inlined_call_operand.vmem [shape: bf16[512,32], index: 12, kind: input, shape index: {}]
  %s13 = inlined_call_operand.vmem [shape: f32[1,32], index: 13, kind: input, shape index: {}]
  %s14 = inlined_call_operand.vmem [shape: f32[1,32], index: 14, kind: input, shape index: {}]
  %s15 = inlined_call_operand.vmem [shape: f32[1,32], index: 15, kind: input, shape index: {}]
  %s16 = inlined_call_operand.vmem [shape: bf16[32,64], index: 16, kind: input, shape index: {}]
  %s17 = inlined_call_operand.vmem [shape: f32[1,64], index: 17, kind: input, shape index: {}]
  %s18 = inlined_call_operand.vmem [shape: bf16[64,32], index: 18, kind: input, shape index: {}]
  %s19 = inlined_call_operand.vmem [shape: f32[1,32], index: 19, kind: input, shape index: {}]
  %s20 = inlined_call_operand.hbm [shape: f32[2,8,32], index: 20, kind: output, shape index: {0}]
  %s21 = inlined_call_operand.hbm [shape: bf16[2,8,8], index: 21, kind: output, shape index: {1}]
  %22 = xla_tuple %s20, %s21
  %s23 = sld [smem:[#allocation0]]
  $region125: #{tpu_custom_call.1} parent=0
    _
  %s25 = ssub.s32 1, %s23
  %s26 = scalar_select 0, %s25, %s23
  $region1: #{tpu_custom_call.1} parent=0
    #allocation4 [shape = 'u8[8192]{0}', space=vmem, size = 0x2000, scoped, tag = 'output window, operand 0']
    #allocation5 [shape = 's32[2]{0}', space=sflag, size = 0x8, scoped, tag = 'scoped memory for tpu_custom_call.1']
    #allocation6 [shape = 'u8[4096]{0}', space=vmem, size = 0x1000, scoped, tag = 'output window, operand 1']
    #allocation7 [shape = 's32[2]{0}', space=sflag, size = 0x8, scoped, tag = 'scoped memory for tpu_custom_call.1']
    %27 = vsyncpa [#allocation5], 0
    %s28 = scalar_lea.sflag [#allocation5], 1
    %29 = vsyncpa %s28, 0
    %30 = vsyncpa [#allocation7], 0
    %s31 = scalar_lea.sflag [#allocation7], 1
    %32 = vsyncpa %s31, 0
    loop: start=0, step=1, limit=4
    $region2: #{tpu_custom_call.1} parent=1 // loop_pre_header
      _
    $region3: #{tpu_custom_call.1} parent=1 // loop_header
      %s34 = sphi 0, %s38
      %p35 = scmp.ge.s32.totalorder %s34, 4
      %s41 = sphi 0, %s53
      %s42 = sphi 0, %s49
      %s43 = sphi 0, %s41
      %s44 = sphi 0, %s42
      %s45 = sphi 0, %s43
      %s46 = sphi 0, %s44
      %s56 = sphi 0, %s58
      %s59 = sphi 0, %s56
      %s60 = sphi 0, %s59
      %s76 = sphi 0, %s60
      %s82 = sphi 0, %s84
      %s85 = sphi 0, %s82
      %s86 = sphi 0, %s85
      %s102 = sphi 0, %s86
      %s110 = sphi 0, %s112
      %s113 = sphi 0, %s110
      %s114 = sphi 0, %s113
      %s130 = sphi 0, %s114
      %s136 = sphi 0, %s138
      %s139 = sphi 0, %s136
      %s140 = sphi 0, %s139
      %s156 = sphi 0, %s140
      %s160 = sphi 0, %s160
      %s162 = sphi 0, %s160
      %s163 = sphi 0, %s162
      %s177 = sphi 0, %s163
      %s181 = sphi 0, %s181
      %s183 = sphi 0, %s181
      %s184 = sphi 0, %s183
      %s198 = sphi 0, %s184
      %s202 = sphi 0, %s202
      %s204 = sphi 0, %s202
      %s205 = sphi 0, %s204
      %s219 = sphi 0, %s205
      %s223 = sphi 0, %s223
      %s225 = sphi 0, %s223
      %s226 = sphi 0, %s225
      %s240 = sphi 0, %s226
      %s244 = sphi 0, %s244
      %s246 = sphi 0, %s244
      %s247 = sphi 0, %s246
      %s261 = sphi 0, %s247
      %s265 = sphi 0, %s265
      %s267 = sphi 0, %s265
      %s268 = sphi 0, %s267
      %s282 = sphi 0, %s268
      %s286 = sphi 0, %s286
      %s288 = sphi 0, %s286
      %s289 = sphi 0, %s288
      %s303 = sphi 0, %s289
      %s307 = sphi 0, %s307
      %s309 = sphi 0, %s307
      %s310 = sphi 0, %s309
      %s324 = sphi 0, %s310
      %s328 = sphi 0, %s328
      %s330 = sphi 0, %s328
      %s331 = sphi 0, %s330
      %s345 = sphi 0, %s331
      %s349 = sphi 0, %s349
      %s351 = sphi 0, %s349
      %s352 = sphi 0, %s351
      %s366 = sphi 0, %s352
      %s370 = sphi 0, %s370
      %s372 = sphi 0, %s370
      %s373 = sphi 0, %s372
      %s387 = sphi 0, %s373
      %s391 = sphi 0, %s391
      %s393 = sphi 0, %s391
      %s394 = sphi 0, %s393
      %s408 = sphi 0, %s394
      %s412 = sphi 0, %s412
      %s414 = sphi 0, %s412
      %s415 = sphi 0, %s414
      %s429 = sphi 0, %s415
      %s433 = sphi 0, %s433
      %s435 = sphi 0, %s433
      %s436 = sphi 0, %s435
      %s450 = sphi 0, %s436
      %s454 = sphi 0, %s454
      %s456 = sphi 0, %s454
      %s457 = sphi 0, %s456
      %s471 = sphi 0, %s457
      %s475 = sphi 0, %s475
      %s477 = sphi 0, %s475
      %s478 = sphi 0, %s477
      %s492 = sphi 0, %s478
      %s500 = sphi 0, %s502
      %s503 = sphi 0, %s500
      %s504 = sphi 0, %s503
      %s520 = sphi 0, %s504
      %s528 = sphi 0, %s530
      %s531 = sphi 0, %s528
      %s532 = sphi 0, %s531
      %s548 = sphi 0, %s532
    $region4: #{tpu_custom_call.1} parent=1 // loop_header_branch
      %37 = sbr.rel (%p35) target = $region8
    $region5: #{tpu_custom_call.1} parent=1 // loop_body
      %s39 = ssub.s32 %s34, 1
      %s40 = ssub.s32 %s34, 2
      %s47 = sadd.s32 1, %s42
      %p48 = scmp.ge.s32.totalorder %s47, 1
      %s49 = scalar_select %p48, 0, %s47
      %s50 = sadd.s32 1, %s41
      %s51 = scalar_select %p48, %s50, %s41
      %p52 = scmp.ge.s32.totalorder %s51, 2
      %s53 = scalar_select %p52, 0, %s51
      %s54 = ssub.s32 %s41, %s53
      %p55 = scmp.eq.s32.totalorder %s54, 0
      %s57 = sadd.s32 %s56, 1
      %s58 = scalar_select %p55, %s56, %s57
      %p61 = pneg %p55
      %p62 = scmp.eq.s32.totalorder %s34, 1
      %p63 = por %p61, %p62
      %p64 = scmp.ne.s32.totalorder %s56, %s59
      %p65 = scmp.eq.s32.totalorder %s34, 0
      %p66 = por %p64, %p65
      %p67 = scmp.ne.s32.totalorder %s56, %s59
      %p68 = scmp.eq.s32.totalorder %s39, 1
      %p69 = por %p67, %p68
      %p70 = scmp.ne.s32.totalorder %s59, %s60
      %p71 = scmp.eq.s32.totalorder %s39, 0
      %p72 = por %p70, %p71
      %p73 = scmp.ne.s32.totalorder %s59, %s60
      %p74 = scmp.eq.s32.totalorder %s40, 1
      %p75 = por %p73, %p74
      %p77 = scmp.ne.s32.totalorder %s60, %s76
      %p78 = scmp.eq.s32.totalorder %s40, 0
      %p79 = por %p77, %p78
      %s80 = ssub.s32 %s41, %s53
      %p81 = scmp.eq.s32.totalorder %s80, 0
      %s83 = sadd.s32 %s82, 1
      %s84 = scalar_select %p81, %s82, %s83
      %p87 = pneg %p81
      %p88 = scmp.eq.s32.totalorder %s34, 1
      %p89 = por %p87, %p88
      %p90 = scmp.ne.s32.totalorder %s82, %s85
      %p91 = scmp.eq.s32.totalorder %s34, 0
      %p92 = por %p90, %p91
      %p93 = scmp.ne.s32.totalorder %s82, %s85
      %p94 = scmp.eq.s32.totalorder %s39, 1
      %p95 = por %p93, %p94
      %p96 = scmp.ne.s32.totalorder %s85, %s86
      %p97 = scmp.eq.s32.totalorder %s39, 0
      %p98 = por %p96, %p97
      %p99 = scmp.ne.s32.totalorder %s85, %s86
      %p100 = scmp.eq.s32.totalorder %s40, 1
      %p101 = por %p99, %p100
      %p103 = scmp.ne.s32.totalorder %s86, %s102
      %p104 = scmp.eq.s32.totalorder %s40, 0
      %p105 = por %p103, %p104
      %s106 = ssub.s32 %s41, %s53
      %s107 = ssub.s32 %s42, %s49
      %s108 = sor.u32 %s106, %s107
      %p109 = scmp.eq.s32.totalorder %s108, 0
      %s111 = sadd.s32 %s110, 1
      %s112 = scalar_select %p109, %s110, %s111
      %p115 = pneg %p109
      %p116 = scmp.eq.s32.totalorder %s34, 1
      %p117 = por %p115, %p116
      %p118 = scmp.ne.s32.totalorder %s110, %s113
      %p119 = scmp.eq.s32.totalorder %s34, 0
      %p120 = por %p118, %p119
      %p121 = scmp.ne.s32.totalorder %s110, %s113
      %p122 = scmp.eq.s32.totalorder %s39, 1
      %p123 = por %p121, %p122
      %p124 = scmp.ne.s32.totalorder %s113, %s114
      %p125 = scmp.eq.s32.totalorder %s39, 0
      %p126 = por %p124, %p125
      %p127 = scmp.ne.s32.totalorder %s113, %s114
      %p128 = scmp.eq.s32.totalorder %s40, 1
      %p129 = por %p127, %p128
      %p131 = scmp.ne.s32.totalorder %s114, %s130
      %p132 = scmp.eq.s32.totalorder %s40, 0
      %p133 = por %p131, %p132
      %s134 = ssub.s32 %s41, %s53
      %p135 = scmp.eq.s32.totalorder %s134, 0
      %s137 = sadd.s32 %s136, 1
      %s138 = scalar_select %p135, %s136, %s137
      %p141 = pneg %p135
      %p142 = scmp.eq.s32.totalorder %s34, 1
      %p143 = por %p141, %p142
      %p144 = scmp.ne.s32.totalorder %s136, %s139
      %p145 = scmp.eq.s32.totalorder %s34, 0
      %p146 = por %p144, %p145
      %p147 = scmp.ne.s32.totalorder %s136, %s139
      %p148 = scmp.eq.s32.totalorder %s39, 1
      %p149 = por %p147, %p148
      %p150 = scmp.ne.s32.totalorder %s139, %s140
      %p151 = scmp.eq.s32.totalorder %s39, 0
      %p152 = por %p150, %p151
      %p153 = scmp.ne.s32.totalorder %s139, %s140
      %p154 = scmp.eq.s32.totalorder %s40, 1
      %p155 = por %p153, %p154
      %p157 = scmp.ne.s32.totalorder %s140, %s156
      %p158 = scmp.eq.s32.totalorder %s40, 0
      %p159 = por %p157, %p158
      %s161 = sadd.s32 %s160, 1
      %p164 = scmp.eq.s32.totalorder %s34, 1
      %p165 = scmp.ne.s32.totalorder %s160, %s162
      %p166 = scmp.eq.s32.totalorder %s34, 0
      %p167 = por %p165, %p166
      %p168 = scmp.ne.s32.totalorder %s160, %s162
      %p169 = scmp.eq.s32.totalorder %s39, 1
      %p170 = por %p168, %p169
      %p171 = scmp.ne.s32.totalorder %s162, %s163
      %p172 = scmp.eq.s32.totalorder %s39, 0
      %p173 = por %p171, %p172
      %p174 = scmp.ne.s32.totalorder %s162, %s163
      %p175 = scmp.eq.s32.totalorder %s40, 1
      %p176 = por %p174, %p175
      %p178 = scmp.ne.s32.totalorder %s163, %s177
      %p179 = scmp.eq.s32.totalorder %s40, 0
      %p180 = por %p178, %p179
      %s182 = sadd.s32 %s181, 1
      %p185 = scmp.eq.s32.totalorder %s34, 1
      %p186 = scmp.ne.s32.totalorder %s181, %s183
      %p187 = scmp.eq.s32.totalorder %s34, 0
      %p188 = por %p186, %p187
      %p189 = scmp.ne.s32.totalorder %s181, %s183
      %p190 = scmp.eq.s32.totalorder %s39, 1
      %p191 = por %p189, %p190
      %p192 = scmp.ne.s32.totalorder %s183, %s184
      %p193 = scmp.eq.s32.totalorder %s39, 0
      %p194 = por %p192, %p193
      %p195 = scmp.ne.s32.totalorder %s183, %s184
      %p196 = scmp.eq.s32.totalorder %s40, 1
      %p197 = por %p195, %p196
      %p199 = scmp.ne.s32.totalorder %s184, %s198
      %p200 = scmp.eq.s32.totalorder %s40, 0
      %p201 = por %p199, %p200
      %s203 = sadd.s32 %s202, 1
      %p206 = scmp.eq.s32.totalorder %s34, 1
      %p207 = scmp.ne.s32.totalorder %s202, %s204
      %p208 = scmp.eq.s32.totalorder %s34, 0
      %p209 = por %p207, %p208
      %p210 = scmp.ne.s32.totalorder %s202, %s204
      %p211 = scmp.eq.s32.totalorder %s39, 1
      %p212 = por %p210, %p211
      %p213 = scmp.ne.s32.totalorder %s204, %s205
      %p214 = scmp.eq.s32.totalorder %s39, 0
      %p215 = por %p213, %p214
      %p216 = scmp.ne.s32.totalorder %s204, %s205
      %p217 = scmp.eq.s32.totalorder %s40, 1
      %p218 = por %p216, %p217
      %p220 = scmp.ne.s32.totalorder %s205, %s219
      %p221 = scmp.eq.s32.totalorder %s40, 0
      %p222 = por %p220, %p221
      %s224 = sadd.s32 %s223, 1
      %p227 = scmp.eq.s32.totalorder %s34, 1
      %p228 = scmp.ne.s32.totalorder %s223, %s225
      %p229 = scmp.eq.s32.totalorder %s34, 0
      %p230 = por %p228, %p229
      %p231 = scmp.ne.s32.totalorder %s223, %s225
      %p232 = scmp.eq.s32.totalorder %s39, 1
      %p233 = por %p231, %p232
      %p234 = scmp.ne.s32.totalorder %s225, %s226
      %p235 = scmp.eq.s32.totalorder %s39, 0
      %p236 = por %p234, %p235
      %p237 = scmp.ne.s32.totalorder %s225, %s226
      %p238 = scmp.eq.s32.totalorder %s40, 1
      %p239 = por %p237, %p238
      %p241 = scmp.ne.s32.totalorder %s226, %s240
      %p242 = scmp.eq.s32.totalorder %s40, 0
      %p243 = por %p241, %p242
      %s245 = sadd.s32 %s244, 1
      %p248 = scmp.eq.s32.totalorder %s34, 1
      %p249 = scmp.ne.s32.totalorder %s244, %s246
      %p250 = scmp.eq.s32.totalorder %s34, 0
      %p251 = por %p249, %p250
      %p252 = scmp.ne.s32.totalorder %s244, %s246
      %p253 = scmp.eq.s32.totalorder %s39, 1
      %p254 = por %p252, %p253
      %p255 = scmp.ne.s32.totalorder %s246, %s247
      %p256 = scmp.eq.s32.totalorder %s39, 0
      %p257 = por %p255, %p256
      %p258 = scmp.ne.s32.totalorder %s246, %s247
      %p259 = scmp.eq.s32.totalorder %s40, 1
      %p260 = por %p258, %p259
      %p262 = scmp.ne.s32.totalorder %s247, %s261
      %p263 = scmp.eq.s32.totalorder %s40, 0
      %p264 = por %p262, %p263
      %s266 = sadd.s32 %s265, 1
      %p269 = scmp.eq.s32.totalorder %s34, 1
      %p270 = scmp.ne.s32.totalorder %s265, %s267
      %p271 = scmp.eq.s32.totalorder %s34, 0
      %p272 = por %p270, %p271
      %p273 = scmp.ne.s32.totalorder %s265, %s267
      %p274 = scmp.eq.s32.totalorder %s39, 1
      %p275 = por %p273, %p274
      %p276 = scmp.ne.s32.totalorder %s267, %s268
      %p277 = scmp.eq.s32.totalorder %s39, 0
      %p278 = por %p276, %p277
      %p279 = scmp.ne.s32.totalorder %s267, %s268
      %p280 = scmp.eq.s32.totalorder %s40, 1
      %p281 = por %p279, %p280
      %p283 = scmp.ne.s32.totalorder %s268, %s282
      %p284 = scmp.eq.s32.totalorder %s40, 0
      %p285 = por %p283, %p284
      %s287 = sadd.s32 %s286, 1
      %p290 = scmp.eq.s32.totalorder %s34, 1
      %p291 = scmp.ne.s32.totalorder %s286, %s288
      %p292 = scmp.eq.s32.totalorder %s34, 0
      %p293 = por %p291, %p292
      %p294 = scmp.ne.s32.totalorder %s286, %s288
      %p295 = scmp.eq.s32.totalorder %s39, 1
      %p296 = por %p294, %p295
      %p297 = scmp.ne.s32.totalorder %s288, %s289
      %p298 = scmp.eq.s32.totalorder %s39, 0
      %p299 = por %p297, %p298
      %p300 = scmp.ne.s32.totalorder %s288, %s289
      %p301 = scmp.eq.s32.totalorder %s40, 1
      %p302 = por %p300, %p301
      %p304 = scmp.ne.s32.totalorder %s289, %s303
      %p305 = scmp.eq.s32.totalorder %s40, 0
      %p306 = por %p304, %p305
      %s308 = sadd.s32 %s307, 1
      %p311 = scmp.eq.s32.totalorder %s34, 1
      %p312 = scmp.ne.s32.totalorder %s307, %s309
      %p313 = scmp.eq.s32.totalorder %s34, 0
      %p314 = por %p312, %p313
      %p315 = scmp.ne.s32.totalorder %s307, %s309
      %p316 = scmp.eq.s32.totalorder %s39, 1
      %p317 = por %p315, %p316
      %p318 = scmp.ne.s32.totalorder %s309, %s310
      %p319 = scmp.eq.s32.totalorder %s39, 0
      %p320 = por %p318, %p319
      %p321 = scmp.ne.s32.totalorder %s309, %s310
      %p322 = scmp.eq.s32.totalorder %s40, 1
      %p323 = por %p321, %p322
      %p325 = scmp.ne.s32.totalorder %s310, %s324
      %p326 = scmp.eq.s32.totalorder %s40, 0
      %p327 = por %p325, %p326
      %s329 = sadd.s32 %s328, 1
      %p332 = scmp.eq.s32.totalorder %s34, 1
      %p333 = scmp.ne.s32.totalorder %s328, %s330
      %p334 = scmp.eq.s32.totalorder %s34, 0
      %p335 = por %p333, %p334
      %p336 = scmp.ne.s32.totalorder %s328, %s330
      %p337 = scmp.eq.s32.totalorder %s39, 1
      %p338 = por %p336, %p337
      %p339 = scmp.ne.s32.totalorder %s330, %s331
      %p340 = scmp.eq.s32.totalorder %s39, 0
      %p341 = por %p339, %p340
      %p342 = scmp.ne.s32.totalorder %s330, %s331
      %p343 = scmp.eq.s32.totalorder %s40, 1
      %p344 = por %p342, %p343
      %p346 = scmp.ne.s32.totalorder %s331, %s345
      %p347 = scmp.eq.s32.totalorder %s40, 0
      %p348 = por %p346, %p347
      %s350 = sadd.s32 %s349, 1
      %p353 = scmp.eq.s32.totalorder %s34, 1
      %p354 = scmp.ne.s32.totalorder %s349, %s351
      %p355 = scmp.eq.s32.totalorder %s34, 0
      %p356 = por %p354, %p355
      %p357 = scmp.ne.s32.totalorder %s349, %s351
      %p358 = scmp.eq.s32.totalorder %s39, 1
      %p359 = por %p357, %p358
      %p360 = scmp.ne.s32.totalorder %s351, %s352
      %p361 = scmp.eq.s32.totalorder %s39, 0
      %p362 = por %p360, %p361
      %p363 = scmp.ne.s32.totalorder %s351, %s352
      %p364 = scmp.eq.s32.totalorder %s40, 1
      %p365 = por %p363, %p364
      %p367 = scmp.ne.s32.totalorder %s352, %s366
      %p368 = scmp.eq.s32.totalorder %s40, 0
      %p369 = por %p367, %p368
      %s371 = sadd.s32 %s370, 1
      %p374 = scmp.eq.s32.totalorder %s34, 1
      %p375 = scmp.ne.s32.totalorder %s370, %s372
      %p376 = scmp.eq.s32.totalorder %s34, 0
      %p377 = por %p375, %p376
      %p378 = scmp.ne.s32.totalorder %s370, %s372
      %p379 = scmp.eq.s32.totalorder %s39, 1
      %p380 = por %p378, %p379
      %p381 = scmp.ne.s32.totalorder %s372, %s373
      %p382 = scmp.eq.s32.totalorder %s39, 0
      %p383 = por %p381, %p382
      %p384 = scmp.ne.s32.totalorder %s372, %s373
      %p385 = scmp.eq.s32.totalorder %s40, 1
      %p386 = por %p384, %p385
      %p388 = scmp.ne.s32.totalorder %s373, %s387
      %p389 = scmp.eq.s32.totalorder %s40, 0
      %p390 = por %p388, %p389
      %s392 = sadd.s32 %s391, 1
      %p395 = scmp.eq.s32.totalorder %s34, 1
      %p396 = scmp.ne.s32.totalorder %s391, %s393
      %p397 = scmp.eq.s32.totalorder %s34, 0
      %p398 = por %p396, %p397
      %p399 = scmp.ne.s32.totalorder %s391, %s393
      %p400 = scmp.eq.s32.totalorder %s39, 1
      %p401 = por %p399, %p400
      %p402 = scmp.ne.s32.totalorder %s393, %s394
      %p403 = scmp.eq.s32.totalorder %s39, 0
      %p404 = por %p402, %p403
      %p405 = scmp.ne.s32.totalorder %s393, %s394
      %p406 = scmp.eq.s32.totalorder %s40, 1
      %p407 = por %p405, %p406
      %p409 = scmp.ne.s32.totalorder %s394, %s408
      %p410 = scmp.eq.s32.totalorder %s40, 0
      %p411 = por %p409, %p410
      %s413 = sadd.s32 %s412, 1
      %p416 = scmp.eq.s32.totalorder %s34, 1
      %p417 = scmp.ne.s32.totalorder %s412, %s414
      %p418 = scmp.eq.s32.totalorder %s34, 0
      %p419 = por %p417, %p418
      %p420 = scmp.ne.s32.totalorder %s412, %s414
      %p421 = scmp.eq.s32.totalorder %s39, 1
      %p422 = por %p420, %p421
      %p423 = scmp.ne.s32.totalorder %s414, %s415
      %p424 = scmp.eq.s32.totalorder %s39, 0
      %p425 = por %p423, %p424
      %p426 = scmp.ne.s32.totalorder %s414, %s415
      %p427 = scmp.eq.s32.totalorder %s40, 1
      %p428 = por %p426, %p427
      %p430 = scmp.ne.s32.totalorder %s415, %s429
      %p431 = scmp.eq.s32.totalorder %s40, 0
      %p432 = por %p430, %p431
      %s434 = sadd.s32 %s433, 1
      %p437 = scmp.eq.s32.totalorder %s34, 1
      %p438 = scmp.ne.s32.totalorder %s433, %s435
      %p439 = scmp.eq.s32.totalorder %s34, 0
      %p440 = por %p438, %p439
      %p441 = scmp.ne.s32.totalorder %s433, %s435
      %p442 = scmp.eq.s32.totalorder %s39, 1
      %p443 = por %p441, %p442
      %p444 = scmp.ne.s32.totalorder %s435, %s436
      %p445 = scmp.eq.s32.totalorder %s39, 0
      %p446 = por %p444, %p445
      %p447 = scmp.ne.s32.totalorder %s435, %s436
      %p448 = scmp.eq.s32.totalorder %s40, 1
      %p449 = por %p447, %p448
      %p451 = scmp.ne.s32.totalorder %s436, %s450
      %p452 = scmp.eq.s32.totalorder %s40, 0
      %p453 = por %p451, %p452
      %s455 = sadd.s32 %s454, 1
      %p458 = scmp.eq.s32.totalorder %s34, 1
      %p459 = scmp.ne.s32.totalorder %s454, %s456
      %p460 = scmp.eq.s32.totalorder %s34, 0
      %p461 = por %p459, %p460
      %p462 = scmp.ne.s32.totalorder %s454, %s456
      %p463 = scmp.eq.s32.totalorder %s39, 1
      %p464 = por %p462, %p463
      %p465 = scmp.ne.s32.totalorder %s456, %s457
      %p466 = scmp.eq.s32.totalorder %s39, 0
      %p467 = por %p465, %p466
      %p468 = scmp.ne.s32.totalorder %s456, %s457
      %p469 = scmp.eq.s32.totalorder %s40, 1
      %p470 = por %p468, %p469
      %p472 = scmp.ne.s32.totalorder %s457, %s471
      %p473 = scmp.eq.s32.totalorder %s40, 0
      %p474 = por %p472, %p473
      %s476 = sadd.s32 %s475, 1
      %p479 = scmp.eq.s32.totalorder %s34, 1
      %p480 = scmp.ne.s32.totalorder %s475, %s477
      %p481 = scmp.eq.s32.totalorder %s34, 0
      %p482 = por %p480, %p481
      %p483 = scmp.ne.s32.totalorder %s475, %s477
      %p484 = scmp.eq.s32.totalorder %s39, 1
      %p485 = por %p483, %p484
      %p486 = scmp.ne.s32.totalorder %s477, %s478
      %p487 = scmp.eq.s32.totalorder %s39, 0
      %p488 = por %p486, %p487
      %p489 = scmp.ne.s32.totalorder %s477, %s478
      %p490 = scmp.eq.s32.totalorder %s40, 1
      %p491 = por %p489, %p490
      %p493 = scmp.ne.s32.totalorder %s478, %s492
      %p494 = scmp.eq.s32.totalorder %s40, 0
      %p495 = por %p493, %p494
      %s496 = ssub.s32 %s41, %s53
      %s497 = ssub.s32 %s42, %s49
      %s498 = sor.u32 %s496, %s497
      %p499 = scmp.eq.s32.totalorder %s498, 0
      %s501 = sadd.s32 %s500, 1
      %s502 = scalar_select %p499, %s500, %s501
      %p505 = pneg %p499
      %p506 = scmp.eq.s32.totalorder %s34, 1
      %p507 = por %p505, %p506
      %p508 = scmp.ne.s32.totalorder %s500, %s503
      %p509 = scmp.eq.s32.totalorder %s34, 0
      %p510 = por %p508, %p509
      %p511 = scmp.ne.s32.totalorder %s500, %s503
      %p512 = scmp.eq.s32.totalorder %s39, 1
      %p513 = por %p511, %p512
      %p514 = scmp.ne.s32.totalorder %s503, %s504
      %p515 = scmp.eq.s32.totalorder %s39, 0
      %p516 = por %p514, %p515
      %p517 = scmp.ne.s32.totalorder %s503, %s504
      %p518 = scmp.eq.s32.totalorder %s40, 1
      %p519 = por %p517, %p518
      %p521 = scmp.ne.s32.totalorder %s504, %s520
      %p522 = scmp.eq.s32.totalorder %s40, 0
      %p523 = por %p521, %p522
      %s524 = ssub.s32 %s41, %s53
      %s525 = ssub.s32 %s42, %s49
      %s526 = sor.u32 %s524, %s525
      %p527 = scmp.eq.s32.totalorder %s526, 0
      %s529 = sadd.s32 %s528, 1
      %s530 = scalar_select %p527, %s528, %s529
      %p533 = pneg %p527
      %p534 = scmp.eq.s32.totalorder %s34, 1
      %p535 = por %p533, %p534
      %p536 = scmp.ne.s32.totalorder %s528, %s531
      %p537 = scmp.eq.s32.totalorder %s34, 0
      %p538 = por %p536, %p537
      %p539 = scmp.ne.s32.totalorder %s528, %s531
      %p540 = scmp.eq.s32.totalorder %s39, 1
      %p541 = por %p539, %p540
      %p542 = scmp.ne.s32.totalorder %s531, %s532
      %p543 = scmp.eq.s32.totalorder %s39, 0
      %p544 = por %p542, %p543
      %p545 = scmp.ne.s32.totalorder %s531, %s532
      %p546 = scmp.eq.s32.totalorder %s40, 1
      %p547 = por %p545, %p546
      %p549 = scmp.ne.s32.totalorder %s532, %s548
      %p550 = scmp.eq.s32.totalorder %s40, 0
      %p551 = por %p549, %p550
      %p552 = scmp.le.s32.totalorder 1, %s34
      %p553 = scmp.lt.s32.totalorder %s34, 3
      %p554 = pnand %p552, %p553
      %p555 = pneg %p554
      // Predicated region
      $region9: #{tpu_custom_call.1} parent=5 // pred_check
        _
      $region10: #{tpu_custom_call.1} parent=5 // pred_check_branch
        %557 = sbr.rel (%p554) target = $region12
      $region11: #{tpu_custom_call.1} parent=5 // pred_region
        %s558 = ssub.s32 %s34, 1
        // Predicated region
        $region13: #{tpu_custom_call.1} parent=11 // pred_check
          %p559 = pneg %p173
        $region14: #{tpu_custom_call.1} parent=11 // pred_check_branch
          %561 = sbr.rel (%p559) target = $region16
        $region15: #{tpu_custom_call.1} parent=11 // pred_region
          _
        $region16: #{tpu_custom_call.1} parent=11 // pred_fallthru
          _
        // Predicated region
        $region17: #{tpu_custom_call.1} parent=11 // pred_check
          %p562 = pneg %p194
        $region18: #{tpu_custom_call.1} parent=11 // pred_check_branch
          %564 = sbr.rel (%p562) target = $region20
        $region19: #{tpu_custom_call.1} parent=11 // pred_region
          _
        $region20: #{tpu_custom_call.1} parent=11 // pred_fallthru
          _
        // Predicated region
        $region21: #{tpu_custom_call.1} parent=11 // pred_check
          %p565 = pneg %p215
        $region22: #{tpu_custom_call.1} parent=11 // pred_check_branch
          %567 = sbr.rel (%p565) target = $region24
        $region23: #{tpu_custom_call.1} parent=11 // pred_region
          _
        $region24: #{tpu_custom_call.1} parent=11 // pred_fallthru
          _
        // Predicated region
        $region25: #{tpu_custom_call.1} parent=11 // pred_check
          %p568 = pneg %p236
        $region26: #{tpu_custom_call.1} parent=11 // pred_check_branch
          %570 = sbr.rel (%p568) target = $region28
        $region27: #{tpu_custom_call.1} parent=11 // pred_region
          _
        $region28: #{tpu_custom_call.1} parent=11 // pred_fallthru
          _
        // Predicated region
        $region29: #{tpu_custom_call.1} parent=11 // pred_check
          %p571 = pneg %p257
        $region30: #{tpu_custom_call.1} parent=11 // pred_check_branch
          %573 = sbr.rel (%p571) target = $region32
        $region31: #{tpu_custom_call.1} parent=11 // pred_region
          _
        $region32: #{tpu_custom_call.1} parent=11 // pred_fallthru
          _
        // Predicated region
        $region33: #{tpu_custom_call.1} parent=11 // pred_check
          %p574 = pneg %p278
        $region34: #{tpu_custom_call.1} parent=11 // pred_check_branch
          %576 = sbr.rel (%p574) target = $region36
        $region35: #{tpu_custom_call.1} parent=11 // pred_region
          _
        $region36: #{tpu_custom_call.1} parent=11 // pred_fallthru
          _
        // Predicated region
        $region37: #{tpu_custom_call.1} parent=11 // pred_check
          %p577 = pneg %p299
        $region38: #{tpu_custom_call.1} parent=11 // pred_check_branch
          %579 = sbr.rel (%p577) target = $region40
        $region39: #{tpu_custom_call.1} parent=11 // pred_region
          _
        $region40: #{tpu_custom_call.1} parent=11 // pred_fallthru
          _
        // Predicated region
        $region41: #{tpu_custom_call.1} parent=11 // pred_check
          %p580 = pneg %p320
        $region42: #{tpu_custom_call.1} parent=11 // pred_check_branch
          %582 = sbr.rel (%p580) target = $region44
        $region43: #{tpu_custom_call.1} parent=11 // pred_region
          _
        $region44: #{tpu_custom_call.1} parent=11 // pred_fallthru
          _
        // Predicated region
        $region45: #{tpu_custom_call.1} parent=11 // pred_check
          %p583 = pneg %p341
        $region46: #{tpu_custom_call.1} parent=11 // pred_check_branch
          %585 = sbr.rel (%p583) target = $region48
        $region47: #{tpu_custom_call.1} parent=11 // pred_region
          _
        $region48: #{tpu_custom_call.1} parent=11 // pred_fallthru
          _
        // Predicated region
        $region49: #{tpu_custom_call.1} parent=11 // pred_check
          %p586 = pneg %p362
        $region50: #{tpu_custom_call.1} parent=11 // pred_check_branch
          %588 = sbr.rel (%p586) target = $region52
        $region51: #{tpu_custom_call.1} parent=11 // pred_region
          _
        $region52: #{tpu_custom_call.1} parent=11 // pred_fallthru
          _
        // Predicated region
        $region53: #{tpu_custom_call.1} parent=11 // pred_check
          %p589 = pneg %p383
        $region54: #{tpu_custom_call.1} parent=11 // pred_check_branch
          %591 = sbr.rel (%p589) target = $region56
        $region55: #{tpu_custom_call.1} parent=11 // pred_region
          _
        $region56: #{tpu_custom_call.1} parent=11 // pred_fallthru
          _
        // Predicated region
        $region57: #{tpu_custom_call.1} parent=11 // pred_check
          %p592 = pneg %p404
        $region58: #{tpu_custom_call.1} parent=11 // pred_check_branch
          %594 = sbr.rel (%p592) target = $region60
        $region59: #{tpu_custom_call.1} parent=11 // pred_region
          _
        $region60: #{tpu_custom_call.1} parent=11 // pred_fallthru
          _
        // Predicated region
        $region61: #{tpu_custom_call.1} parent=11 // pred_check
          %p595 = pneg %p425
        $region62: #{tpu_custom_call.1} parent=11 // pred_check_branch
          %597 = sbr.rel (%p595) target = $region64
        $region63: #{tpu_custom_call.1} parent=11 // pred_region
          _
        $region64: #{tpu_custom_call.1} parent=11 // pred_fallthru
          _
        // Predicated region
        $region65: #{tpu_custom_call.1} parent=11 // pred_check
          %p598 = pneg %p446
        $region66: #{tpu_custom_call.1} parent=11 // pred_check_branch
          %600 = sbr.rel (%p598) target = $region68
        $region67: #{tpu_custom_call.1} parent=11 // pred_region
          _
        $region68: #{tpu_custom_call.1} parent=11 // pred_fallthru
          _
        // Predicated region
        $region69: #{tpu_custom_call.1} parent=11 // pred_check
          %p601 = pneg %p467
        $region70: #{tpu_custom_call.1} parent=11 // pred_check_branch
          %603 = sbr.rel (%p601) target = $region72
        $region71: #{tpu_custom_call.1} parent=11 // pred_region
          _
        $region72: #{tpu_custom_call.1} parent=11 // pred_fallthru
          _
        // Predicated region
        $region73: #{tpu_custom_call.1} parent=11 // pred_check
          %p604 = pneg %p488
        $region74: #{tpu_custom_call.1} parent=11 // pred_check_branch
          %606 = sbr.rel (%p604) target = $region76
        $region75: #{tpu_custom_call.1} parent=11 // pred_region
          _
        $region76: #{tpu_custom_call.1} parent=11 // pred_fallthru
          _
      $region12: #{tpu_custom_call.1} parent=5 // pred_fallthru
        _
      %p607 = scmp.lt.s32.totalorder %s34, 2
      // Predicated region
      $region77: #{tpu_custom_call.1} parent=5 // pred_check
        %p608 = pneg %p607
      $region78: #{tpu_custom_call.1} parent=5 // pred_check_branch
        %610 = sbr.rel (%p608) target = $region80
      $region79: #{tpu_custom_call.1} parent=5 // pred_region
        // Predicated region
        $region81: #{tpu_custom_call.1} parent=79 // pred_check
          %p611 = pneg %p66
        $region82: #{tpu_custom_call.1} parent=79 // pred_check_branch
          %613 = sbr.rel (%p611) target = $region84
        $region83: #{tpu_custom_call.1} parent=79 // pred_region
          %p614 = scmp.lt.s32.totalorder %s41, 1
          %s615 = scalar_select %p614, %s41, 1
          %s616 = smul.addr %s615, 4
          %s617 = scalar_lea.vmem %s0, %s616
        $region84: #{tpu_custom_call.1} parent=79 // pred_fallthru
          _
        // Predicated region
        $region85: #{tpu_custom_call.1} parent=79 // pred_check
          %p618 = pneg %p92
        $region86: #{tpu_custom_call.1} parent=79 // pred_check_branch
          %620 = sbr.rel (%p618) target = $region88
        $region87: #{tpu_custom_call.1} parent=79 // pred_region
          %p621 = scmp.lt.s32.totalorder %s41, 1
          %s622 = scalar_select %p621, %s41, 1
          %s623 = smul.addr %s622, 4
          %s624 = scalar_lea.vmem %s1, %s623
        $region88: #{tpu_custom_call.1} parent=79 // pred_fallthru
          _
        // Predicated region
        $region89: #{tpu_custom_call.1} parent=79 // pred_check
          %p625 = pneg %p120
        $region90: #{tpu_custom_call.1} parent=79 // pred_check_branch
          %627 = sbr.rel (%p625) target = $region92
        $region91: #{tpu_custom_call.1} parent=79 // pred_region
          %p628 = scmp.lt.s32.totalorder %s41, 1
          %s629 = scalar_select %p628, %s41, 1
          %p630 = scmp.lt.s32.totalorder %s42, 0
          %s631 = scalar_select %p630, %s42, 0
          %s632 = sadd.s32 %s631, %s629
          %s633 = smul.addr %s632, 4
          %s634 = scalar_lea.vmem %s2, %s633
        $region92: #{tpu_custom_call.1} parent=79 // pred_fallthru
          _
        // Predicated region
        $region93: #{tpu_custom_call.1} parent=79 // pred_check
          %p635 = pneg %p146
        $region94: #{tpu_custom_call.1} parent=79 // pred_check_branch
          %637 = sbr.rel (%p635) target = $region96
        $region95: #{tpu_custom_call.1} parent=79 // pred_region
          %p638 = scmp.lt.s32.totalorder %s41, 1
          %s639 = scalar_select %p638, %s41, 1
          %s640 = scalar_lea.vmem %s3, %s639
        $region96: #{tpu_custom_call.1} parent=79 // pred_fallthru
          _
      $region80: #{tpu_custom_call.1} parent=5 // pred_fallthru
        _
      %p641 = scmp.le.s32.totalorder 1, %s34
      %p642 = scmp.lt.s32.totalorder %s34, 3
      %p643 = pnand %p641, %p642
      %p644 = pneg %p643
      // Predicated region
      $region97: #{tpu_custom_call.1} parent=5 // pred_check
        _
      $region98: #{tpu_custom_call.1} parent=5 // pred_check_branch
        %646 = sbr.rel (%p643) target = $region100
      $region99: #{tpu_custom_call.1} parent=5 // pred_region
        %s647 = ssub.s32 %s34, 1
        %p648 = scmp.lt.s32.totalorder %s43, 1
        %s649 = scalar_select %p648, %s43, 1
        %s650 = smul.addr %s649, 4
        %s651 = scalar_lea.vmem %s0, %s650
        %p652 = pneg %p72
        %p653 = pneg %p69
        %p654 = scmp.lt.s32.totalorder %s43, 1
        %s655 = scalar_select %p654, %s43, 1
        %s656 = smul.addr %s655, 4
        %s657 = scalar_lea.vmem %s1, %s656
        %p658 = pneg %p98
        %p659 = pneg %p95
        %p660 = scmp.lt.s32.totalorder %s43, 1
        %s661 = scalar_select %p660, %s43, 1
        %p662 = scmp.lt.s32.totalorder %s44, 0
        %s663 = scalar_select %p662, %s44, 0
        %s664 = sadd.s32 %s663, %s661
        %s665 = smul.addr %s664, 4
        %s666 = scalar_lea.vmem %s2, %s665
        %p667 = pneg %p126
        %p668 = pneg %p123
        %p669 = scmp.lt.s32.totalorder %s43, 1
        %s670 = scalar_select %p669, %s43, 1
        %s671 = scalar_lea.vmem %s3, %s670
        %p672 = pneg %p152
        %p673 = pneg %p149
        %p674 = pneg %p173
        %p675 = pneg %p170
        %p676 = pneg %p194
        %p677 = pneg %p191
        %p678 = pneg %p215
        %p679 = pneg %p212
        %p680 = pneg %p236
        %p681 = pneg %p233
        %p682 = pneg %p257
        %p683 = pneg %p254
        %p684 = pneg %p278
        %p685 = pneg %p275
        %p686 = pneg %p299
        %p687 = pneg %p296
        %p688 = pneg %p320
        %p689 = pneg %p317
        %p690 = pneg %p341
        %p691 = pneg %p338
        %p692 = pneg %p362
        %p693 = pneg %p359
        %p694 = pneg %p383
        %p695 = pneg %p380
        %p696 = pneg %p404
        %p697 = pneg %p401
        %p698 = pneg %p425
        %p699 = pneg %p422
        %p700 = pneg %p446
        %p701 = pneg %p443
        %p702 = pneg %p467
        %p703 = pneg %p464
        %p704 = pneg %p488
        %p705 = pneg %p485
        %p706 = pneg %p516
        %p707 = pneg %p513
        %s708 = sand.u32 %s503, 1
        %s709 = scalar_lea.sflag [#allocation5], %s708
        %s710 = sand.u32 %s503, 1
        %s711 = smul.addr %s710, 8
        %s712 = scalar_lea.vmem [#allocation4], %s711
        %p713 = pneg %p544
        %p714 = pneg %p541
        %s715 = sand.u32 %s531, 1
        %s716 = scalar_lea.sflag [#allocation7], %s715
        %s717 = sand.u32 %s531, 1
        %s718 = smul.addr %s717, 4
        %s719 = scalar_lea.vmem [#allocation6], %s718
        %p720 = scmp.lt.s32.totalorder %s43, 1
        %s721 = scalar_select %p720, %s43, 1
        %s722 = smul.addr %s721, 4
        %s723 = scalar_lea.vmem %s0, %s722
        %p724 = scmp.lt.s32.totalorder %s43, 1
        %s725 = scalar_select %p724, %s43, 1
        %s726 = smul.addr %s725, 4
        %s727 = scalar_lea.vmem %s1, %s726
        %p728 = scmp.lt.s32.totalorder %s43, 1
        %s729 = scalar_select %p728, %s43, 1
        %p730 = scmp.lt.s32.totalorder %s44, 0
        %s731 = scalar_select %p730, %s44, 0
        %s732 = sadd.s32 %s731, %s729
        %s733 = smul.addr %s732, 4
        %s734 = scalar_lea.vmem %s2, %s733
        %p735 = scmp.lt.s32.totalorder %s43, 1
        %s736 = scalar_select %p735, %s43, 1
        %s737 = scalar_lea.vmem %s3, %s736
        %p739 = scmp.eq.s32.totalorder %s44, 0
        // Predicated region
        $region101: #{tpu_custom_call.1} parent=99 // pred_check
          %p740 = pneg %p739
        $region102: #{tpu_custom_call.1} parent=99 // pred_check_branch
          %742 = sbr.rel (%p740) target = $region104
        $region103: #{tpu_custom_call.1} parent=99 // pred_region
          %v743 = vld [vmem:[%s723] sm:$0xf]
          %v744 = vunpack.c.l.bf16 %v743
          %v745 = vld [vmem:[%s727] sm:$0xf]
          %v746 = vunpack.c.l.bf16 %v745
          %v747 = vld [vmem:[%s4] sm:$0x1]
          %v748 = vld [vmem:[%s5] sm:$0x1]
          %vm749 = vcmask 261120
          %v750 = vsel %vm749, %v744, 0.0
          %751 = vadd.xlane.f32.xlu0 %v750
          %v752 = vpop.xlane.xlu0 %751
          %v753 = vrcp.pop 32.0
          %v754 = vmul.f32 32.0, %v753
          %v755 = vsub.f32 1.0, %v754
          %v756 = vmul.f32 %v753, %v755
          %v757 = vadd.f32 %v753, %v756
          %vm758 = vweird.f32 %v753
          %v759 = vsel %vm758, %v753, %v757
          %v760 = vmul.f32 %v752, %v759
          %v761 = vsub.f32 %v744, %v760
          %v762 = vmul.f32 %v761, %v761
          %v763 = vsel %vm749, %v762, 0.0
          %764 = vadd.xlane.f32.xlu0 %v763
          %v765 = vpop.xlane.xlu0 %764
          %v766 = vmul.f32 %v765, %v759
          %v767 = vadd.f32 %v766, 1e-06
          %v768 = vrsqrt.pop %v767
          %v769 = vmul.f32 %v768, %v767
          %v770 = vmul.f32 %v769, %v768
          %v771 = vmul.f32 0.5, %v770
          %v772 = vsub.f32 1.5, %v771
          %v773 = vmul.f32 %v768, %v772
          %vm774 = vweird.f32 %v767
          %vm775 = vweird.f32 %v768
          %vm776 = vmor %vm774, %vm775
          %v777 = vsel %vm776, %v768, %v773
          %v778 = vmul.f32 %v761, %v777
          %v780 = vperm.slane %v747, 0
          %v782 = vmul.f32 %v778, %v780
          %v784 = vperm.slane %v748, 0
          %v786 = vadd.f32 %v782, %v784
          %v787 = vsel %vm749, %v746, 0.0
          %788 = vadd.xlane.f32.xlu0 %v787
          %v789 = vpop.xlane.xlu0 %788
          %v790 = vmul.f32 %v789, %v759
          %v791 = vsub.f32 %v746, %v790
          %v792 = vmul.f32 %v791, %v791
          %v793 = vsel %vm749, %v792, 0.0
          %794 = vadd.xlane.f32.xlu0 %v793
          %v795 = vpop.xlane.xlu0 %794
          %v796 = vmul.f32 %v795, %v759
          %v797 = vadd.f32 %v796, 1e-06
          %v798 = vrsqrt.pop %v797
          %v799 = vmul.f32 %v798, %v797
          %v800 = vmul.f32 %v799, %v798
          %v801 = vmul.f32 0.5, %v800
          %v802 = vsub.f32 1.5, %v801
          %v803 = vmul.f32 %v798, %v802
          %vm804 = vweird.f32 %v797
          %vm805 = vweird.f32 %v798
          %vm806 = vmor %vm804, %vm805
          %v807 = vsel %vm806, %v798, %v803
          %v808 = vmul.f32 %v791, %v807
          %v809 = vmul.f32 %v808, %v780
          %v810 = vadd.f32 %v809, %v784
          %v811 = vpack.c.bf16 %v786, %v786
          %v812 = vld [vmem:[%s6] sm:$0xff]
          %v813 = vld [vmem:[%s6 + $0x8] sm:$0xff]
          %v814 = vld [vmem:[%s6 + $0x10] sm:$0xff]
          %v815 = vld [vmem:[%s6 + $0x18] sm:$0xff]
          %v816 = vld [vmem:[%s6 + $0x20] sm:$0xff]
          %v817 = vld [vmem:[%s6 + $0x28] sm:$0xff]
          %v818 = vld [vmem:[%s6 + $0x30] sm:$0xff]
          %v819 = vld [vmem:[%s6 + $0x38] sm:$0xff]
          %v820 = vld [vmem:[%s7] sm:$0xf]
          %v822 = vperm.slane %v820, 0
          %v823 = vperm.slane %v820, 1
          %v824 = vperm.slane %v820, 2
          %v825 = vperm.slane %v820, 3
          %v838 = vunpack.c.l.b16 %v812
          %v839 = vunpack.c.h.b16 %v812
          %v840 = vunpack.c.l.b16 %v813
          %v841 = vunpack.c.h.b16 %v813
          %v842 = vunpack.c.l.b16 %v814
          %v843 = vunpack.c.h.b16 %v814
          %v844 = vunpack.c.l.b16 %v815
          %v845 = vunpack.c.h.b16 %v815
          %v846 = vunpack.c.l.b16 %v816
          %v847 = vunpack.c.h.b16 %v816
          %v848 = vunpack.c.l.b16 %v817
          %v849 = vunpack.c.h.b16 %v817
          %v850 = vunpack.c.l.b16 %v818
          %v851 = vunpack.c.h.b16 %v818
          %v852 = vunpack.c.l.b16 %v819
          %v853 = vunpack.c.h.b16 %v819
          %v854 = vpack.c.b16 %v842, %v838
          %v855 = vpack.c.b16 %v843, %v839
          %v856 = vpack.c.b16 %v844, %v840
          %v857 = vpack.c.b16 %v845, %v841
          %v858 = vpack.c.b16 %v850, %v846
          %v859 = vpack.c.b16 %v851, %v847
          %v860 = vpack.c.b16 %v852, %v848
          %v861 = vpack.c.b16 %v853, %v849
          %v871 = vsel %vm749, %v811, 0
          %873 = vmatpush.bf16.msra.mxu0 0
          %874 = vmatpush.bf16.msra.mxu0 0
          %875 = vmatpush.bf16.msra.mxu0 0
          %876 = vmatpush.bf16.msra.mxu0 0
          %877 = vmatpush.bf16.msra.mxu0 0
          %878 = vmatpush.bf16.msra.mxu0 0
          %879 = vmatpush.bf16.msra.mxu0 %v858
          %880 = vmatpush.bf16.msra.mxu0 %v854
          %881 = vmatmul.bf16.gmra.mxu0 %v871
          %v882 = vpop.f32.mrf.mxu0
          %v883 = vadd.f32 %v822, %v882
          %v884 = vpop.f32.mrf.mxu0
          %885 = vdwg.mxu0
          %886 = vmatpush.bf16.msra.mxu0 0
          %887 = vmatpush.bf16.msra.mxu0 0
          %888 = vmatpush.bf16.msra.mxu0 0
          %889 = vmatpush.bf16.msra.mxu0 0
          %890 = vmatpush.bf16.msra.mxu0 0
          %891 = vmatpush.bf16.msra.mxu0 0
          %892 = vmatpush.bf16.msra.mxu0 %v859
          %893 = vmatpush.bf16.msra.mxu0 %v855
          %894 = vmatmul.bf16.gmra.mxu0 %v871
          %v895 = vpop.f32.mrf.mxu0
          %v896 = vadd.f32 %v823, %v895
          %v897 = vpop.f32.mrf.mxu0
          %898 = vdwg.mxu0
          %899 = vmatpush.bf16.msra.mxu0 0
          %900 = vmatpush.bf16.msra.mxu0 0
          %901 = vmatpush.bf16.msra.mxu0 0
          %902 = vmatpush.bf16.msra.mxu0 0
          %903 = vmatpush.bf16.msra.mxu0 0
          %904 = vmatpush.bf16.msra.mxu0 0
          %905 = vmatpush.bf16.msra.mxu0 %v860
          %906 = vmatpush.bf16.msra.mxu0 %v856
          %907 = vmatmul.bf16.gmra.mxu0 %v871
          %v908 = vpop.f32.mrf.mxu0
          %v909 = vadd.f32 %v824, %v908
          %v910 = vpop.f32.mrf.mxu0
          %911 = vdwg.mxu0
          %912 = vmatpush.bf16.msra.mxu0 0
          %913 = vmatpush.bf16.msra.mxu0 0
          %914 = vmatpush.bf16.msra.mxu0 0
          %915 = vmatpush.bf16.msra.mxu0 0
          %916 = vmatpush.bf16.msra.mxu0 0
          %917 = vmatpush.bf16.msra.mxu0 0
          %918 = vmatpush.bf16.msra.mxu0 %v861
          %919 = vmatpush.bf16.msra.mxu0 %v857
          %920 = vmatmul.bf16.gmra.mxu0 %v871
          %v921 = vpop.f32.mrf.mxu0
          %v922 = vadd.f32 %v825, %v921
          %v923 = vpop.f32.mrf.mxu0
          %924 = vdwg.mxu0
          %v925 = vpack.c.bf16 %v810, %v810
          %v926 = vld [vmem:[%s8] sm:$0xff]
          %v927 = vld [vmem:[%s8 + $0x8] sm:$0xff]
          %v928 = vld [vmem:[%s8 + $0x10] sm:$0xff]
          %v929 = vld [vmem:[%s8 + $0x18] sm:$0xff]
          %v930 = vld [vmem:[%s8 + $0x20] sm:$0xff]
          %v931 = vld [vmem:[%s8 + $0x28] sm:$0xff]
          %v932 = vld [vmem:[%s8 + $0x30] sm:$0xff]
          %v933 = vld [vmem:[%s8 + $0x38] sm:$0xff]
          %v934 = vld [vmem:[%s9] sm:$0xf]
          %v936 = vperm.slane %v934, 0
          %v937 = vperm.slane %v934, 1
          %v938 = vperm.slane %v934, 2
          %v939 = vperm.slane %v934, 3
          %v952 = vunpack.c.l.b16 %v926
          %v953 = vunpack.c.h.b16 %v926
          %v954 = vunpack.c.l.b16 %v927
          %v955 = vunpack.c.h.b16 %v927
          %v956 = vunpack.c.l.b16 %v928
          %v957 = vunpack.c.h.b16 %v928
          %v958 = vunpack.c.l.b16 %v929
          %v959 = vunpack.c.h.b16 %v929
          %v960 = vunpack.c.l.b16 %v930
          %v961 = vunpack.c.h.b16 %v930
          %v962 = vunpack.c.l.b16 %v931
          %v963 = vunpack.c.h.b16 %v931
          %v964 = vunpack.c.l.b16 %v932
          %v965 = vunpack.c.h.b16 %v932
          %v966 = vunpack.c.l.b16 %v933
          %v967 = vunpack.c.h.b16 %v933
          %v968 = vpack.c.b16 %v956, %v952
          %v969 = vpack.c.b16 %v957, %v953
          %v970 = vpack.c.b16 %v958, %v954
          %v971 = vpack.c.b16 %v959, %v955
          %v972 = vpack.c.b16 %v964, %v960
          %v973 = vpack.c.b16 %v965, %v961
          %v974 = vpack.c.b16 %v966, %v962
          %v975 = vpack.c.b16 %v967, %v963
          %v985 = vsel %vm749, %v925, 0
          %987 = vmatpush.bf16.msra.mxu0 0
          %988 = vmatpush.bf16.msra.mxu0 0
          %989 = vmatpush.bf16.msra.mxu0 0
          %990 = vmatpush.bf16.msra.mxu0 0
          %991 = vmatpush.bf16.msra.mxu0 0
          %992 = vmatpush.bf16.msra.mxu0 0
          %993 = vmatpush.bf16.msra.mxu0 %v972
          %994 = vmatpush.bf16.msra.mxu0 %v968
          %995 = vmatmul.bf16.gmra.mxu0 %v985
          %v996 = vpop.f32.mrf.mxu0
          %v997 = vadd.f32 %v936, %v996
          %v998 = vpop.f32.mrf.mxu0
          %999 = vdwg.mxu0
          %1000 = vmatpush.bf16.msra.mxu0 0
          %1001 = vmatpush.bf16.msra.mxu0 0
          %1002 = vmatpush.bf16.msra.mxu0 0
          %1003 = vmatpush.bf16.msra.mxu0 0
          %1004 = vmatpush.bf16.msra.mxu0 0
          %1005 = vmatpush.bf16.msra.mxu0 0
          %1006 = vmatpush.bf16.msra.mxu0 %v973
          %1007 = vmatpush.bf16.msra.mxu0 %v969
          %1008 = vmatmul.bf16.gmra.mxu0 %v985
          %v1009 = vpop.f32.mrf.mxu0
          %v1010 = vadd.f32 %v937, %v1009
          %v1011 = vpop.f32.mrf.mxu0
          %1012 = vdwg.mxu0
          %1013 = vmatpush.bf16.msra.mxu0 0
          %1014 = vmatpush.bf16.msra.mxu0 0
          %1015 = vmatpush.bf16.msra.mxu0 0
          %1016 = vmatpush.bf16.msra.mxu0 0
          %1017 = vmatpush.bf16.msra.mxu0 0
          %1018 = vmatpush.bf16.msra.mxu0 0
          %1019 = vmatpush.bf16.msra.mxu0 %v974
          %1020 = vmatpush.bf16.msra.mxu0 %v970
          %1021 = vmatmul.bf16.gmra.mxu0 %v985
          %v1022 = vpop.f32.mrf.mxu0
          %v1023 = vadd.f32 %v938, %v1022
          %v1024 = vpop.f32.mrf.mxu0
          %1025 = vdwg.mxu0
          %1026 = vmatpush.bf16.msra.mxu0 0
          %1027 = vmatpush.bf16.msra.mxu0 0
          %1028 = vmatpush.bf16.msra.mxu0 0
          %1029 = vmatpush.bf16.msra.mxu0 0
          %1030 = vmatpush.bf16.msra.mxu0 0
          %1031 = vmatpush.bf16.msra.mxu0 0
          %1032 = vmatpush.bf16.msra.mxu0 %v975
          %1033 = vmatpush.bf16.msra.mxu0 %v971
          %1034 = vmatmul.bf16.gmra.mxu0 %v985
          %v1035 = vpop.f32.mrf.mxu0
          %v1036 = vadd.f32 %v939, %v1035
          %v1037 = vpop.f32.mrf.mxu0
          %1038 = vdwg.mxu0
          %v1039 = vpack.c.bf16 %v883, %v883
          %v1040 = vpack.c.bf16 %v896, %v896
          %v1041 = vpack.c.bf16 %v909, %v909
          %v1042 = vpack.c.bf16 %v922, %v922
          %1043 = vst [vmem:[#allocation2] sm:$0xf] %v1039
          %1044 = vst [vmem:[#allocation2 + $0x4] sm:$0xf] %v1040
          %1045 = vst [vmem:[#allocation2 + $0x8] sm:$0xf] %v1041
          %1046 = vst [vmem:[#allocation2 + $0xc] sm:$0xf] %v1042
          %v1047 = vpack.c.bf16 %v997, %v997
          %v1048 = vpack.c.bf16 %v1010, %v1010
          %v1049 = vpack.c.bf16 %v1023, %v1023
          %v1050 = vpack.c.bf16 %v1036, %v1036
          %1051 = vst [vmem:[#allocation3] sm:$0xf] %v1047
          %1052 = vst [vmem:[#allocation3 + $0x4] sm:$0xf] %v1048
          %1053 = vst [vmem:[#allocation3 + $0x8] sm:$0xf] %v1049
          %1054 = vst [vmem:[#allocation3 + $0xc] sm:$0xf] %v1050
        $region104: #{tpu_custom_call.1} parent=99 // pred_fallthru
          _
        %v1055 = vld [vmem:[%s734] sm:$0xf]
        %v1056 = vunpack.c.l.bf16 %v1055
        %v1057 = vld [vmem:[%s4] sm:$0x1]
        %v1058 = vld [vmem:[%s5] sm:$0x1]
        %vm1059 = vcmask 261120
        %v1060 = vsel %vm1059, %v1056, 0.0
        %1061 = vadd.xlane.f32.xlu0 %v1060
        %v1062 = vpop.xlane.xlu0 %1061
        %v1063 = vrcp.pop 32.0
        %v1064 = vmul.f32 32.0, %v1063
        %v1065 = vsub.f32 1.0, %v1064
        %v1066 = vmul.f32 %v1063, %v1065
        %v1067 = vadd.f32 %v1063, %v1066
        %vm1068 = vweird.f32 %v1063
        %v1069 = vsel %vm1068, %v1063, %v1067
        %v1070 = vmul.f32 %v1062, %v1069
        %v1071 = vsub.f32 %v1056, %v1070
        %v1072 = vmul.f32 %v1071, %v1071
        %v1073 = vsel %vm1059, %v1072, 0.0
        %1074 = vadd.xlane.f32.xlu0 %v1073
        %v1075 = vpop.xlane.xlu0 %1074
        %v1076 = vmul.f32 %v1075, %v1069
        %v1077 = vadd.f32 %v1076, 1e-06
        %v1078 = vrsqrt.pop %v1077
        %v1079 = vmul.f32 %v1078, %v1077
        %v1080 = vmul.f32 %v1079, %v1078
        %v1081 = vmul.f32 0.5, %v1080
        %v1082 = vsub.f32 1.5, %v1081
        %v1083 = vmul.f32 %v1078, %v1082
        %vm1084 = vweird.f32 %v1077
        %vm1085 = vweird.f32 %v1078
        %vm1086 = vmor %vm1084, %vm1085
        %v1087 = vsel %vm1086, %v1078, %v1083
        %v1088 = vmul.f32 %v1071, %v1087
        %v1090 = vperm.slane %v1057, 0
        %v1092 = vmul.f32 %v1088, %v1090
        %v1094 = vperm.slane %v1058, 0
        %v1096 = vadd.f32 %v1092, %v1094
        %v1097 = vpack.c.bf16 %v1096, %v1096
        %v1098 = vld [vmem:[%s10] sm:$0xff]
        %v1099 = vld [vmem:[%s10 + $0x8] sm:$0xff]
        %v1100 = vld [vmem:[%s10 + $0x10] sm:$0xff]
        %v1101 = vld [vmem:[%s10 + $0x18] sm:$0xff]
        %v1102 = vld [vmem:[%s10 + $0x20] sm:$0xff]
        %v1103 = vld [vmem:[%s10 + $0x28] sm:$0xff]
        %v1104 = vld [vmem:[%s10 + $0x30] sm:$0xff]
        %v1105 = vld [vmem:[%s10 + $0x38] sm:$0xff]
        %v1106 = vld [vmem:[%s11] sm:$0xf]
        %v1108 = vperm.slane %v1106, 0
        %v1109 = vperm.slane %v1106, 1
        %v1110 = vperm.slane %v1106, 2
        %v1111 = vperm.slane %v1106, 3
        %v1124 = vunpack.c.l.b16 %v1098
        %v1125 = vunpack.c.h.b16 %v1098
        %v1126 = vunpack.c.l.b16 %v1099
        %v1127 = vunpack.c.h.b16 %v1099
        %v1128 = vunpack.c.l.b16 %v1100
        %v1129 = vunpack.c.h.b16 %v1100
        %v1130 = vunpack.c.l.b16 %v1101
        %v1131 = vunpack.c.h.b16 %v1101
        %v1132 = vunpack.c.l.b16 %v1102
        %v1133 = vunpack.c.h.b16 %v1102
        %v1134 = vunpack.c.l.b16 %v1103
        %v1135 = vunpack.c.h.b16 %v1103
        %v1136 = vunpack.c.l.b16 %v1104
        %v1137 = vunpack.c.h.b16 %v1104
        %v1138 = vunpack.c.l.b16 %v1105
        %v1139 = vunpack.c.h.b16 %v1105
        %v1140 = vpack.c.b16 %v1128, %v1124
        %v1141 = vpack.c.b16 %v1129, %v1125
        %v1142 = vpack.c.b16 %v1130, %v1126
        %v1143 = vpack.c.b16 %v1131, %v1127
        %v1144 = vpack.c.b16 %v1136, %v1132
        %v1145 = vpack.c.b16 %v1137, %v1133
        %v1146 = vpack.c.b16 %v1138, %v1134
        %v1147 = vpack.c.b16 %v1139, %v1135
        %v1157 = vsel %vm1059, %v1097, 0
        %1159 = vmatpush.bf16.msra.mxu0 0
        %1160 = vmatpush.bf16.msra.mxu0 0
        %1161 = vmatpush.bf16.msra.mxu0 0
        %1162 = vmatpush.bf16.msra.mxu0 0
        %1163 = vmatpush.bf16.msra.mxu0 0
        %1164 = vmatpush.bf16.msra.mxu0 0
        %1165 = vmatpush.bf16.msra.mxu0 %v1144
        %1166 = vmatpush.bf16.msra.mxu0 %v1140
        %1167 = vmatmul.bf16.gmra.mxu0 %v1157
        %v1168 = vpop.f32.mrf.mxu0
        %v1169 = vadd.f32 %v1108, %v1168
        %v1170 = vpop.f32.mrf.mxu0
        %1171 = vdwg.mxu0
        %1172 = vmatpush.bf16.msra.mxu0 0
        %1173 = vmatpush.bf16.msra.mxu0 0
        %1174 = vmatpush.bf16.msra.mxu0 0
        %1175 = vmatpush.bf16.msra.mxu0 0
        %1176 = vmatpush.bf16.msra.mxu0 0
        %1177 = vmatpush.bf16.msra.mxu0 0
        %1178 = vmatpush.bf16.msra.mxu0 %v1145
        %1179 = vmatpush.bf16.msra.mxu0 %v1141
        %1180 = vmatmul.bf16.gmra.mxu0 %v1157
        %v1181 = vpop.f32.mrf.mxu0
        %v1182 = vadd.f32 %v1109, %v1181
        %v1183 = vpop.f32.mrf.mxu0
        %1184 = vdwg.mxu0
        %1185 = vmatpush.bf16.msra.mxu0 0
        %1186 = vmatpush.bf16.msra.mxu0 0
        %1187 = vmatpush.bf16.msra.mxu0 0
        %1188 = vmatpush.bf16.msra.mxu0 0
        %1189 = vmatpush.bf16.msra.mxu0 0
        %1190 = vmatpush.bf16.msra.mxu0 0
        %1191 = vmatpush.bf16.msra.mxu0 %v1146
        %1192 = vmatpush.bf16.msra.mxu0 %v1142
        %1193 = vmatmul.bf16.gmra.mxu0 %v1157
        %v1194 = vpop.f32.mrf.mxu0
        %v1195 = vadd.f32 %v1110, %v1194
        %v1196 = vpop.f32.mrf.mxu0
        %1197 = vdwg.mxu0
        %1198 = vmatpush.bf16.msra.mxu0 0
        %1199 = vmatpush.bf16.msra.mxu0 0
        %1200 = vmatpush.bf16.msra.mxu0 0
        %1201 = vmatpush.bf16.msra.mxu0 0
        %1202 = vmatpush.bf16.msra.mxu0 0
        %1203 = vmatpush.bf16.msra.mxu0 0
        %1204 = vmatpush.bf16.msra.mxu0 %v1147
        %1205 = vmatpush.bf16.msra.mxu0 %v1143
        %1206 = vmatmul.bf16.gmra.mxu0 %v1157
        %v1207 = vpop.f32.mrf.mxu0
        %v1208 = vadd.f32 %v1111, %v1207
        %v1209 = vpop.f32.mrf.mxu0
        %1210 = vdwg.mxu0
        %v1211 = vpack.c.bf16 %v1169, %v1169
        %v1212 = vpack.c.bf16 %v1182, %v1182
        %v1213 = vpack.c.bf16 %v1195, %v1195
        %v1214 = vpack.c.bf16 %v1208, %v1208
        %v1215 = vld [vmem:[%s737] sm:$0x1]
        %vm1216 = vcmp.gt.f32.partialorder %v1215, 0.0
        %v1217 = vld [vmem:[#allocation2] sm:$0xf]
        %v1218 = vld [vmem:[#allocation2 + $0x4] sm:$0xf]
        %v1219 = vld [vmem:[#allocation2 + $0x8] sm:$0xf]
        %v1220 = vld [vmem:[#allocation2 + $0xc] sm:$0xf]
        %1221 = vmatpush.bf16.xpose.msra.mxu0 0
        %1222 = vmatpush.bf16.xpose.msra.mxu0 0
        %1223 = vmatpush.bf16.xpose.msra.mxu0 0
        %1224 = vmatpush.bf16.xpose.msra.mxu0 0
        %1225 = vmatpush.bf16.xpose.msra.mxu0 0
        %1226 = vmatpush.bf16.xpose.msra.mxu0 0
        %1227 = vmatpush.bf16.xpose.msra.mxu0 0
        %1228 = vmatpush.bf16.xpose.msra.mxu0 %v1217
        %1229 = vmatmul.bf16.gmra.mxu0 %v1211
        %v1230 = vpop.f32.mrf.mxu0
        %v1231 = vadd.f32 0.0, %v1230
        %v1232 = vpop.f32.mrf.mxu0
        %1233 = vdwg.mxu0
        %1234 = vmatpush.bf16.xpose.msra.mxu0 0
        %1235 = vmatpush.bf16.xpose.msra.mxu0 0
        %1236 = vmatpush.bf16.xpose.msra.mxu0 0
        %1237 = vmatpush.bf16.xpose.msra.mxu0 0
        %1238 = vmatpush.bf16.xpose.msra.mxu0 0
        %1239 = vmatpush.bf16.xpose.msra.mxu0 0
        %1240 = vmatpush.bf16.xpose.msra.mxu0 0
        %1241 = vmatpush.bf16.xpose.msra.mxu0 %v1218
        %1242 = vmatmul.bf16.gmra.mxu0 %v1212
        %v1243 = vpop.f32.mrf.mxu0
        %v1244 = vadd.f32 0.0, %v1243
        %v1245 = vpop.f32.mrf.mxu0
        %1246 = vdwg.mxu0
        %1247 = vmatpush.bf16.xpose.msra.mxu0 0
        %1248 = vmatpush.bf16.xpose.msra.mxu0 0
        %1249 = vmatpush.bf16.xpose.msra.mxu0 0
        %1250 = vmatpush.bf16.xpose.msra.mxu0 0
        %1251 = vmatpush.bf16.xpose.msra.mxu0 0
        %1252 = vmatpush.bf16.xpose.msra.mxu0 0
        %1253 = vmatpush.bf16.xpose.msra.mxu0 0
        %1254 = vmatpush.bf16.xpose.msra.mxu0 %v1219
        %1255 = vmatmul.bf16.gmra.mxu0 %v1213
        %v1256 = vpop.f32.mrf.mxu0
        %v1257 = vadd.f32 0.0, %v1256
        %v1258 = vpop.f32.mrf.mxu0
        %1259 = vdwg.mxu0
        %1260 = vmatpush.bf16.xpose.msra.mxu0 0
        %1261 = vmatpush.bf16.xpose.msra.mxu0 0
        %1262 = vmatpush.bf16.xpose.msra.mxu0 0
        %1263 = vmatpush.bf16.xpose.msra.mxu0 0
        %1264 = vmatpush.bf16.xpose.msra.mxu0 0
        %1265 = vmatpush.bf16.xpose.msra.mxu0 0
        %1266 = vmatpush.bf16.xpose.msra.mxu0 0
        %1267 = vmatpush.bf16.xpose.msra.mxu0 %v1220
        %1268 = vmatmul.bf16.gmra.mxu0 %v1214
        %v1269 = vpop.f32.mrf.mxu0
        %v1270 = vadd.f32 0.0, %v1269
        %v1271 = vpop.f32.mrf.mxu0
        %1272 = vdwg.mxu0
        %v1273 = vsel %vm1216, 1, 0
        %v1274 = vperm.slane %v1273, 0
        %vm1275 = vcmp.eq.s32.totalorder %v1274, 1
        %v1276 = vsel %vm1275, -1e+18, %v1231
        %v1277 = vsel %vm1275, -1e+18, %v1244
        %v1278 = vsel %vm1275, -1e+18, %v1257
        %v1279 = vsel %vm1275, -1e+18, %v1270
        %vm1280 = vcmask 64512
        %v1281 = vsel %vm1280, %v1276, -inf
        %1282 = vmax.xlane.f32.xlu0 %v1281
        %v1283 = vpop.xlane.xlu0 %1282
        %v1284 = vsel %vm1280, %v1277, -inf
        %1285 = vmax.xlane.f32.xlu0 %v1284
        %v1286 = vpop.xlane.xlu0 %1285
        %v1287 = vsel %vm1280, %v1278, -inf
        %1288 = vmax.xlane.f32.xlu0 %v1287
        %v1289 = vpop.xlane.xlu0 %1288
        %v1290 = vsel %vm1280, %v1279, -inf
        %1291 = vmax.xlane.f32.xlu0 %v1290
        %v1292 = vpop.xlane.xlu0 %1291
        %v1293 = vsub.f32 %v1276, %v1283
        %v1294 = vsub.f32 %v1277, %v1286
        %v1295 = vsub.f32 %v1278, %v1289
        %v1296 = vsub.f32 %v1279, %v1292
        %v1297 = vmul.f32 %v1293, 1.442695
        %v1298 = vpow.pop %v1297
        %v1299 = vmul.f32 %v1294, 1.442695
        %v1300 = vpow.pop %v1299
        %v1301 = vmul.f32 %v1295, 1.442695
        %v1302 = vpow.pop %v1301
        %v1303 = vmul.f32 %v1296, 1.442695
        %v1304 = vpow.pop %v1303
        %v1305 = vsel %vm1280, %v1298, 0.0
        %1306 = vadd.xlane.f32.xlu0 %v1305
        %v1307 = vpop.xlane.xlu0 %1306
        %v1308 = vsel %vm1280, %v1300, 0.0
        %1309 = vadd.xlane.f32.xlu0 %v1308
        %v1310 = vpop.xlane.xlu0 %1309
        %v1311 = vsel %vm1280, %v1302, 0.0
        %1312 = vadd.xlane.f32.xlu0 %v1311
        %v1313 = vpop.xlane.xlu0 %1312
        %v1314 = vsel %vm1280, %v1304, 0.0
        %1315 = vadd.xlane.f32.xlu0 %v1314
        %v1316 = vpop.xlane.xlu0 %1315
        %v1317 = vrcp.pop %v1307
        %v1318 = vrcp.pop %v1310
        %v1319 = vrcp.pop %v1313
        %v1320 = vrcp.pop %v1316
        %v1321 = vmul.f32 %v1307, %v1317
        %v1322 = vmul.f32 %v1310, %v1318
        %v1323 = vmul.f32 %v1313, %v1319
        %v1324 = vmul.f32 %v1316, %v1320
        %v1325 = vsub.f32 2.0, %v1321
        %v1326 = vsub.f32 2.0, %v1322
        %v1327 = vsub.f32 2.0, %v1323
        %v1328 = vsub.f32 2.0, %v1324
        %v1329 = vmul.f32 %v1317, %v1325
        %v1330 = vmul.f32 %v1318, %v1326
        %v1331 = vmul.f32 %v1319, %v1327
        %v1332 = vmul.f32 %v1320, %v1328
        %v1333 = vmul.f32 %v1298, %v1329
        %v1334 = vmul.f32 %v1300, %v1330
        %v1335 = vmul.f32 %v1302, %v1331
        %v1336 = vmul.f32 %v1304, %v1332
        %v1337 = vpack.c.bf16 %v1333, %v1333
        %vm1338 = vcmask 60416
        %1339 = vst.msk [vmem:[%s719] sm:$0xf] %vm1338, %v1337
        %v1340 = vpack.c.bf16 %v1334, %v1334
        %v1341 = vpack.c.bf16 %v1335, %v1335
        %v1342 = vpack.c.bf16 %v1336, %v1336
        %v1343 = vld [vmem:[#allocation3] sm:$0xf]
        %v1344 = vld [vmem:[#allocation3 + $0x4] sm:$0xf]
        %v1345 = vld [vmem:[#allocation3 + $0x8] sm:$0xf]
        %v1346 = vld [vmem:[#allocation3 + $0xc] sm:$0xf]
        %v1348 = vsel %vm1280, %v1337, 0
        %vm1350 = vcmask 1043456
        %v1352 = vsel %vm1350, %v1343, 0
        %1354 = vmatpush.bf16.msra.mxu0 0
        %1355 = vmatpush.bf16.msra.mxu0 0
        %1356 = vmatpush.bf16.msra.mxu0 0
        %1357 = vmatpush.bf16.msra.mxu0 0
        %1358 = vmatpush.bf16.msra.mxu0 0
        %1359 = vmatpush.bf16.msra.mxu0 0
        %1360 = vmatpush.bf16.msra.mxu0 0
        %1361 = vmatpush.bf16.msra.mxu0 %v1352
        %1362 = vmatmul.bf16.gmra.mxu0 %v1348
        %v1363 = vpop.f32.mrf.mxu0
        %v1364 = vadd.f32 0.0, %v1363
        %v1365 = vpop.f32.mrf.mxu0
        %1366 = vdwg.mxu0
        %v1368 = vsel %vm1280, %v1340, 0
        %v1371 = vsel %vm1350, %v1344, 0
        %1373 = vmatpush.bf16.msra.mxu0 0
        %1374 = vmatpush.bf16.msra.mxu0 0
        %1375 = vmatpush.bf16.msra.mxu0 0
        %1376 = vmatpush.bf16.msra.mxu0 0
        %1377 = vmatpush.bf16.msra.mxu0 0
        %1378 = vmatpush.bf16.msra.mxu0 0
        %1379 = vmatpush.bf16.msra.mxu0 0
        %1380 = vmatpush.bf16.msra.mxu0 %v1371
        %1381 = vmatmul.bf16.gmra.mxu0 %v1368
        %v1382 = vpop.f32.mrf.mxu0
        %v1383 = vadd.f32 0.0, %v1382
        %v1384 = vpop.f32.mrf.mxu0
        %1385 = vdwg.mxu0
        %v1387 = vsel %vm1280, %v1341, 0
        %v1390 = vsel %vm1350, %v1345, 0
        %1392 = vmatpush.bf16.msra.mxu0 0
        %1393 = vmatpush.bf16.msra.mxu0 0
        %1394 = vmatpush.bf16.msra.mxu0 0
        %1395 = vmatpush.bf16.msra.mxu0 0
        %1396 = vmatpush.bf16.msra.mxu0 0
        %1397 = vmatpush.bf16.msra.mxu0 0
        %1398 = vmatpush.bf16.msra.mxu0 0
        %1399 = vmatpush.bf16.msra.mxu0 %v1390
        %1400 = vmatmul.bf16.gmra.mxu0 %v1387
        %v1401 = vpop.f32.mrf.mxu0
        %v1402 = vadd.f32 0.0, %v1401
        %v1403 = vpop.f32.mrf.mxu0
        %1404 = vdwg.mxu0
        %v1406 = vsel %vm1280, %v1342, 0
        %v1409 = vsel %vm1350, %v1346, 0
        %1411 = vmatpush.bf16.msra.mxu0 0
        %1412 = vmatpush.bf16.msra.mxu0 0
        %1413 = vmatpush.bf16.msra.mxu0 0
        %1414 = vmatpush.bf16.msra.mxu0 0
        %1415 = vmatpush.bf16.msra.mxu0 0
        %1416 = vmatpush.bf16.msra.mxu0 0
        %1417 = vmatpush.bf16.msra.mxu0 0
        %1418 = vmatpush.bf16.msra.mxu0 %v1409
        %1419 = vmatmul.bf16.gmra.mxu0 %v1406
        %v1420 = vpop.f32.mrf.mxu0
        %v1421 = vadd.f32 0.0, %v1420
        %v1422 = vpop.f32.mrf.mxu0
        %1423 = vdwg.mxu0
        %v1424 = vpack.c.bf16 %v1364, %v1364
        %v1425 = vpack.c.bf16 %v1383, %v1383
        %v1426 = vpack.c.bf16 %v1402, %v1402
        %v1427 = vpack.c.bf16 %v1421, %v1421
        %v1428 = vld [vmem:[%s12] sm:$0xf]
        %v1429 = vld [vmem:[%s12 + $0x4] sm:$0xf]
        %v1430 = vld [vmem:[%s12 + $0x8] sm:$0xf]
        %v1431 = vld [vmem:[%s12 + $0xc] sm:$0xf]
        %v1432 = vld [vmem:[%s12 + $0x10] sm:$0xf]
        %v1433 = vld [vmem:[%s12 + $0x14] sm:$0xf]
        %v1434 = vld [vmem:[%s12 + $0x18] sm:$0xf]
        %v1435 = vld [vmem:[%s12 + $0x1c] sm:$0xf]
        %v1436 = vld [vmem:[%s12 + $0x20] sm:$0xf]
        %v1437 = vld [vmem:[%s12 + $0x24] sm:$0xf]
        %v1438 = vld [vmem:[%s12 + $0x28] sm:$0xf]
        %v1439 = vld [vmem:[%s12 + $0x2c] sm:$0xf]
        %v1440 = vld [vmem:[%s12 + $0x30] sm:$0xf]
        %v1441 = vld [vmem:[%s12 + $0x34] sm:$0xf]
        %v1442 = vld [vmem:[%s12 + $0x38] sm:$0xf]
        %v1443 = vld [vmem:[%s12 + $0x3c] sm:$0xf]
        %v1444 = vld [vmem:[%s12 + $0x40] sm:$0xf]
        %v1445 = vld [vmem:[%s12 + $0x44] sm:$0xf]
        %v1446 = vld [vmem:[%s12 + $0x48] sm:$0xf]
        %v1447 = vld [vmem:[%s12 + $0x4c] sm:$0xf]
        %v1448 = vld [vmem:[%s12 + $0x50] sm:$0xf]
        %v1449 = vld [vmem:[%s12 + $0x54] sm:$0xf]
        %v1450 = vld [vmem:[%s12 + $0x58] sm:$0xf]
        %v1451 = vld [vmem:[%s12 + $0x5c] sm:$0xf]
        %v1452 = vld [vmem:[%s12 + $0x60] sm:$0xf]
        %v1453 = vld [vmem:[%s12 + $0x64] sm:$0xf]
        %v1454 = vld [vmem:[%s12 + $0x68] sm:$0xf]
        %v1455 = vld [vmem:[%s12 + $0x6c] sm:$0xf]
        %v1456 = vld [vmem:[%s12 + $0x70] sm:$0xf]
        %v1457 = vld [vmem:[%s12 + $0x74] sm:$0xf]
        %v1458 = vld [vmem:[%s12 + $0x78] sm:$0xf]
        %v1459 = vld [vmem:[%s12 + $0x7c] sm:$0xf]
        %v1460 = vld [vmem:[%s12 + $0x80] sm:$0xf]
        %v1461 = vld [vmem:[%s12 + $0x84] sm:$0xf]
        %v1462 = vld [vmem:[%s12 + $0x88] sm:$0xf]
        %v1463 = vld [vmem:[%s12 + $0x8c] sm:$0xf]
        %v1464 = vld [vmem:[%s12 + $0x90] sm:$0xf]
        %v1465 = vld [vmem:[%s12 + $0x94] sm:$0xf]
        %v1466 = vld [vmem:[%s12 + $0x98] sm:$0xf]
        %v1467 = vld [vmem:[%s12 + $0x9c] sm:$0xf]
        %v1468 = vld [vmem:[%s12 + $0xa0] sm:$0xf]
        %v1469 = vld [vmem:[%s12 + $0xa4] sm:$0xf]
        %v1470 = vld [vmem:[%s12 + $0xa8] sm:$0xf]
        %v1471 = vld [vmem:[%s12 + $0xac] sm:$0xf]
        %v1472 = vld [vmem:[%s12 + $0xb0] sm:$0xf]
        %v1473 = vld [vmem:[%s12 + $0xb4] sm:$0xf]
        %v1474 = vld [vmem:[%s12 + $0xb8] sm:$0xf]
        %v1475 = vld [vmem:[%s12 + $0xbc] sm:$0xf]
        %v1476 = vld [vmem:[%s12 + $0xc0] sm:$0xf]
        %v1477 = vld [vmem:[%s12 + $0xc4] sm:$0xf]
        %v1478 = vld [vmem:[%s12 + $0xc8] sm:$0xf]
        %v1479 = vld [vmem:[%s12 + $0xcc] sm:$0xf]
        %v1480 = vld [vmem:[%s12 + $0xd0] sm:$0xf]
        %v1481 = vld [vmem:[%s12 + $0xd4] sm:$0xf]
        %v1482 = vld [vmem:[%s12 + $0xd8] sm:$0xf]
        %v1483 = vld [vmem:[%s12 + $0xdc] sm:$0xf]
        %v1484 = vld [vmem:[%s12 + $0xe0] sm:$0xf]
        %v1485 = vld [vmem:[%s12 + $0xe4] sm:$0xf]
        %v1486 = vld [vmem:[%s12 + $0xe8] sm:$0xf]
        %v1487 = vld [vmem:[%s12 + $0xec] sm:$0xf]
        %v1488 = vld [vmem:[%s12 + $0xf0] sm:$0xf]
        %v1489 = vld [vmem:[%s12 + $0xf4] sm:$0xf]
        %v1490 = vld [vmem:[%s12 + $0xf8] sm:$0xf]
        %v1491 = vld [vmem:[%s12 + $0xfc] sm:$0xf]
        %v1492 = vld [vmem:[%s13] sm:$0x1]
        %v1494 = vperm.slane %v1492, 0
        %v1560 = vunpack.c.l.b16 %v1428
        %v1561 = vunpack.c.l.b16 %v1429
        %v1562 = vunpack.c.l.b16 %v1430
        %v1563 = vunpack.c.l.b16 %v1431
        %v1564 = vunpack.c.l.b16 %v1432
        %v1565 = vunpack.c.l.b16 %v1433
        %v1566 = vunpack.c.l.b16 %v1434
        %v1567 = vunpack.c.l.b16 %v1435
        %v1568 = vunpack.c.l.b16 %v1436
        %v1569 = vunpack.c.l.b16 %v1437
        %v1570 = vunpack.c.l.b16 %v1438
        %v1571 = vunpack.c.l.b16 %v1439
        %v1572 = vunpack.c.l.b16 %v1440
        %v1573 = vunpack.c.l.b16 %v1441
        %v1574 = vunpack.c.l.b16 %v1442
        %v1575 = vunpack.c.l.b16 %v1443
        %v1576 = vunpack.c.l.b16 %v1444
        %v1577 = vunpack.c.l.b16 %v1445
        %v1578 = vunpack.c.l.b16 %v1446
        %v1579 = vunpack.c.l.b16 %v1447
        %v1580 = vunpack.c.l.b16 %v1448
        %v1581 = vunpack.c.l.b16 %v1449
        %v1582 = vunpack.c.l.b16 %v1450
        %v1583 = vunpack.c.l.b16 %v1451
        %v1584 = vunpack.c.l.b16 %v1452
        %v1585 = vunpack.c.l.b16 %v1453
        %v1586 = vunpack.c.l.b16 %v1454
        %v1587 = vunpack.c.l.b16 %v1455
        %v1588 = vunpack.c.l.b16 %v1456
        %v1589 = vunpack.c.l.b16 %v1457
        %v1590 = vunpack.c.l.b16 %v1458
        %v1591 = vunpack.c.l.b16 %v1459
        %v1592 = vunpack.c.l.b16 %v1460
        %v1593 = vunpack.c.l.b16 %v1461
        %v1594 = vunpack.c.l.b16 %v1462
        %v1595 = vunpack.c.l.b16 %v1463
        %v1596 = vunpack.c.l.b16 %v1464
        %v1597 = vunpack.c.l.b16 %v1465
        %v1598 = vunpack.c.l.b16 %v1466
        %v1599 = vunpack.c.l.b16 %v1467
        %v1600 = vunpack.c.l.b16 %v1468
        %v1601 = vunpack.c.l.b16 %v1469
        %v1602 = vunpack.c.l.b16 %v1470
        %v1603 = vunpack.c.l.b16 %v1471
        %v1604 = vunpack.c.l.b16 %v1472
        %v1605 = vunpack.c.l.b16 %v1473
        %v1606 = vunpack.c.l.b16 %v1474
        %v1607 = vunpack.c.l.b16 %v1475
        %v1608 = vunpack.c.l.b16 %v1476
        %v1609 = vunpack.c.l.b16 %v1477
        %v1610 = vunpack.c.l.b16 %v1478
        %v1611 = vunpack.c.l.b16 %v1479
        %v1612 = vunpack.c.l.b16 %v1480
        %v1613 = vunpack.c.l.b16 %v1481
        %v1614 = vunpack.c.l.b16 %v1482
        %v1615 = vunpack.c.l.b16 %v1483
        %v1616 = vunpack.c.l.b16 %v1484
        %v1617 = vunpack.c.l.b16 %v1485
        %v1618 = vunpack.c.l.b16 %v1486
        %v1619 = vunpack.c.l.b16 %v1487
        %v1620 = vunpack.c.l.b16 %v1488
        %v1621 = vunpack.c.l.b16 %v1489
        %v1622 = vunpack.c.l.b16 %v1490
        %v1623 = vunpack.c.l.b16 %v1491
        %v1624 = vpack.c.b16 %v1561, %v1560
        %v1625 = vpack.c.b16 %v1563, %v1562
        %v1626 = vpack.c.b16 %v1565, %v1564
        %v1627 = vpack.c.b16 %v1567, %v1566
        %v1628 = vpack.c.b16 %v1569, %v1568
        %v1629 = vpack.c.b16 %v1571, %v1570
        %v1630 = vpack.c.b16 %v1573, %v1572
        %v1631 = vpack.c.b16 %v1575, %v1574
        %v1632 = vpack.c.b16 %v1577, %v1576
        %v1633 = vpack.c.b16 %v1579, %v1578
        %v1634 = vpack.c.b16 %v1581, %v1580
        %v1635 = vpack.c.b16 %v1583, %v1582
        %v1636 = vpack.c.b16 %v1585, %v1584
        %v1637 = vpack.c.b16 %v1587, %v1586
        %v1638 = vpack.c.b16 %v1589, %v1588
        %v1639 = vpack.c.b16 %v1591, %v1590
        %v1640 = vpack.c.b16 %v1593, %v1592
        %v1641 = vpack.c.b16 %v1595, %v1594
        %v1642 = vpack.c.b16 %v1597, %v1596
        %v1643 = vpack.c.b16 %v1599, %v1598
        %v1644 = vpack.c.b16 %v1601, %v1600
        %v1645 = vpack.c.b16 %v1603, %v1602
        %v1646 = vpack.c.b16 %v1605, %v1604
        %v1647 = vpack.c.b16 %v1607, %v1606
        %v1648 = vpack.c.b16 %v1609, %v1608
        %v1649 = vpack.c.b16 %v1611, %v1610
        %v1650 = vpack.c.b16 %v1613, %v1612
        %v1651 = vpack.c.b16 %v1615, %v1614
        %v1652 = vpack.c.b16 %v1617, %v1616
        %v1653 = vpack.c.b16 %v1619, %v1618
        %v1654 = vpack.c.b16 %v1621, %v1620
        %v1655 = vpack.c.b16 %v1623, %v1622
        %1688 = vmatpush.bf16.msra.mxu0 %v1631
        %1689 = vmatpush.bf16.msra.mxu0 %v1630
        %1690 = vmatpush.bf16.msra.mxu0 %v1629
        %1691 = vmatpush.bf16.msra.mxu0 %v1628
        %1692 = vmatpush.bf16.msra.mxu0 %v1627
        %1693 = vmatpush.bf16.msra.mxu0 %v1626
        %1694 = vmatpush.bf16.msra.mxu0 %v1625
        %1695 = vmatpush.bf16.msra.mxu0 %v1624
        %1696 = vmatmul.bf16.gmra.mxu0 %v1424
        %v1697 = vpop.f32.mrf.mxu0
        %v1698 = vadd.f32 %v1494, %v1697
        %v1699 = vpop.f32.mrf.mxu0
        %1700 = vdwg.mxu0
        %1701 = vmatpush.bf16.msra.mxu0 %v1639
        %1702 = vmatpush.bf16.msra.mxu0 %v1638
        %1703 = vmatpush.bf16.msra.mxu0 %v1637
        %1704 = vmatpush.bf16.msra.mxu0 %v1636
        %1705 = vmatpush.bf16.msra.mxu0 %v1635
        %1706 = vmatpush.bf16.msra.mxu0 %v1634
        %1707 = vmatpush.bf16.msra.mxu0 %v1633
        %1708 = vmatpush.bf16.msra.mxu0 %v1632
        %1709 = vmatmul.bf16.gmra.mxu0 %v1425
        %v1710 = vpop.f32.mrf.mxu0
        %v1711 = vadd.f32 %v1698, %v1710
        %v1712 = vpop.f32.mrf.mxu0
        %1713 = vdwg.mxu0
        %1714 = vmatpush.bf16.msra.mxu0 %v1647
        %1715 = vmatpush.bf16.msra.mxu0 %v1646
        %1716 = vmatpush.bf16.msra.mxu0 %v1645
        %1717 = vmatpush.bf16.msra.mxu0 %v1644
        %1718 = vmatpush.bf16.msra.mxu0 %v1643
        %1719 = vmatpush.bf16.msra.mxu0 %v1642
        %1720 = vmatpush.bf16.msra.mxu0 %v1641
        %1721 = vmatpush.bf16.msra.mxu0 %v1640
        %1722 = vmatmul.bf16.gmra.mxu0 %v1426
        %v1723 = vpop.f32.mrf.mxu0
        %v1724 = vadd.f32 %v1711, %v1723
        %v1725 = vpop.f32.mrf.mxu0
        %1726 = vdwg.mxu0
        %1727 = vmatpush.bf16.msra.mxu0 %v1655
        %1728 = vmatpush.bf16.msra.mxu0 %v1654
        %1729 = vmatpush.bf16.msra.mxu0 %v1653
        %1730 = vmatpush.bf16.msra.mxu0 %v1652
        %1731 = vmatpush.bf16.msra.mxu0 %v1651
        %1732 = vmatpush.bf16.msra.mxu0 %v1650
        %1733 = vmatpush.bf16.msra.mxu0 %v1649
        %1734 = vmatpush.bf16.msra.mxu0 %v1648
        %1735 = vmatmul.bf16.gmra.mxu0 %v1427
        %v1736 = vpop.f32.mrf.mxu0
        %v1737 = vadd.f32 %v1724, %v1736
        %v1738 = vpop.f32.mrf.mxu0
        %1739 = vdwg.mxu0
        %v1740 = vadd.f32 %v1737, %v1096
        %v1741 = vld [vmem:[%s14] sm:$0x1]
        %v1742 = vld [vmem:[%s15] sm:$0x1]
        %v1743 = vsel %vm1059, %v1740, 0.0
        %1744 = vadd.xlane.f32.xlu0 %v1743
        %v1745 = vpop.xlane.xlu0 %1744
        %v1746 = vmul.f32 %v1745, %v1069
        %v1747 = vsub.f32 %v1740, %v1746
        %v1748 = vmul.f32 %v1747, %v1747
        %v1749 = vsel %vm1059, %v1748, 0.0
        %1750 = vadd.xlane.f32.xlu0 %v1749
        %v1751 = vpop.xlane.xlu0 %1750
        %v1752 = vmul.f32 %v1751, %v1069
        %v1753 = vadd.f32 %v1752, 1e-06
        %v1754 = vrsqrt.pop %v1753
        %v1755 = vmul.f32 %v1754, %v1753
        %v1756 = vmul.f32 %v1755, %v1754
        %v1757 = vmul.f32 0.5, %v1756
        %v1758 = vsub.f32 1.5, %v1757
        %v1759 = vmul.f32 %v1754, %v1758
        %vm1760 = vweird.f32 %v1753
        %vm1761 = vweird.f32 %v1754
        %vm1762 = vmor %vm1760, %vm1761
        %v1763 = vsel %vm1762, %v1754, %v1759
        %v1764 = vmul.f32 %v1747, %v1763
        %v1766 = vperm.slane %v1741, 0
        %v1768 = vmul.f32 %v1764, %v1766
        %v1770 = vperm.slane %v1742, 0
        %v1772 = vadd.f32 %v1768, %v1770
        %v1773 = vpack.c.bf16 %v1772, %v1772
        %v1774 = vld [vmem:[%s16] sm:$0xf]
        %v1775 = vld [vmem:[%s16 + $0x4] sm:$0xf]
        %v1776 = vld [vmem:[%s16 + $0x8] sm:$0xf]
        %v1777 = vld [vmem:[%s16 + $0xc] sm:$0xf]
        %v1778 = vld [vmem:[%s17] sm:$0x1]
        %v1780 = vperm.slane %v1778, 0
        %v1786 = vunpack.c.l.b16 %v1774
        %v1787 = vunpack.c.l.b16 %v1775
        %v1788 = vunpack.c.l.b16 %v1776
        %v1789 = vunpack.c.l.b16 %v1777
        %v1790 = vpack.c.b16 %v1787, %v1786
        %v1791 = vpack.c.b16 %v1789, %v1788
        %v1795 = vsel %vm1059, %v1773, 0
        %1797 = vmatpush.bf16.msra.mxu0 0
        %1798 = vmatpush.bf16.msra.mxu0 0
        %1799 = vmatpush.bf16.msra.mxu0 0
        %1800 = vmatpush.bf16.msra.mxu0 0
        %1801 = vmatpush.bf16.msra.mxu0 0
        %1802 = vmatpush.bf16.msra.mxu0 0
        %1803 = vmatpush.bf16.msra.mxu0 %v1791
        %1804 = vmatpush.bf16.msra.mxu0 %v1790
        %1805 = vmatmul.bf16.gmra.mxu0 %v1795
        %v1806 = vpop.f32.mrf.mxu0
        %v1807 = vadd.f32 %v1780, %v1806
        %v1808 = vpop.f32.mrf.mxu0
        %1809 = vdwg.mxu0
        %v1810 = vmax.f32 %v1807, 0.0
        %v1811 = vpack.c.bf16 %v1810, %v1810
        %v1812 = vld [vmem:[%s18] sm:$0xf]
        %v1813 = vld [vmem:[%s18 + $0x4] sm:$0xf]
        %v1814 = vld [vmem:[%s18 + $0x8] sm:$0xf]
        %v1815 = vld [vmem:[%s18 + $0xc] sm:$0xf]
        %v1816 = vld [vmem:[%s18 + $0x10] sm:$0xf]
        %v1817 = vld [vmem:[%s18 + $0x14] sm:$0xf]
        %v1818 = vld [vmem:[%s18 + $0x18] sm:$0xf]
        %v1819 = vld [vmem:[%s18 + $0x1c] sm:$0xf]
        %v1820 = vld [vmem:[%s19] sm:$0x1]
        %v1822 = vperm.slane %v1820, 0
        %v1832 = vunpack.c.l.b16 %v1812
        %v1833 = vunpack.c.l.b16 %v1813
        %v1834 = vunpack.c.l.b16 %v1814
        %v1835 = vunpack.c.l.b16 %v1815
        %v1836 = vunpack.c.l.b16 %v1816
        %v1837 = vunpack.c.l.b16 %v1817
        %v1838 = vunpack.c.l.b16 %v1818
        %v1839 = vunpack.c.l.b16 %v1819
        %v1840 = vpack.c.b16 %v1833, %v1832
        %v1841 = vpack.c.b16 %v1835, %v1834
        %v1842 = vpack.c.b16 %v1837, %v1836
        %v1843 = vpack.c.b16 %v1839, %v1838
        %vm1848 = vcmask 523264
        %v1850 = vsel %vm1848, %v1811, 0
        %1852 = vmatpush.bf16.msra.mxu0 0
        %1853 = vmatpush.bf16.msra.mxu0 0
        %1854 = vmatpush.bf16.msra.mxu0 0
        %1855 = vmatpush.bf16.msra.mxu0 0
        %1856 = vmatpush.bf16.msra.mxu0 %v1843
        %1857 = vmatpush.bf16.msra.mxu0 %v1842
        %1858 = vmatpush.bf16.msra.mxu0 %v1841
        %1859 = vmatpush.bf16.msra.mxu0 %v1840
        %1860 = vmatmul.bf16.gmra.mxu0 %v1850
        %v1861 = vpop.f32.mrf.mxu0
        %v1862 = vadd.f32 %v1822, %v1861
        %v1863 = vpop.f32.mrf.mxu0
        %1864 = vdwg.mxu0
        %v1865 = vadd.f32 %v1862, %v1740
        %1866 = vst.msk [vmem:[%s712] sm:$0xff] %vm1059, %v1865
        %s1867 = sand.u32 %s503, 1
        %s1868 = scalar_lea.sflag [#allocation5], %s1867
        %s1869 = sand.u32 %s503, 1
        %s1870 = smul.addr %s1869, 8
        %s1871 = scalar_lea.vmem [#allocation4], %s1870
        %s1872 = sand.u32 %s531, 1
        %s1873 = scalar_lea.sflag [#allocation7], %s1872
        %s1874 = sand.u32 %s531, 1
        %s1875 = smul.addr %s1874, 4
        %s1876 = scalar_lea.vmem [#allocation6], %s1875
        // Predicated region
        $region105: #{tpu_custom_call.1} parent=99 // pred_check
          %p1877 = pneg %p513
        $region106: #{tpu_custom_call.1} parent=99 // pred_check_branch
          %1879 = sbr.rel (%p1877) target = $region108
        $region107: #{tpu_custom_call.1} parent=99 // pred_region
          %1881 = vsyncadd %s1868, 0
          %s1882 = sadd.s32 %s44, %s43
          %s1883 = smul.addr %s1882, 8
          %s1884 = scalar_lea.hbm %s20, %s1883
          %s1886 = sshll.u32 %s1871, 4
          %s1887 = int_to_ptr.vmem [resolvable:$true] %s1886
          %s1888 = sshll.u32 %s1884, 4
          %s1889 = int_to_ptr.hbm [resolvable:$true] %s1888
          %1891 = dma.vmem_to_hbm [thread:$0]  %s1887, 128, %s1889, %s1868
        $region108: #{tpu_custom_call.1} parent=99 // pred_fallthru
          _
        // Predicated region
        $region109: #{tpu_custom_call.1} parent=99 // pred_check
          %p1892 = pneg %p541
        $region110: #{tpu_custom_call.1} parent=99 // pred_check_branch
          %1894 = sbr.rel (%p1892) target = $region112
        $region111: #{tpu_custom_call.1} parent=99 // pred_region
          %1896 = vsyncadd %s1873, 0
          %s1897 = sadd.s32 %s44, %s43
          %s1898 = smul.addr %s1897, 4
          %s1899 = scalar_lea.hbm %s21, %s1898
          %s1901 = sshll.u32 %s1876, 4
          %s1902 = int_to_ptr.vmem [resolvable:$true] %s1901
          %s1903 = sshll.u32 %s1899, 4
          %s1904 = int_to_ptr.hbm [resolvable:$true] %s1903
          %1906 = dma.vmem_to_hbm [thread:$0]  %s1902, 64, %s1904, %s1873
        $region112: #{tpu_custom_call.1} parent=99 // pred_fallthru
          _
      $region100: #{tpu_custom_call.1} parent=5 // pred_fallthru
        _
      %p1907 = scmp.le.s32.totalorder 2, %s34
      // Predicated region
      $region113: #{tpu_custom_call.1} parent=5 // pred_check
        %p1908 = pneg %p1907
      $region114: #{tpu_custom_call.1} parent=5 // pred_check_branch
        %1910 = sbr.rel (%p1908) target = $region116
      $region115: #{tpu_custom_call.1} parent=5 // pred_region
        %s1911 = ssub.s32 %s34, 2
        // Predicated region
        $region117: #{tpu_custom_call.1} parent=115 // pred_check
          %p1912 = pneg %p519
        $region118: #{tpu_custom_call.1} parent=115 // pred_check_branch
          %1914 = sbr.rel (%p1912) target = $region120
        $region119: #{tpu_custom_call.1} parent=115 // pred_region
          %s1915 = sand.u32 %s504, 1
          %s1916 = scalar_lea.sflag [#allocation5], %s1915
          %s1917 = sand.u32 %s504, 1
          %s1918 = smul.addr %s1917, 8
          %s1919 = scalar_lea.vmem [#allocation4], %s1918
          %1921 = dma.done %s1916, 128
        $region120: #{tpu_custom_call.1} parent=115 // pred_fallthru
          _
        // Predicated region
        $region121: #{tpu_custom_call.1} parent=115 // pred_check
          %p1922 = pneg %p547
        $region122: #{tpu_custom_call.1} parent=115 // pred_check_branch
          %1924 = sbr.rel (%p1922) target = $region124
        $region123: #{tpu_custom_call.1} parent=115 // pred_region
          %s1925 = sand.u32 %s532, 1
          %s1926 = scalar_lea.sflag [#allocation7], %s1925
          %s1927 = sand.u32 %s532, 1
          %s1928 = smul.addr %s1927, 4
          %s1929 = scalar_lea.vmem [#allocation6], %s1928
          %1931 = dma.done %s1926, 64
        $region124: #{tpu_custom_call.1} parent=115 // pred_fallthru
          _
      $region116: #{tpu_custom_call.1} parent=5 // pred_fallthru
        _
    $region6: #{tpu_custom_call.1} parent=1 // loop_footer
      %s38 = sadd.s32 1, %s34
    $region7: #{tpu_custom_call.1} parent=1 // loop_footer_branch
      %33 = sbr.rel target = $region3
    $region8: #{tpu_custom_call.1} parent=1 // loop_exit
      _
    %1932 = vsyncpa [#allocation5], 1
    %s1933 = scalar_lea.sflag [#allocation5], 1
    %1934 = vsyncpa %s1933, 1
    %1935 = vsyncpa [#allocation7], 1
    %s1936 = scalar_lea.sflag [#allocation7], 1
    %1937 = vsyncpa %s1936, 1

</llo_original>
